<compile_context>
chip_gen: v7x
topology: tpu7x:2x2x1
jax: 0.10.0
libtpu: 0.0.40
codegen_flags: <defaults>
</compile_context>

<pallas_src>
import math
import numpy as np
import jax
import jax.numpy as jnp
from jax.experimental import pallas as pl
from jax.experimental.pallas import tpu as pltpu

TARGET_DIM = 2


# ------------------------------ fused kernel --------------------------------

def _music_highlighter_kernel(x_ref, m1_ref, s1_ref, m2_ref, s2_ref, m3_ref,
                              s3_ref, pe_ref, lens_ref,
                              hw1_ref, hb1_ref, hw2_ref, hb2_ref, w3_ref, b3_ref,
                              wr1_ref, br1_ref, wr2_ref, br2_ref,
                              preds_ref, alpha_ref):
    B, L = alpha_ref.shape
    Dp = pe_ref.shape[1]
    N = B * L

    # ---- conv stack: three chunk-batched dense matmuls (all chunks at once)
    x = x_ref[...].astype(jnp.bfloat16)                                   # (N, H*W)
    a1 = jnp.dot(x, m1_ref[...], preferred_element_type=jnp.float32)
    a1 = jnp.maximum(a1 + s1_ref[...], 0.0).astype(jnp.bfloat16)          # (N, N1)
    a2 = jnp.dot(a1, m2_ref[...], preferred_element_type=jnp.float32)
    a2 = jnp.maximum(a2 + s2_ref[...], 0.0).astype(jnp.bfloat16)          # (N, N2)
    a3 = jnp.dot(a2, m3_ref[...], preferred_element_type=jnp.float32)
    a3 = jnp.maximum(a3 + s3_ref[...], 0.0)                               # (N, P3*Dp) f32

    # ---- AdaptiveMaxPool2d(1): max over the P3 spatial positions.
    # Position-major, 128-padded channel layout -> 128-lane-aligned slices.
    P3 = a3.shape[1] // Dp
    h = a3[:, 0:Dp]
    for p in range(1, P3):
        h = jnp.maximum(h, a3[:, p * Dp:(p + 1) * Dp])                    # (N, Dp) f32

    # ---- attention MLP (Dropout == identity at inference)
    h3 = h.reshape(B, L, Dp)                                              # leading-dim split
    hp = (h3 + pe_ref[...][None, :, :]).reshape(N, Dp).astype(jnp.bfloat16)
    z1 = jnp.maximum(
        jnp.dot(hp, hw1_ref[...], preferred_element_type=jnp.float32) + hb1_ref[...],
        0.0)
    z2 = jnp.tanh(
        jnp.dot(z1.astype(jnp.bfloat16), hw2_ref[...],
                preferred_element_type=jnp.float32) + hb2_ref[...])
    # final attention layer has one output unit: multiply + lane-reduce
    logits = jnp.sum(z2.reshape(B, L, Dp) * w3_ref[...][None, :, :], axis=-1)
    logits = logits + b3_ref[...]                                         # (B, L)

    # ---- masked softmax over sequence positions (vectorized length mask)
    pos = jax.lax.broadcasted_iota(jnp.int32, (B, L), 1)
    valid = pos < lens_ref[...]                                           # (B, L)
    logits = jnp.where(valid, logits, -1e30)
    m = jnp.max(logits, axis=1, keepdims=True)
    e = jnp.where(valid, jnp.exp(logits - m), 0.0)
    denom = jnp.maximum(jnp.sum(e, axis=1, keepdims=True), 1e-30)
    alpha = e * pl.reciprocal(denom, approx=True)                         # (B, L)
    # (guards make lens==0 rows all-zero instead of NaN; identical results for
    #  lens>=1, masked entries are exactly 0.)

    # ---- attention-weighted context + regressor head
    ctx = jnp.sum(alpha[:, :, None] * h3, axis=1)                         # (B, Dp) f32
    r1 = jnp.maximum(
        jnp.dot(ctx.astype(jnp.bfloat16), wr1_ref[...],
                preferred_element_type=jnp.float32) + br1_ref[...],
        0.0)
    preds = jax.nn.sigmoid(
        jnp.dot(r1.astype(jnp.bfloat16), wr2_ref[...],
                preferred_element_type=jnp.float32) + br2_ref[...])

    preds_ref[...] = preds
    alpha_ref[...] = alpha


# ------------------------------ call wrapper ---------------------------------

@jax.jit
def music_highlighter_forward(x, lens, kp):
    # x: (B, Lmax, H, W) f32, lens: (B,) int, kp: dict of constant arrays.
    B, Lmax, H, W = x.shape
    N = B * Lmax
    xf = x.reshape(N, H * W)                      # free view; kernel absorbs im2col
    lens2 = lens.astype(jnp.int32).reshape(B, 1)
    vmem = pl.BlockSpec(memory_space=pltpu.MemorySpace.VMEM)
    preds, alpha = pl.pallas_call(
        _music_highlighter_kernel,
        out_shape=(jax.ShapeDtypeStruct((B, TARGET_DIM), jnp.float32),
                   jax.ShapeDtypeStruct((B, Lmax), jnp.float32)),
        in_specs=[vmem] * 19,
        out_specs=(vmem, vmem),
    )(xf, kp['M1'], kp['S1'], kp['M2'], kp['S2'], kp['M3'], kp['S3'],
      kp['pe'], lens2,
      kp['hw1'], kp['hb1'], kp['hw2'], kp['hb2'], kp['w3'], kp['b3'],
      kp['wr1'], kp['br1'], kp['wr2'], kp['br2'])
    return preds, alpha


# --------------------- constant folding done once at init --------------------

def pos_enc(L, D):
    pos = jnp.arange(L, dtype=jnp.float32)[:, None]
    div = jnp.exp(jnp.arange(0, D, 2, dtype=jnp.float32) * (-math.log(10000.0) / D))
    pe = jnp.zeros((L, D), jnp.float32)
    pe = pe.at[:, 0::2].set(jnp.sin(pos * div))
    pe = pe.at[:, 1::2].set(jnp.cos(pos * div))
    return pe


def _conv_out(n, k=3, s=2):
    return (n - k) // s + 1


def _round_up(n, m):
    return -(-n // m) * m


def _build_lowered_convs(folded, H, W, Dp):
    # Fold im2col + stride-2 patch selection + per-tap weights of all three
    # conv layers into dense matrices (position-major, channel-minor layout,
    # last layer padded per position to Dp lanes).
    (w1, sh1), (w2, sh2), (w3, sh3) = folded            # numpy f32, BN scale folded
    C1, C2, D = w1.shape[0], w2.shape[0], w3.shape[0]
    OH1, OW1 = _conv_out(H), _conv_out(W)
    OH2, OW2 = _conv_out(OH1), _conv_out(OW1)
    OH3, OW3 = _conv_out(OH2), _conv_out(OW2)
    P1, P2, P3 = OH1 * OW1, OH2 * OW2, OH3 * OW3
    N1 = _round_up(P1 * C1, 128)
    N2 = _round_up(P2 * C2, 128)
    N3 = P3 * Dp

    M1 = np.zeros((H * W, N1), np.float32)
    S1 = np.zeros((1, N1), np.float32)
    for p1 in range(P1):
        i1, j1 = divmod(p1, OW1)
        S1[0, p1 * C1:(p1 + 1) * C1] = sh1
        for kh in range(3):
            for kw in range(3):
                M1[(2 * i1 + kh) * W + (2 * j1 + kw), p1 * C1:(p1 + 1) * C1] = \
                    w1[:, 0, kh, kw]

    M2 = np.zeros((N1, N2), np.float32)
    S2 = np.zeros((1, N2), np.float32)
    for p2 in range(P2):
        i2, j2 = divmod(p2, OW2)
        S2[0, p2 * C2:(p2 + 1) * C2] = sh2
        for kh in range(3):
            for kw in range(3):
                p1 = (2 * i2 + kh) * OW1 + (2 * j2 + kw)
                M2[p1 * C1:(p1 + 1) * C1, p2 * C2:(p2 + 1) * C2] = w2[:, :, kh, kw].T

    M3 = np.zeros((N2, N3), np.float32)
    S3 = np.zeros((1, N3), np.float32)
    for p3 in range(P3):
        i3, j3 = divmod(p3, OW3)
        S3[0, p3 * Dp:p3 * Dp + D] = sh3
        for kh in range(3):
            for kw in range(3):
                p2 = (2 * i3 + kh) * OW2 + (2 * j3 + kw)
                M3[p2 * C2:(p2 + 1) * C2, p3 * Dp:p3 * Dp + D] = w3[:, :, kh, kw].T

    return M1, S1, M2, S2, M3, S3


def init_params(key, dim=8, H=24, W=24, Lmax=8):
    D = dim * 4
    Dp = max(128, _round_up(D, 128))      # lane-dense padded feature width
    eps = 1e-5
    keys = iter(jax.random.split(key, 20))

    # raw conv + BatchNorm (eval / running-stats) parameters
    chans = [(1, dim), (dim, 2 * dim), (2 * dim, D)]
    raw_convs = []
    for (ci, co) in chans:
        w = jax.random.normal(next(keys), (co, ci, 3, 3), jnp.float32) * 0.1
        gamma = 1.0 + 0.1 * jax.random.normal(next(keys), (co,), jnp.float32)
        beta = 0.1 * jax.random.normal(next(keys), (co,), jnp.float32)
        mean = 0.05 * jax.random.normal(next(keys), (co,), jnp.float32)
        var = jnp.abs(jax.random.normal(next(keys), (co,), jnp.float32)) + 0.5
        raw_convs.append((w, gamma, beta, mean, var))

    # fold BN (eval) scale into conv weights; keep additive shift
    folded = []
    for (w, g, b, m, v) in raw_convs:
        scale = g / jnp.sqrt(v + eps)
        shift = b - m * scale
        folded.append((np.asarray(w * scale[:, None, None, None], np.float32),
                       np.asarray(shift, np.float32)))

    M1, S1, M2, S2, M3, S3 = _build_lowered_convs(folded, H, W, Dp)

    def lin(k, fi, fo, s=0.1):
        kw_, kb_ = jax.random.split(k)
        return (jax.random.normal(kw_, (fi, fo), jnp.float32) * s,
                jax.random.normal(kb_, (1, fo), jnp.float32) * s)

    aw1, ab1 = lin(next(keys), D, D)
    aw2, ab2 = lin(next(keys), D, D)
    aw3, ab3 = lin(next(keys), D, 1)
    rw1, rb1 = lin(next(keys), D, 128)
    rw2, rb2 = lin(next(keys), 128, TARGET_DIM)

    def padw(w, rows, cols):
        return jnp.pad(w, ((0, rows - w.shape[0]), (0, cols - w.shape[1])))

    pe = jnp.pad(pos_enc(Lmax, D), ((0, 0), (0, Dp - D)))   # (Lmax, Dp)

    kernel = dict(
        M1=jnp.asarray(M1, jnp.bfloat16), S1=jnp.asarray(S1, jnp.float32),
        M2=jnp.asarray(M2, jnp.bfloat16), S2=jnp.asarray(S2, jnp.float32),
        M3=jnp.asarray(M3, jnp.bfloat16), S3=jnp.asarray(S3, jnp.float32),
        pe=pe,
        # head weights zero-padded to the 128-lane feature width (exact no-op)
        hw1=padw(aw1, Dp, Dp).astype(jnp.bfloat16), hb1=padw(ab1, 1, Dp),
        hw2=padw(aw2, Dp, Dp).astype(jnp.bfloat16), hb2=padw(ab2, 1, Dp),
        w3=padw(aw3.T, 1, Dp), b3=ab3,                       # f32 row + scalar
        wr1=padw(rw1, Dp, 128).astype(jnp.bfloat16), br1=rb1,
        wr2=rw2.astype(jnp.bfloat16), br2=rb2,
    )
    ref = dict(convs=raw_convs,
               aw1=aw1, ab1=ab1, aw2=aw2, ab2=ab2, aw3=aw3, ab3=ab3,
               rw1=rw1, rb1=rb1, rw2=rw2, rb2=rb2)
    return dict(kernel=kernel, ref=ref)


# ------------------- pure-JAX f32 reference (PyTorch semantics) --------------

@jax.jit
def reference_forward(x, lens, ref):
    B, Lmax, H, W = x.shape
    N = B * Lmax
    h = x.reshape(N, 1, H, W)
    for (w, g, b, m, v) in ref['convs']:
        h = jax.lax.conv_general_dilated(h, w, (2, 2), 'VALID',
                                         dimension_numbers=('NCHW', 'OIHW', 'NCHW'))
        scale = (g / jnp.sqrt(v + 1e-5))[None, :, None, None]
        h = jnp.maximum((h - m[None, :, None, None]) * scale + b[None, :, None, None], 0.0)
    h = jnp.max(h, axis=(2, 3))                     # AdaptiveMaxPool2d(1) -> (N, D)
    D = h.shape[1]
    hbl = h.reshape(B, Lmax, D)
    hp = (hbl + pos_enc(Lmax, D)[None]).reshape(N, D)
    z1 = jnp.maximum(hp @ ref['aw1'] + ref['ab1'], 0.0)
    z2 = jnp.tanh(z1 @ ref['aw2'] + ref['ab2'])
    logits = (z2 @ ref['aw3'] + ref['ab3']).reshape(B, Lmax)
    mask = jnp.arange(Lmax)[None, :] >= lens[:, None]
    logits = jnp.where(mask, -jnp.inf, logits)
    alpha = jax.nn.softmax(logits, axis=1)
    ctx = jnp.einsum('bl,bld->bd', alpha, hbl)
    r1 = jnp.maximum(ctx @ ref['rw1'] + ref['rb1'], 0.0)
    preds = jax.nn.sigmoid(r1 @ ref['rw2'] + ref['rb2'])
    return preds, alpha


# ----------------------------------- main ------------------------------------

if __name__ == "__main__":
    key = jax.random.PRNGKey(0)
    kx, kp = jax.random.split(key)

    # small shapes consistent with the module: B=2, Lmax=8, 24x24 spectrogram
    # chunks, dim=8 -> D=32.  Spatial path: 24 -> 11 -> 5 -> 2 -> maxpool(1).
    B, Lmax, H, W = 2, 8, 24, 24
    dim = 8

    x = jax.random.normal(kx, (B, Lmax, H, W), jnp.float32)
    lens = jnp.array([8, 5], dtype=jnp.int32)
    params = init_params(kp, dim=dim, H=H, W=W, Lmax=Lmax)

    preds, alpha = music_highlighter_forward(x, lens, params['kernel'])
    jax.block_until_ready((preds, alpha))

    assert preds.shape == (B, TARGET_DIM)
    assert alpha.shape == (B, Lmax)
    # masked positions must get exactly zero attention
    assert float(jnp.sum(jnp.abs(alpha[1, 5:]))) == 0.0
    assert bool(jnp.all(jnp.isfinite(preds))) and bool(jnp.all(jnp.isfinite(alpha)))

    # compare against the pure-JAX f32 reference (bf16 matmuls => ~1e-2 tol)
    rpreds, ralpha = reference_forward(x, lens, params['ref'])
    jax.block_until_ready((rpreds, ralpha))
    p_err = float(jnp.max(jnp.abs(preds - rpreds)))
    a_err = float(jnp.max(jnp.abs(alpha - ralpha)))
    assert p_err < 3e-2 and a_err < 3e-2, (p_err, a_err)

    print("KERNEL_OK")
</pallas_src>

<mosaic_0001>
module attributes {stable_mosaic.version = 11 : i64} {
  func.func @_music_highlighter_kernel(%arg0: memref<16x576xf32, #tpu.memory_space<vmem>>, %arg1: memref<576x1024xbf16, #tpu.memory_space<vmem>>, %arg2: memref<1x1024xf32, #tpu.memory_space<vmem>>, %arg3: memref<1024x512xbf16, #tpu.memory_space<vmem>>, %arg4: memref<1x512xf32, #tpu.memory_space<vmem>>, %arg5: memref<512x512xbf16, #tpu.memory_space<vmem>>, %arg6: memref<1x512xf32, #tpu.memory_space<vmem>>, %arg7: memref<8x128xf32, #tpu.memory_space<vmem>>, %arg8: memref<2x1xi32, #tpu.memory_space<vmem>>, %arg9: memref<128x128xbf16, #tpu.memory_space<vmem>>, %arg10: memref<1x128xf32, #tpu.memory_space<vmem>>, %arg11: memref<128x128xbf16, #tpu.memory_space<vmem>>, %arg12: memref<1x128xf32, #tpu.memory_space<vmem>>, %arg13: memref<1x128xf32, #tpu.memory_space<vmem>>, %arg14: memref<1x1xf32, #tpu.memory_space<vmem>>, %arg15: memref<128x128xbf16, #tpu.memory_space<vmem>>, %arg16: memref<1x128xf32, #tpu.memory_space<vmem>>, %arg17: memref<128x2xbf16, #tpu.memory_space<vmem>>, %arg18: memref<1x2xf32, #tpu.memory_space<vmem>>, %arg19: memref<2x2xf32, #tpu.memory_space<vmem>>, %arg20: memref<2x8xf32, #tpu.memory_space<vmem>>) attributes {dimension_semantics = [], scalar_prefetch = 0 : i64, scratch_operands = 0 : i64, tpu.core_type = #tpu.core_type<tc>} {
    %c0 = arith.constant 0 : index
    %c0_0 = arith.constant 0 : index
    %0 = vector.load %arg0[%c0, %c0_0] : memref<16x576xf32, #tpu.memory_space<vmem>>, vector<16x576xf32>
    %1 = arith.truncf %0 : vector<16x576xf32> to vector<16x576xbf16>
    %c0_1 = arith.constant 0 : index
    %c0_2 = arith.constant 0 : index
    %2 = vector.load %arg1[%c0_1, %c0_2] : memref<576x1024xbf16, #tpu.memory_space<vmem>>, vector<576x1024xbf16>
    %cst = arith.constant dense<0.000000e+00> : vector<16x1024xf32>
    %3 = tpu.matmul %1, %2, %cst {dimension_numbers = #tpu.dot_dimension_numbers<[1], [0], [0], [1], [0, 0, 1, 1], [], []>} : vector<16x576xbf16>, vector<576x1024xbf16>, vector<16x1024xf32> -> vector<16x1024xf32>
    %c0_3 = arith.constant 0 : index
    %c0_4 = arith.constant 0 : index
    %4 = vector.load %arg2[%c0_3, %c0_4] : memref<1x1024xf32, #tpu.memory_space<vmem>>, vector<1x1024xf32>
    %5 = vector.broadcast %4 : vector<1x1024xf32> to vector<16x1024xf32>
    %6 = arith.addf %3, %5 : vector<16x1024xf32>
    %cst_5 = arith.constant 0.000000e+00 : f32
    %7 = vector.broadcast %cst_5 : f32 to vector<16x1024xf32>
    %8 = arith.maximumf %6, %7 : vector<16x1024xf32>
    %9 = arith.truncf %8 : vector<16x1024xf32> to vector<16x1024xbf16>
    %c0_6 = arith.constant 0 : index
    %c0_7 = arith.constant 0 : index
    %10 = vector.load %arg3[%c0_6, %c0_7] : memref<1024x512xbf16, #tpu.memory_space<vmem>>, vector<1024x512xbf16>
    %cst_8 = arith.constant dense<0.000000e+00> : vector<16x512xf32>
    %11 = tpu.matmul %9, %10, %cst_8 {dimension_numbers = #tpu.dot_dimension_numbers<[1], [0], [0], [1], [0, 0, 1, 1], [], []>} : vector<16x1024xbf16>, vector<1024x512xbf16>, vector<16x512xf32> -> vector<16x512xf32>
    %c0_9 = arith.constant 0 : index
    %c0_10 = arith.constant 0 : index
    %12 = vector.load %arg4[%c0_9, %c0_10] : memref<1x512xf32, #tpu.memory_space<vmem>>, vector<1x512xf32>
    %13 = vector.broadcast %12 : vector<1x512xf32> to vector<16x512xf32>
    %14 = arith.addf %11, %13 : vector<16x512xf32>
    %cst_11 = arith.constant 0.000000e+00 : f32
    %15 = vector.broadcast %cst_11 : f32 to vector<16x512xf32>
    %16 = arith.maximumf %14, %15 : vector<16x512xf32>
    %17 = arith.truncf %16 : vector<16x512xf32> to vector<16x512xbf16>
    %c0_12 = arith.constant 0 : index
    %c0_13 = arith.constant 0 : index
    %18 = vector.load %arg5[%c0_12, %c0_13] : memref<512x512xbf16, #tpu.memory_space<vmem>>, vector<512x512xbf16>
    %cst_14 = arith.constant dense<0.000000e+00> : vector<16x512xf32>
    %19 = tpu.matmul %17, %18, %cst_14 {dimension_numbers = #tpu.dot_dimension_numbers<[1], [0], [0], [1], [0, 0, 1, 1], [], []>} : vector<16x512xbf16>, vector<512x512xbf16>, vector<16x512xf32> -> vector<16x512xf32>
    %c0_15 = arith.constant 0 : index
    %c0_16 = arith.constant 0 : index
    %20 = vector.load %arg6[%c0_15, %c0_16] : memref<1x512xf32, #tpu.memory_space<vmem>>, vector<1x512xf32>
    %21 = vector.broadcast %20 : vector<1x512xf32> to vector<16x512xf32>
    %22 = arith.addf %19, %21 : vector<16x512xf32>
    %cst_17 = arith.constant 0.000000e+00 : f32
    %23 = vector.broadcast %cst_17 : f32 to vector<16x512xf32>
    %24 = arith.maximumf %22, %23 : vector<16x512xf32>
    %25 = vector.extract_strided_slice %24 {offsets = [0, 0], sizes = [16, 128], strides = [1, 1]} : vector<16x512xf32> to vector<16x128xf32>
    %26 = vector.extract_strided_slice %24 {offsets = [0, 128], sizes = [16, 128], strides = [1, 1]} : vector<16x512xf32> to vector<16x128xf32>
    %27 = arith.maximumf %25, %26 : vector<16x128xf32>
    %28 = vector.extract_strided_slice %24 {offsets = [0, 256], sizes = [16, 128], strides = [1, 1]} : vector<16x512xf32> to vector<16x128xf32>
    %29 = arith.maximumf %27, %28 : vector<16x128xf32>
    %30 = vector.extract_strided_slice %24 {offsets = [0, 384], sizes = [16, 128], strides = [1, 1]} : vector<16x512xf32> to vector<16x128xf32>
    %31 = arith.maximumf %29, %30 : vector<16x128xf32>
    %32 = vector.shape_cast %31 : vector<16x128xf32> to vector<2x8x128xf32>
    %c0_18 = arith.constant 0 : index
    %c0_19 = arith.constant 0 : index
    %33 = vector.load %arg7[%c0_18, %c0_19] : memref<8x128xf32, #tpu.memory_space<vmem>>, vector<8x128xf32>
    %34 = vector.shape_cast %33 : vector<8x128xf32> to vector<1x8x128xf32>
    %35 = vector.broadcast %34 : vector<1x8x128xf32> to vector<2x8x128xf32>
    %36 = arith.addf %32, %35 : vector<2x8x128xf32>
    %37 = vector.shape_cast %36 : vector<2x8x128xf32> to vector<16x128xf32>
    %38 = arith.truncf %37 : vector<16x128xf32> to vector<16x128xbf16>
    %c0_20 = arith.constant 0 : index
    %c0_21 = arith.constant 0 : index
    %39 = vector.load %arg9[%c0_20, %c0_21] : memref<128x128xbf16, #tpu.memory_space<vmem>>, vector<128x128xbf16>
    %cst_22 = arith.constant dense<0.000000e+00> : vector<16x128xf32>
    %40 = tpu.matmul %38, %39, %cst_22 {dimension_numbers = #tpu.dot_dimension_numbers<[1], [0], [0], [1], [0, 0, 1, 1], [], []>} : vector<16x128xbf16>, vector<128x128xbf16>, vector<16x128xf32> -> vector<16x128xf32>
    %c0_23 = arith.constant 0 : index
    %c0_24 = arith.constant 0 : index
    %41 = vector.load %arg10[%c0_23, %c0_24] : memref<1x128xf32, #tpu.memory_space<vmem>>, vector<1x128xf32>
    %42 = vector.broadcast %41 : vector<1x128xf32> to vector<16x128xf32>
    %43 = arith.addf %40, %42 : vector<16x128xf32>
    %cst_25 = arith.constant 0.000000e+00 : f32
    %44 = vector.broadcast %cst_25 : f32 to vector<16x128xf32>
    %45 = arith.maximumf %43, %44 : vector<16x128xf32>
    %46 = arith.truncf %45 : vector<16x128xf32> to vector<16x128xbf16>
    %c0_26 = arith.constant 0 : index
    %c0_27 = arith.constant 0 : index
    %47 = vector.load %arg11[%c0_26, %c0_27] : memref<128x128xbf16, #tpu.memory_space<vmem>>, vector<128x128xbf16>
    %cst_28 = arith.constant dense<0.000000e+00> : vector<16x128xf32>
    %48 = tpu.matmul %46, %47, %cst_28 {dimension_numbers = #tpu.dot_dimension_numbers<[1], [0], [0], [1], [0, 0, 1, 1], [], []>} : vector<16x128xbf16>, vector<128x128xbf16>, vector<16x128xf32> -> vector<16x128xf32>
    %c0_29 = arith.constant 0 : index
    %c0_30 = arith.constant 0 : index
    %49 = vector.load %arg12[%c0_29, %c0_30] : memref<1x128xf32, #tpu.memory_space<vmem>>, vector<1x128xf32>
    %50 = vector.broadcast %49 : vector<1x128xf32> to vector<16x128xf32>
    %51 = arith.addf %48, %50 : vector<16x128xf32>
    %52 = math.tanh %51 : vector<16x128xf32>
    %53 = vector.shape_cast %52 : vector<16x128xf32> to vector<2x8x128xf32>
    %c0_31 = arith.constant 0 : index
    %c0_32 = arith.constant 0 : index
    %54 = vector.load %arg13[%c0_31, %c0_32] : memref<1x128xf32, #tpu.memory_space<vmem>>, vector<1x128xf32>
    %55 = vector.shape_cast %54 : vector<1x128xf32> to vector<1x1x128xf32>
    %56 = vector.broadcast %55 : vector<1x1x128xf32> to vector<2x8x128xf32>
    %57 = arith.mulf %53, %56 : vector<2x8x128xf32>
    %cst_33 = arith.constant dense<0.000000e+00> : vector<2x8xf32>
    %58 = vector.multi_reduction <add>, %57, %cst_33 [2] : vector<2x8x128xf32> to vector<2x8xf32>
    %c0_34 = arith.constant 0 : index
    %c0_35 = arith.constant 0 : index
    %59 = vector.load %arg14[%c0_34, %c0_35] : memref<1x1xf32, #tpu.memory_space<vmem>>, vector<1x1xf32>
    %60 = vector.broadcast %59 : vector<1x1xf32> to vector<2x8xf32>
    %61 = arith.addf %58, %60 : vector<2x8xf32>
    %62 = tpu.iota {dimensions = array<i32: 1>} : vector<2x8xi32>
    %c0_36 = arith.constant 0 : index
    %c0_37 = arith.constant 0 : index
    %63 = vector.load %arg8[%c0_36, %c0_37] : memref<2x1xi32, #tpu.memory_space<vmem>>, vector<2x1xi32>
    %64 = vector.broadcast %63 : vector<2x1xi32> to vector<2x8xi32>
    %65 = arith.cmpi slt, %62, %64 : vector<2x8xi32>
    %cst_38 = arith.constant -1.000000e+30 : f32
    %66 = vector.broadcast %cst_38 : f32 to vector<2x8xf32>
    %67 = arith.select %65, %61, %66 : vector<2x8xi1>, vector<2x8xf32>
    %cst_39 = arith.constant dense<0xFF800000> : vector<2xf32>
    %68 = vector.multi_reduction <maximumf>, %67, %cst_39 [1] : vector<2x8xf32> to vector<2xf32>
    %69 = vector.shape_cast %68 : vector<2xf32> to vector<2x1xf32>
    %70 = vector.broadcast %69 : vector<2x1xf32> to vector<2x8xf32>
    %71 = arith.subf %67, %70 : vector<2x8xf32>
    %72 = math.exp %71 : vector<2x8xf32>
    %cst_40 = arith.constant 0.000000e+00 : f32
    %73 = vector.broadcast %cst_40 : f32 to vector<2x8xf32>
    %74 = arith.select %65, %72, %73 : vector<2x8xi1>, vector<2x8xf32>
    %cst_41 = arith.constant dense<0.000000e+00> : vector<2xf32>
    %75 = vector.multi_reduction <add>, %74, %cst_41 [1] : vector<2x8xf32> to vector<2xf32>
    %76 = vector.shape_cast %75 : vector<2xf32> to vector<2x1xf32>
    %cst_42 = arith.constant 1.000000e-30 : f32
    %77 = vector.broadcast %cst_42 : f32 to vector<2x1xf32>
    %78 = arith.maximumf %76, %77 : vector<2x1xf32>
    %79 = tpu.reciprocal %78 {approx = true} : vector<2x1xf32> -> vector<2x1xf32>
    %80 = vector.broadcast %79 : vector<2x1xf32> to vector<2x8xf32>
    %81 = arith.mulf %74, %80 : vector<2x8xf32>
    %82 = vector.shape_cast %81 : vector<2x8xf32> to vector<2x8x1xf32>
    %83 = vector.broadcast %82 : vector<2x8x1xf32> to vector<2x8x128xf32>
    %84 = arith.mulf %83, %32 : vector<2x8x128xf32>
    %cst_43 = arith.constant dense<0.000000e+00> : vector<2x128xf32>
    %85 = vector.multi_reduction <add>, %84, %cst_43 [1] : vector<2x8x128xf32> to vector<2x128xf32>
    %86 = arith.truncf %85 : vector<2x128xf32> to vector<2x128xbf16>
    %c0_44 = arith.constant 0 : index
    %c0_45 = arith.constant 0 : index
    %87 = vector.load %arg15[%c0_44, %c0_45] : memref<128x128xbf16, #tpu.memory_space<vmem>>, vector<128x128xbf16>
    %cst_46 = arith.constant dense<0.000000e+00> : vector<2x128xf32>
    %88 = tpu.matmul %86, %87, %cst_46 {dimension_numbers = #tpu.dot_dimension_numbers<[1], [0], [0], [1], [0, 0, 1, 1], [], []>} : vector<2x128xbf16>, vector<128x128xbf16>, vector<2x128xf32> -> vector<2x128xf32>
    %c0_47 = arith.constant 0 : index
    %c0_48 = arith.constant 0 : index
    %89 = vector.load %arg16[%c0_47, %c0_48] : memref<1x128xf32, #tpu.memory_space<vmem>>, vector<1x128xf32>
    %90 = vector.broadcast %89 : vector<1x128xf32> to vector<2x128xf32>
    %91 = arith.addf %88, %90 : vector<2x128xf32>
    %cst_49 = arith.constant 0.000000e+00 : f32
    %92 = vector.broadcast %cst_49 : f32 to vector<2x128xf32>
    %93 = arith.maximumf %91, %92 : vector<2x128xf32>
    %94 = arith.truncf %93 : vector<2x128xf32> to vector<2x128xbf16>
    %c0_50 = arith.constant 0 : index
    %c0_51 = arith.constant 0 : index
    %95 = vector.load %arg17[%c0_50, %c0_51] : memref<128x2xbf16, #tpu.memory_space<vmem>>, vector<128x2xbf16>
    %cst_52 = arith.constant dense<0.000000e+00> : vector<2x2xf32>
    %96 = tpu.matmul %94, %95, %cst_52 {dimension_numbers = #tpu.dot_dimension_numbers<[1], [0], [0], [1], [0, 0, 1, 1], [], []>} : vector<2x128xbf16>, vector<128x2xbf16>, vector<2x2xf32> -> vector<2x2xf32>
    %c0_53 = arith.constant 0 : index
    %c0_54 = arith.constant 0 : index
    %97 = vector.load %arg18[%c0_53, %c0_54] : memref<1x2xf32, #tpu.memory_space<vmem>>, vector<1x2xf32>
    %98 = vector.broadcast %97 : vector<1x2xf32> to vector<2x2xf32>
    %99 = arith.addf %96, %98 : vector<2x2xf32>
    %100 = arith.negf %99 : vector<2x2xf32>
    %101 = math.exp %100 : vector<2x2xf32>
    %cst_55 = arith.constant 1.000000e+00 : f32
    %102 = vector.broadcast %cst_55 : f32 to vector<2x2xf32>
    %103 = arith.addf %102, %101 : vector<2x2xf32>
    %104 = arith.divf %102, %103 : vector<2x2xf32>
    %c0_56 = arith.constant 0 : index
    %c0_57 = arith.constant 0 : index
    %105 = vector.load %arg19[%c0_56, %c0_57] : memref<2x2xf32, #tpu.memory_space<vmem>>, vector<2x2xf32>
    tpu.vector_store %arg19[%c0_56, %c0_57], %104 {strides = array<i32>} : memref<2x2xf32, #tpu.memory_space<vmem>>, vector<2x2xf32>,
    %c0_58 = arith.constant 0 : index
    %c0_59 = arith.constant 0 : index
    %106 = vector.load %arg20[%c0_58, %c0_59] : memref<2x8xf32, #tpu.memory_space<vmem>>, vector<2x8xf32>
    tpu.vector_store %arg20[%c0_58, %c0_59], %81 {strides = array<i32>} : memref<2x8xf32, #tpu.memory_space<vmem>>, vector<2x8xf32>,
    return
  }
}

</mosaic_0001>

<llo_original>
// kernel: music_highlighter_forward.1
$region0: #{music_highlighter_forward.1}
  #allocation0 [shape = 'u32[]', space=smem, size = 0x4, offset = 0x4, fixed_abs, tag = 'smem constant byte address 0x4 - core index']
  #allocation1 [shape = 'u32[144,128]{1,0:T(1,128)}', space=vmem, size = 0x12000, scoped, tag = 'internal scratch']
  #allocation2 [shape = 'f32[1,1]{1,0:T(1,128)S(1)}', space=vmem, size = 0x200, scoped, tag = 'scoped memory for music_highlighter_forward.1']
  %s0 = inlined_call_operand.vmem [shape: f32[16,576], index: 0, kind: input, shape index: {}]
  %s1 = inlined_call_operand.hbm [shape: bf16[576,1024], index: 1, kind: input, shape index: {}]
  %s2 = inlined_call_operand.hbm [shape: f32[1,1024], index: 2, kind: input, shape index: {}]
  %s3 = inlined_call_operand.hbm [shape: bf16[1024,512], index: 3, kind: input, shape index: {}]
  %s4 = inlined_call_operand.hbm [shape: f32[1,512], index: 4, kind: input, shape index: {}]
  %s5 = inlined_call_operand.hbm [shape: bf16[512,512], index: 5, kind: input, shape index: {}]
  %s6 = inlined_call_operand.hbm [shape: f32[1,512], index: 6, kind: input, shape index: {}]
  %s7 = inlined_call_operand.hbm [shape: f32[8,128], index: 7, kind: input, shape index: {}]
  %s8 = inlined_call_operand.vmem [shape: s32[2,1], index: 8, kind: input, shape index: {}]
  %s9 = inlined_call_operand.hbm [shape: bf16[128,128], index: 9, kind: input, shape index: {}]
  %s10 = inlined_call_operand.hbm [shape: f32[1,128], index: 10, kind: input, shape index: {}]
  %s11 = inlined_call_operand.hbm [shape: bf16[128,128], index: 11, kind: input, shape index: {}]
  %s12 = inlined_call_operand.hbm [shape: f32[1,128], index: 12, kind: input, shape index: {}]
  %s13 = inlined_call_operand.hbm [shape: f32[1,128], index: 13, kind: input, shape index: {}]
  %s14 = inlined_call_operand.<no memory space> [shape: f32[1,1], index: 14, kind: input, shape index: {}]
  %s15 = inlined_call_operand.hbm [shape: bf16[128,128], index: 15, kind: input, shape index: {}]
  %s16 = inlined_call_operand.hbm [shape: f32[1,128], index: 16, kind: input, shape index: {}]
  %s17 = inlined_call_operand.vmem [shape: bf16[128,2], index: 17, kind: input, shape index: {}]
  %s18 = inlined_call_operand.hbm [shape: f32[1,2], index: 18, kind: input, shape index: {}]
  %s19 = inlined_call_operand.hbm [shape: f32[2,2], index: 19, kind: output, shape index: {0}]
  %s20 = inlined_call_operand.hbm [shape: f32[2,8], index: 20, kind: output, shape index: {1}]
  %21 = xla_tuple %s19, %s20
  %s22 = sld [smem:[#allocation0]]
  $region154: #{music_highlighter_forward.1} parent=0
    _
  %s24 = ssub.s32 1, %s22
  %s25 = scalar_select 0, %s24, %s22
  %v26 = vstv %s14
  %27 = vst [vmem:[#allocation2] sm:$0x1] %v26
  $region1: #{music_highlighter_forward.1} parent=0
    #allocation3 [shape = 'u8[1179648]{0}', space=vmem, size = 0x120000, scoped, tag = 'input window, operand 1, single buffered']
    #allocation4 [shape = 's32[1]{0}', space=sflag, size = 0x4, scoped, tag = 'scoped memory for music_highlighter_forward.1']
    #allocation5 [shape = 's32[1]{0}', space=sflag, size = 0x4, scoped, tag = 'scoped memory for music_highlighter_forward.1']
    #allocation6 [shape = 'u8[4096]{0}', space=vmem, size = 0x1000, scoped, tag = 'input window, operand 2, single buffered']
    #allocation7 [shape = 's32[1]{0}', space=sflag, size = 0x4, scoped, tag = 'scoped memory for music_highlighter_forward.1']
    #allocation8 [shape = 'u8[1048576]{0}', space=vmem, size = 0x100000, scoped, tag = 'input window, operand 3, single buffered']
    #allocation9 [shape = 'u8[2048]{0}', space=vmem, size = 0x800, scoped, tag = 'input window, operand 4, single buffered']
    #allocation10 [shape = 's32[1]{0}', space=sflag, size = 0x4, scoped, tag = 'scoped memory for music_highlighter_forward.1']
    #allocation11 [shape = 'u8[524288]{0}', space=vmem, size = 0x80000, scoped, tag = 'input window, operand 5, single buffered']
    #allocation12 [shape = 'u8[2048]{0}', space=vmem, size = 0x800, scoped, tag = 'input window, operand 6, single buffered']
    #allocation13 [shape = 's32[1]{0}', space=sflag, size = 0x4, scoped, tag = 'scoped memory for music_highlighter_forward.1']
    #allocation14 [shape = 'u8[4096]{0}', space=vmem, size = 0x1000, scoped, tag = 'input window, operand 7, single buffered']
    #allocation15 [shape = 'u8[32768]{0}', space=vmem, size = 0x8000, scoped, tag = 'input window, operand 9, single buffered']
    #allocation16 [shape = 's32[1]{0}', space=sflag, size = 0x4, scoped, tag = 'scoped memory for music_highlighter_forward.1']
    #allocation17 [shape = 'u8[512]{0}', space=vmem, size = 0x400, scoped, tag = 'input window, operand 10, single buffered']
    #allocation18 [shape = 'u8[32768]{0}', space=vmem, size = 0x8000, scoped, tag = 'input window, operand 11, single buffered']
    #allocation19 [shape = 's32[1]{0}', space=sflag, size = 0x4, scoped, tag = 'scoped memory for music_highlighter_forward.1']
    #allocation20 [shape = 'u8[512]{0}', space=vmem, size = 0x400, scoped, tag = 'input window, operand 12, single buffered']
    #allocation21 [shape = 'u8[512]{0}', space=vmem, size = 0x400, scoped, tag = 'input window, operand 13, single buffered']
    #allocation22 [shape = 's32[1]{0}', space=sflag, size = 0x4, scoped, tag = 'scoped memory for music_highlighter_forward.1']
    #allocation23 [shape = 'u8[32768]{0}', space=vmem, size = 0x8000, scoped, tag = 'input window, operand 15, single buffered']
    #allocation24 [shape = 'u8[512]{0}', space=vmem, size = 0x400, scoped, tag = 'input window, operand 16, single buffered']
    #allocation25 [shape = 's32[1]{0}', space=sflag, size = 0x4, scoped, tag = 'scoped memory for music_highlighter_forward.1']
    #allocation26 [shape = 'u8[512]{0}', space=vmem, size = 0x400, scoped, tag = 'input window, operand 18, single buffered']
    #allocation27 [shape = 'u8[1024]{0}', space=vmem, size = 0x400, scoped, tag = 'output window, operand 0, single buffered']
    #allocation28 [shape = 'u8[1024]{0}', space=vmem, size = 0x400, scoped, tag = 'output window, operand 1, single buffered']
    #allocation29 [shape = 's32[1]{0}', space=sflag, size = 0x4, scoped, tag = 'scoped memory for music_highlighter_forward.1']
    %28 = vsyncpa [#allocation4], 0
    %29 = vsyncpa [#allocation7], 0
    %30 = vsyncpa [#allocation10], 0
    %31 = vsyncpa [#allocation13], 0
    %32 = vsyncpa [#allocation16], 0
    %33 = vsyncpa [#allocation19], 0
    %34 = vsyncpa [#allocation22], 0
    %35 = vsyncpa [#allocation25], 0
    %36 = vsyncpa [#allocation5], 0
    %37 = vsyncpa [#allocation29], 0
    // Predicated region
    $region2: #{music_highlighter_forward.1} parent=1 // pred_check
      _
    $region3: #{music_highlighter_forward.1} parent=1 // pred_check_branch
      %39 = sbr.rel (0) target = $region5
    $region4: #{music_highlighter_forward.1} parent=1 // pred_region
      _
    $region5: #{music_highlighter_forward.1} parent=1 // pred_fallthru
      _
    // Predicated region
    $region6: #{music_highlighter_forward.1} parent=1 // pred_check
      _
    $region7: #{music_highlighter_forward.1} parent=1 // pred_check_branch
      %41 = sbr.rel (0) target = $region9
    $region8: #{music_highlighter_forward.1} parent=1 // pred_region
      %s43 = ssub.s32 36864, 36864
      %44 = vsyncadd [#allocation4], %s43
      %s45 = sshll.u32 [#allocation3], 4
      %s46 = int_to_ptr.vmem [resolvable:$true] %s45
      %51 = dma.hbm_to_vmem [thread:$0]  %s1, 36864, %s46, [#allocation4], 512, 512, 32
    $region9: #{music_highlighter_forward.1} parent=1 // pred_fallthru
      _
    // Predicated region
    $region10: #{music_highlighter_forward.1} parent=1 // pred_check
      _
    $region11: #{music_highlighter_forward.1} parent=1 // pred_check_branch
      %53 = sbr.rel (0) target = $region13
    $region12: #{music_highlighter_forward.1} parent=1 // pred_region
      %s55 = ssub.s32 128, 128
      %56 = vsyncadd [#allocation7], %s55
      %s58 = sshll.u32 [#allocation6], 4
      %s59 = int_to_ptr.vmem [resolvable:$true] %s58
      %61 = dma.hbm_to_vmem [thread:$0]  %s2, 128, %s59, [#allocation7]
    $region13: #{music_highlighter_forward.1} parent=1 // pred_fallthru
      _
    // Predicated region
    $region14: #{music_highlighter_forward.1} parent=1 // pred_check
      _
    $region15: #{music_highlighter_forward.1} parent=1 // pred_check_branch
      %63 = sbr.rel (0) target = $region17
    $region16: #{music_highlighter_forward.1} parent=1 // pred_region
      %s65 = ssub.s32 32768, 32768
      %66 = vsyncadd [#allocation7], %s65
      %s67 = sshll.u32 [#allocation8], 4
      %s68 = int_to_ptr.vmem [resolvable:$true] %s67
      %73 = dma.hbm_to_vmem [thread:$0]  %s3, 32768, %s68, [#allocation7], 256, 256, 16
    $region17: #{music_highlighter_forward.1} parent=1 // pred_fallthru
      _
    // Predicated region
    $region18: #{music_highlighter_forward.1} parent=1 // pred_check
      _
    $region19: #{music_highlighter_forward.1} parent=1 // pred_check_branch
      %75 = sbr.rel (0) target = $region21
    $region20: #{music_highlighter_forward.1} parent=1 // pred_region
      %s77 = ssub.s32 64, 64
      %78 = vsyncadd [#allocation10], %s77
      %s80 = sshll.u32 [#allocation9], 4
      %s81 = int_to_ptr.vmem [resolvable:$true] %s80
      %83 = dma.hbm_to_vmem [thread:$0]  %s4, 64, %s81, [#allocation10]
    $region21: #{music_highlighter_forward.1} parent=1 // pred_fallthru
      _
    // Predicated region
    $region22: #{music_highlighter_forward.1} parent=1 // pred_check
      _
    $region23: #{music_highlighter_forward.1} parent=1 // pred_check_branch
      %85 = sbr.rel (0) target = $region25
    $region24: #{music_highlighter_forward.1} parent=1 // pred_region
      %s87 = ssub.s32 16384, 16384
      %88 = vsyncadd [#allocation10], %s87
      %s89 = sshll.u32 [#allocation11], 4
      %s90 = int_to_ptr.vmem [resolvable:$true] %s89
      %95 = dma.hbm_to_vmem [thread:$0]  %s5, 16384, %s90, [#allocation10], 256, 256, 16
    $region25: #{music_highlighter_forward.1} parent=1 // pred_fallthru
      _
    // Predicated region
    $region26: #{music_highlighter_forward.1} parent=1 // pred_check
      _
    $region27: #{music_highlighter_forward.1} parent=1 // pred_check_branch
      %97 = sbr.rel (0) target = $region29
    $region28: #{music_highlighter_forward.1} parent=1 // pred_region
      %s99 = ssub.s32 64, 64
      %100 = vsyncadd [#allocation13], %s99
      %s102 = sshll.u32 [#allocation12], 4
      %s103 = int_to_ptr.vmem [resolvable:$true] %s102
      %105 = dma.hbm_to_vmem [thread:$0]  %s6, 64, %s103, [#allocation13]
    $region29: #{music_highlighter_forward.1} parent=1 // pred_fallthru
      _
    // Predicated region
    $region30: #{music_highlighter_forward.1} parent=1 // pred_check
      _
    $region31: #{music_highlighter_forward.1} parent=1 // pred_check_branch
      %107 = sbr.rel (0) target = $region33
    $region32: #{music_highlighter_forward.1} parent=1 // pred_region
      %s109 = ssub.s32 128, 128
      %110 = vsyncadd [#allocation13], %s109
      %s112 = sshll.u32 [#allocation14], 4
      %s113 = int_to_ptr.vmem [resolvable:$true] %s112
      %115 = dma.hbm_to_vmem [thread:$0]  %s7, 128, %s113, [#allocation13]
    $region33: #{music_highlighter_forward.1} parent=1 // pred_fallthru
      _
    // Predicated region
    $region34: #{music_highlighter_forward.1} parent=1 // pred_check
      _
    $region35: #{music_highlighter_forward.1} parent=1 // pred_check_branch
      %117 = sbr.rel (0) target = $region37
    $region36: #{music_highlighter_forward.1} parent=1 // pred_region
      _
    $region37: #{music_highlighter_forward.1} parent=1 // pred_fallthru
      _
    // Predicated region
    $region38: #{music_highlighter_forward.1} parent=1 // pred_check
      _
    $region39: #{music_highlighter_forward.1} parent=1 // pred_check_branch
      %119 = sbr.rel (0) target = $region41
    $region40: #{music_highlighter_forward.1} parent=1 // pred_region
      %s121 = ssub.s32 1024, 1024
      %122 = vsyncadd [#allocation16], %s121
      %s123 = sshll.u32 [#allocation15], 4
      %s124 = int_to_ptr.vmem [resolvable:$true] %s123
      %129 = dma.hbm_to_vmem [thread:$0]  %s9, 1024, %s124, [#allocation16], 64, 64, 4
    $region41: #{music_highlighter_forward.1} parent=1 // pred_fallthru
      _
    // Predicated region
    $region42: #{music_highlighter_forward.1} parent=1 // pred_check
      _
    $region43: #{music_highlighter_forward.1} parent=1 // pred_check_branch
      %131 = sbr.rel (0) target = $region45
    $region44: #{music_highlighter_forward.1} parent=1 // pred_region
      %s133 = ssub.s32 16, 16
      %134 = vsyncadd [#allocation16], %s133
      %s136 = sshll.u32 [#allocation17], 4
      %s137 = int_to_ptr.vmem [resolvable:$true] %s136
      %139 = dma.hbm_to_vmem [thread:$0]  %s10, 16, %s137, [#allocation16]
    $region45: #{music_highlighter_forward.1} parent=1 // pred_fallthru
      _
    // Predicated region
    $region46: #{music_highlighter_forward.1} parent=1 // pred_check
      _
    $region47: #{music_highlighter_forward.1} parent=1 // pred_check_branch
      %141 = sbr.rel (0) target = $region49
    $region48: #{music_highlighter_forward.1} parent=1 // pred_region
      %s143 = ssub.s32 1024, 1024
      %144 = vsyncadd [#allocation19], %s143
      %s145 = sshll.u32 [#allocation18], 4
      %s146 = int_to_ptr.vmem [resolvable:$true] %s145
      %151 = dma.hbm_to_vmem [thread:$0]  %s11, 1024, %s146, [#allocation19], 64, 64, 4
    $region49: #{music_highlighter_forward.1} parent=1 // pred_fallthru
      _
    // Predicated region
    $region50: #{music_highlighter_forward.1} parent=1 // pred_check
      _
    $region51: #{music_highlighter_forward.1} parent=1 // pred_check_branch
      %153 = sbr.rel (0) target = $region53
    $region52: #{music_highlighter_forward.1} parent=1 // pred_region
      %s155 = ssub.s32 16, 16
      %156 = vsyncadd [#allocation19], %s155
      %s158 = sshll.u32 [#allocation20], 4
      %s159 = int_to_ptr.vmem [resolvable:$true] %s158
      %161 = dma.hbm_to_vmem [thread:$0]  %s12, 16, %s159, [#allocation19]
    $region53: #{music_highlighter_forward.1} parent=1 // pred_fallthru
      _
    // Predicated region
    $region54: #{music_highlighter_forward.1} parent=1 // pred_check
      _
    $region55: #{music_highlighter_forward.1} parent=1 // pred_check_branch
      %163 = sbr.rel (0) target = $region57
    $region56: #{music_highlighter_forward.1} parent=1 // pred_region
      %s165 = ssub.s32 16, 16
      %166 = vsyncadd [#allocation22], %s165
      %s168 = sshll.u32 [#allocation21], 4
      %s169 = int_to_ptr.vmem [resolvable:$true] %s168
      %171 = dma.hbm_to_vmem [thread:$0]  %s13, 16, %s169, [#allocation22]
    $region57: #{music_highlighter_forward.1} parent=1 // pred_fallthru
      _
    // Predicated region
    $region58: #{music_highlighter_forward.1} parent=1 // pred_check
      _
    $region59: #{music_highlighter_forward.1} parent=1 // pred_check_branch
      %173 = sbr.rel (0) target = $region61
    $region60: #{music_highlighter_forward.1} parent=1 // pred_region
      _
    $region61: #{music_highlighter_forward.1} parent=1 // pred_fallthru
      _
    // Predicated region
    $region62: #{music_highlighter_forward.1} parent=1 // pred_check
      _
    $region63: #{music_highlighter_forward.1} parent=1 // pred_check_branch
      %175 = sbr.rel (0) target = $region65
    $region64: #{music_highlighter_forward.1} parent=1 // pred_region
      %s177 = ssub.s32 1024, 1024
      %178 = vsyncadd [#allocation22], %s177
      %s179 = sshll.u32 [#allocation23], 4
      %s180 = int_to_ptr.vmem [resolvable:$true] %s179
      %185 = dma.hbm_to_vmem [thread:$0]  %s15, 1024, %s180, [#allocation22], 64, 64, 4
    $region65: #{music_highlighter_forward.1} parent=1 // pred_fallthru
      _
    // Predicated region
    $region66: #{music_highlighter_forward.1} parent=1 // pred_check
      _
    $region67: #{music_highlighter_forward.1} parent=1 // pred_check_branch
      %187 = sbr.rel (0) target = $region69
    $region68: #{music_highlighter_forward.1} parent=1 // pred_region
      %s189 = ssub.s32 16, 16
      %190 = vsyncadd [#allocation25], %s189
      %s192 = sshll.u32 [#allocation24], 4
      %s193 = int_to_ptr.vmem [resolvable:$true] %s192
      %195 = dma.hbm_to_vmem [thread:$0]  %s16, 16, %s193, [#allocation25]
    $region69: #{music_highlighter_forward.1} parent=1 // pred_fallthru
      _
    // Predicated region
    $region70: #{music_highlighter_forward.1} parent=1 // pred_check
      _
    $region71: #{music_highlighter_forward.1} parent=1 // pred_check_branch
      %197 = sbr.rel (0) target = $region73
    $region72: #{music_highlighter_forward.1} parent=1 // pred_region
      _
    $region73: #{music_highlighter_forward.1} parent=1 // pred_fallthru
      _
    // Predicated region
    $region74: #{music_highlighter_forward.1} parent=1 // pred_check
      _
    $region75: #{music_highlighter_forward.1} parent=1 // pred_check_branch
      %199 = sbr.rel (0) target = $region77
    $region76: #{music_highlighter_forward.1} parent=1 // pred_region
      %s201 = ssub.s32 16, 16
      %202 = vsyncadd [#allocation25], %s201
      %s204 = sshll.u32 [#allocation26], 4
      %s205 = int_to_ptr.vmem [resolvable:$true] %s204
      %207 = dma.hbm_to_vmem [thread:$0]  %s18, 16, %s205, [#allocation25]
    $region77: #{music_highlighter_forward.1} parent=1 // pred_fallthru
      _
    // Predicated region
    $region78: #{music_highlighter_forward.1} parent=1 // pred_check
      _
    $region79: #{music_highlighter_forward.1} parent=1 // pred_check_branch
      %209 = sbr.rel (0) target = $region81
    $region80: #{music_highlighter_forward.1} parent=1 // pred_region
      %210 = dma.done [#allocation4], 36864
    $region81: #{music_highlighter_forward.1} parent=1 // pred_fallthru
      _
    // Predicated region
    $region82: #{music_highlighter_forward.1} parent=1 // pred_check
      _
    $region83: #{music_highlighter_forward.1} parent=1 // pred_check_branch
      %212 = sbr.rel (0) target = $region85
    $region84: #{music_highlighter_forward.1} parent=1 // pred_region
      %213 = dma.done [#allocation7], 128
    $region85: #{music_highlighter_forward.1} parent=1 // pred_fallthru
      _
    // Predicated region
    $region86: #{music_highlighter_forward.1} parent=1 // pred_check
      _
    $region87: #{music_highlighter_forward.1} parent=1 // pred_check_branch
      %215 = sbr.rel (0) target = $region89
    $region88: #{music_highlighter_forward.1} parent=1 // pred_region
      %216 = dma.done [#allocation7], 32768
    $region89: #{music_highlighter_forward.1} parent=1 // pred_fallthru
      _
    // Predicated region
    $region90: #{music_highlighter_forward.1} parent=1 // pred_check
      _
    $region91: #{music_highlighter_forward.1} parent=1 // pred_check_branch
      %218 = sbr.rel (0) target = $region93
    $region92: #{music_highlighter_forward.1} parent=1 // pred_region
      %219 = dma.done [#allocation10], 64
    $region93: #{music_highlighter_forward.1} parent=1 // pred_fallthru
      _
    // Predicated region
    $region94: #{music_highlighter_forward.1} parent=1 // pred_check
      _
    $region95: #{music_highlighter_forward.1} parent=1 // pred_check_branch
      %221 = sbr.rel (0) target = $region97
    $region96: #{music_highlighter_forward.1} parent=1 // pred_region
      %222 = dma.done [#allocation10], 16384
    $region97: #{music_highlighter_forward.1} parent=1 // pred_fallthru
      _
    // Predicated region
    $region98: #{music_highlighter_forward.1} parent=1 // pred_check
      _
    $region99: #{music_highlighter_forward.1} parent=1 // pred_check_branch
      %224 = sbr.rel (0) target = $region101
    $region100: #{music_highlighter_forward.1} parent=1 // pred_region
      %225 = dma.done [#allocation13], 64
    $region101: #{music_highlighter_forward.1} parent=1 // pred_fallthru
      _
    // Predicated region
    $region102: #{music_highlighter_forward.1} parent=1 // pred_check
      _
    $region103: #{music_highlighter_forward.1} parent=1 // pred_check_branch
      %227 = sbr.rel (0) target = $region105
    $region104: #{music_highlighter_forward.1} parent=1 // pred_region
      %228 = dma.done [#allocation13], 128
    $region105: #{music_highlighter_forward.1} parent=1 // pred_fallthru
      _
    // Predicated region
    $region106: #{music_highlighter_forward.1} parent=1 // pred_check
      _
    $region107: #{music_highlighter_forward.1} parent=1 // pred_check_branch
      %230 = sbr.rel (0) target = $region109
    $region108: #{music_highlighter_forward.1} parent=1 // pred_region
      %231 = dma.done [#allocation16], 1024
    $region109: #{music_highlighter_forward.1} parent=1 // pred_fallthru
      _
    // Predicated region
    $region110: #{music_highlighter_forward.1} parent=1 // pred_check
      _
    $region111: #{music_highlighter_forward.1} parent=1 // pred_check_branch
      %233 = sbr.rel (0) target = $region113
    $region112: #{music_highlighter_forward.1} parent=1 // pred_region
      %234 = dma.done [#allocation16], 16
    $region113: #{music_highlighter_forward.1} parent=1 // pred_fallthru
      _
    // Predicated region
    $region114: #{music_highlighter_forward.1} parent=1 // pred_check
      _
    $region115: #{music_highlighter_forward.1} parent=1 // pred_check_branch
      %236 = sbr.rel (0) target = $region117
    $region116: #{music_highlighter_forward.1} parent=1 // pred_region
      %237 = dma.done [#allocation19], 1024
    $region117: #{music_highlighter_forward.1} parent=1 // pred_fallthru
      _
    // Predicated region
    $region118: #{music_highlighter_forward.1} parent=1 // pred_check
      _
    $region119: #{music_highlighter_forward.1} parent=1 // pred_check_branch
      %239 = sbr.rel (0) target = $region121
    $region120: #{music_highlighter_forward.1} parent=1 // pred_region
      %240 = dma.done [#allocation19], 16
    $region121: #{music_highlighter_forward.1} parent=1 // pred_fallthru
      _
    // Predicated region
    $region122: #{music_highlighter_forward.1} parent=1 // pred_check
      _
    $region123: #{music_highlighter_forward.1} parent=1 // pred_check_branch
      %242 = sbr.rel (0) target = $region125
    $region124: #{music_highlighter_forward.1} parent=1 // pred_region
      %243 = dma.done [#allocation22], 16
    $region125: #{music_highlighter_forward.1} parent=1 // pred_fallthru
      _
    // Predicated region
    $region126: #{music_highlighter_forward.1} parent=1 // pred_check
      _
    $region127: #{music_highlighter_forward.1} parent=1 // pred_check_branch
      %245 = sbr.rel (0) target = $region129
    $region128: #{music_highlighter_forward.1} parent=1 // pred_region
      %246 = dma.done [#allocation22], 1024
    $region129: #{music_highlighter_forward.1} parent=1 // pred_fallthru
      _
    // Predicated region
    $region130: #{music_highlighter_forward.1} parent=1 // pred_check
      _
    $region131: #{music_highlighter_forward.1} parent=1 // pred_check_branch
      %248 = sbr.rel (0) target = $region133
    $region132: #{music_highlighter_forward.1} parent=1 // pred_region
      %249 = dma.done [#allocation25], 16
    $region133: #{music_highlighter_forward.1} parent=1 // pred_fallthru
      _
    // Predicated region
    $region134: #{music_highlighter_forward.1} parent=1 // pred_check
      _
    $region135: #{music_highlighter_forward.1} parent=1 // pred_check_branch
      %251 = sbr.rel (0) target = $region137
    $region136: #{music_highlighter_forward.1} parent=1 // pred_region
      %252 = dma.done [#allocation25], 16
    $region137: #{music_highlighter_forward.1} parent=1 // pred_fallthru
      _
    %v254 = vld [vmem:[%s0] sm:$0xff]
    %v255 = vld [vmem:[%s0 + $0x8] sm:$0xff]
    %v256 = vld [vmem:[%s0 + $0x10] sm:$0xff]
    %v257 = vld [vmem:[%s0 + $0x18] sm:$0xff]
    %v258 = vld [vmem:[%s0 + $0x20] sm:$0xff]
    %v259 = vld [vmem:[%s0 + $0x28] sm:$0xff]
    %v260 = vld [vmem:[%s0 + $0x30] sm:$0xff]
    %v261 = vld [vmem:[%s0 + $0x38] sm:$0xff]
    %v262 = vld [vmem:[%s0 + $0x40] sm:$0xff]
    %v263 = vld [vmem:[%s0 + $0x48] sm:$0xff]
    %v264 = vpack.c.bf16 %v259, %v254
    %v265 = vpack.c.bf16 %v260, %v255
    %v266 = vpack.c.bf16 %v261, %v256
    %v267 = vpack.c.bf16 %v262, %v257
    %v268 = vpack.c.bf16 %v263, %v258
    %v269 = vld [vmem:[#allocation3] sm:$0xff]
    %v270 = vld [vmem:[#allocation3 + $0x8] sm:$0xff]
    %v271 = vld [vmem:[#allocation3 + $0x10] sm:$0xff]
    %v272 = vld [vmem:[#allocation3 + $0x18] sm:$0xff]
    %v273 = vld [vmem:[#allocation3 + $0x20] sm:$0xff]
    %v274 = vld [vmem:[#allocation3 + $0x28] sm:$0xff]
    %v275 = vld [vmem:[#allocation3 + $0x30] sm:$0xff]
    %v276 = vld [vmem:[#allocation3 + $0x38] sm:$0xff]
    %v277 = vld [vmem:[#allocation3 + $0x40] sm:$0xff]
    %v278 = vld [vmem:[#allocation3 + $0x48] sm:$0xff]
    %v279 = vld [vmem:[#allocation3 + $0x50] sm:$0xff]
    %v280 = vld [vmem:[#allocation3 + $0x58] sm:$0xff]
    %v281 = vld [vmem:[#allocation3 + $0x60] sm:$0xff]
    %v282 = vld [vmem:[#allocation3 + $0x68] sm:$0xff]
    %v283 = vld [vmem:[#allocation3 + $0x70] sm:$0xff]
    %v284 = vld [vmem:[#allocation3 + $0x78] sm:$0xff]
    %v285 = vld [vmem:[#allocation3 + $0x80] sm:$0xff]
    %v286 = vld [vmem:[#allocation3 + $0x88] sm:$0xff]
    %v287 = vld [vmem:[#allocation3 + $0x90] sm:$0xff]
    %v288 = vld [vmem:[#allocation3 + $0x98] sm:$0xff]
    %v289 = vld [vmem:[#allocation3 + $0xa0] sm:$0xff]
    %v290 = vld [vmem:[#allocation3 + $0xa8] sm:$0xff]
    %v291 = vld [vmem:[#allocation3 + $0xb0] sm:$0xff]
    %v292 = vld [vmem:[#allocation3 + $0xb8] sm:$0xff]
    %v293 = vld [vmem:[#allocation3 + $0xc0] sm:$0xff]
    %v294 = vld [vmem:[#allocation3 + $0xc8] sm:$0xff]
    %v295 = vld [vmem:[#allocation3 + $0xd0] sm:$0xff]
    %v296 = vld [vmem:[#allocation3 + $0xd8] sm:$0xff]
    %v297 = vld [vmem:[#allocation3 + $0xe0] sm:$0xff]
    %v298 = vld [vmem:[#allocation3 + $0xe8] sm:$0xff]
    %v299 = vld [vmem:[#allocation3 + $0xf0] sm:$0xff]
    %v300 = vld [vmem:[#allocation3 + $0xf8] sm:$0xff]
    %v301 = vld [vmem:[#allocation3 + $0x100] sm:$0xff]
    %v302 = vld [vmem:[#allocation3 + $0x108] sm:$0xff]
    %v303 = vld [vmem:[#allocation3 + $0x110] sm:$0xff]
    %v304 = vld [vmem:[#allocation3 + $0x118] sm:$0xff]
    %v305 = vld [vmem:[#allocation3 + $0x120] sm:$0xff]
    %v306 = vld [vmem:[#allocation3 + $0x128] sm:$0xff]
    %v307 = vld [vmem:[#allocation3 + $0x130] sm:$0xff]
    %v308 = vld [vmem:[#allocation3 + $0x138] sm:$0xff]
    %v309 = vld [vmem:[#allocation3 + $0x140] sm:$0xff]
    %v310 = vld [vmem:[#allocation3 + $0x148] sm:$0xff]
    %v311 = vld [vmem:[#allocation3 + $0x150] sm:$0xff]
    %v312 = vld [vmem:[#allocation3 + $0x158] sm:$0xff]
    %v313 = vld [vmem:[#allocation3 + $0x160] sm:$0xff]
    %v314 = vld [vmem:[#allocation3 + $0x168] sm:$0xff]
    %v315 = vld [vmem:[#allocation3 + $0x170] sm:$0xff]
    %v316 = vld [vmem:[#allocation3 + $0x178] sm:$0xff]
    %v317 = vld [vmem:[#allocation3 + $0x180] sm:$0xff]
    %v318 = vld [vmem:[#allocation3 + $0x188] sm:$0xff]
    %v319 = vld [vmem:[#allocation3 + $0x190] sm:$0xff]
    %v320 = vld [vmem:[#allocation3 + $0x198] sm:$0xff]
    %v321 = vld [vmem:[#allocation3 + $0x1a0] sm:$0xff]
    %v322 = vld [vmem:[#allocation3 + $0x1a8] sm:$0xff]
    %v323 = vld [vmem:[#allocation3 + $0x1b0] sm:$0xff]
    %v324 = vld [vmem:[#allocation3 + $0x1b8] sm:$0xff]
    %v325 = vld [vmem:[#allocation3 + $0x1c0] sm:$0xff]
    %v326 = vld [vmem:[#allocation3 + $0x1c8] sm:$0xff]
    %v327 = vld [vmem:[#allocation3 + $0x1d0] sm:$0xff]
    %v328 = vld [vmem:[#allocation3 + $0x1d8] sm:$0xff]
    %v329 = vld [vmem:[#allocation3 + $0x1e0] sm:$0xff]
    %v330 = vld [vmem:[#allocation3 + $0x1e8] sm:$0xff]
    %v331 = vld [vmem:[#allocation3 + $0x1f0] sm:$0xff]
    %v332 = vld [vmem:[#allocation3 + $0x1f8] sm:$0xff]
    %v333 = vld [vmem:[#allocation3 + $0x200] sm:$0xff]
    %v334 = vld [vmem:[#allocation3 + $0x208] sm:$0xff]
    %v335 = vld [vmem:[#allocation3 + $0x210] sm:$0xff]
    %v336 = vld [vmem:[#allocation3 + $0x218] sm:$0xff]
    %v337 = vld [vmem:[#allocation3 + $0x220] sm:$0xff]
    %v338 = vld [vmem:[#allocation3 + $0x228] sm:$0xff]
    %v339 = vld [vmem:[#allocation3 + $0x230] sm:$0xff]
    %v340 = vld [vmem:[#allocation3 + $0x238] sm:$0xff]
    %v341 = vld [vmem:[#allocation3 + $0x240] sm:$0xff]
    %v342 = vld [vmem:[#allocation3 + $0x248] sm:$0xff]
    %v343 = vld [vmem:[#allocation3 + $0x250] sm:$0xff]
    %v344 = vld [vmem:[#allocation3 + $0x258] sm:$0xff]
    %v345 = vld [vmem:[#allocation3 + $0x260] sm:$0xff]
    %v346 = vld [vmem:[#allocation3 + $0x268] sm:$0xff]
    %v347 = vld [vmem:[#allocation3 + $0x270] sm:$0xff]
    %v348 = vld [vmem:[#allocation3 + $0x278] sm:$0xff]
    %v349 = vld [vmem:[#allocation3 + $0x280] sm:$0xff]
    %v350 = vld [vmem:[#allocation3 + $0x288] sm:$0xff]
    %v351 = vld [vmem:[#allocation3 + $0x290] sm:$0xff]
    %v352 = vld [vmem:[#allocation3 + $0x298] sm:$0xff]
    %v353 = vld [vmem:[#allocation3 + $0x2a0] sm:$0xff]
    %v354 = vld [vmem:[#allocation3 + $0x2a8] sm:$0xff]
    %v355 = vld [vmem:[#allocation3 + $0x2b0] sm:$0xff]
    %v356 = vld [vmem:[#allocation3 + $0x2b8] sm:$0xff]
    %v357 = vld [vmem:[#allocation3 + $0x2c0] sm:$0xff]
    %v358 = vld [vmem:[#allocation3 + $0x2c8] sm:$0xff]
    %v359 = vld [vmem:[#allocation3 + $0x2d0] sm:$0xff]
    %v360 = vld [vmem:[#allocation3 + $0x2d8] sm:$0xff]
    %v361 = vld [vmem:[#allocation3 + $0x2e0] sm:$0xff]
    %v362 = vld [vmem:[#allocation3 + $0x2e8] sm:$0xff]
    %v363 = vld [vmem:[#allocation3 + $0x2f0] sm:$0xff]
    %v364 = vld [vmem:[#allocation3 + $0x2f8] sm:$0xff]
    %v365 = vld [vmem:[#allocation3 + $0x300] sm:$0xff]
    %v366 = vld [vmem:[#allocation3 + $0x308] sm:$0xff]
    %v367 = vld [vmem:[#allocation3 + $0x310] sm:$0xff]
    %v368 = vld [vmem:[#allocation3 + $0x318] sm:$0xff]
    %v369 = vld [vmem:[#allocation3 + $0x320] sm:$0xff]
    %v370 = vld [vmem:[#allocation3 + $0x328] sm:$0xff]
    %v371 = vld [vmem:[#allocation3 + $0x330] sm:$0xff]
    %v372 = vld [vmem:[#allocation3 + $0x338] sm:$0xff]
    %v373 = vld [vmem:[#allocation3 + $0x340] sm:$0xff]
    %v374 = vld [vmem:[#allocation3 + $0x348] sm:$0xff]
    %v375 = vld [vmem:[#allocation3 + $0x350] sm:$0xff]
    %v376 = vld [vmem:[#allocation3 + $0x358] sm:$0xff]
    %v377 = vld [vmem:[#allocation3 + $0x360] sm:$0xff]
    %v378 = vld [vmem:[#allocation3 + $0x368] sm:$0xff]
    %v379 = vld [vmem:[#allocation3 + $0x370] sm:$0xff]
    %v380 = vld [vmem:[#allocation3 + $0x378] sm:$0xff]
    %v381 = vld [vmem:[#allocation3 + $0x380] sm:$0xff]
    %v382 = vld [vmem:[#allocation3 + $0x388] sm:$0xff]
    %v383 = vld [vmem:[#allocation3 + $0x390] sm:$0xff]
    %v384 = vld [vmem:[#allocation3 + $0x398] sm:$0xff]
    %v385 = vld [vmem:[#allocation3 + $0x3a0] sm:$0xff]
    %v386 = vld [vmem:[#allocation3 + $0x3a8] sm:$0xff]
    %v387 = vld [vmem:[#allocation3 + $0x3b0] sm:$0xff]
    %v388 = vld [vmem:[#allocation3 + $0x3b8] sm:$0xff]
    %v389 = vld [vmem:[#allocation3 + $0x3c0] sm:$0xff]
    %v390 = vld [vmem:[#allocation3 + $0x3c8] sm:$0xff]
    %v391 = vld [vmem:[#allocation3 + $0x3d0] sm:$0xff]
    %v392 = vld [vmem:[#allocation3 + $0x3d8] sm:$0xff]
    %v393 = vld [vmem:[#allocation3 + $0x3e0] sm:$0xff]
    %v394 = vld [vmem:[#allocation3 + $0x3e8] sm:$0xff]
    %v395 = vld [vmem:[#allocation3 + $0x3f0] sm:$0xff]
    %v396 = vld [vmem:[#allocation3 + $0x3f8] sm:$0xff]
    %v397 = vld [vmem:[#allocation3 + $0x400] sm:$0xff]
    %v398 = vld [vmem:[#allocation3 + $0x408] sm:$0xff]
    %v399 = vld [vmem:[#allocation3 + $0x410] sm:$0xff]
    %v400 = vld [vmem:[#allocation3 + $0x418] sm:$0xff]
    %v401 = vld [vmem:[#allocation3 + $0x420] sm:$0xff]
    %v402 = vld [vmem:[#allocation3 + $0x428] sm:$0xff]
    %v403 = vld [vmem:[#allocation3 + $0x430] sm:$0xff]
    %v404 = vld [vmem:[#allocation3 + $0x438] sm:$0xff]
    %v405 = vld [vmem:[#allocation3 + $0x440] sm:$0xff]
    %v406 = vld [vmem:[#allocation3 + $0x448] sm:$0xff]
    %v407 = vld [vmem:[#allocation3 + $0x450] sm:$0xff]
    %v408 = vld [vmem:[#allocation3 + $0x458] sm:$0xff]
    %v409 = vld [vmem:[#allocation3 + $0x460] sm:$0xff]
    %v410 = vld [vmem:[#allocation3 + $0x468] sm:$0xff]
    %v411 = vld [vmem:[#allocation3 + $0x470] sm:$0xff]
    %v412 = vld [vmem:[#allocation3 + $0x478] sm:$0xff]
    %v413 = vld [vmem:[#allocation3 + $0x480] sm:$0xff]
    %v414 = vld [vmem:[#allocation3 + $0x488] sm:$0xff]
    %v415 = vld [vmem:[#allocation3 + $0x490] sm:$0xff]
    %v416 = vld [vmem:[#allocation3 + $0x498] sm:$0xff]
    %v417 = vld [vmem:[#allocation3 + $0x4a0] sm:$0xff]
    %v418 = vld [vmem:[#allocation3 + $0x4a8] sm:$0xff]
    %v419 = vld [vmem:[#allocation3 + $0x4b0] sm:$0xff]
    %v420 = vld [vmem:[#allocation3 + $0x4b8] sm:$0xff]
    %v421 = vld [vmem:[#allocation3 + $0x4c0] sm:$0xff]
    %v422 = vld [vmem:[#allocation3 + $0x4c8] sm:$0xff]
    %v423 = vld [vmem:[#allocation3 + $0x4d0] sm:$0xff]
    %v424 = vld [vmem:[#allocation3 + $0x4d8] sm:$0xff]
    %v425 = vld [vmem:[#allocation3 + $0x4e0] sm:$0xff]
    %v426 = vld [vmem:[#allocation3 + $0x4e8] sm:$0xff]
    %v427 = vld [vmem:[#allocation3 + $0x4f0] sm:$0xff]
    %v428 = vld [vmem:[#allocation3 + $0x4f8] sm:$0xff]
    %v429 = vld [vmem:[#allocation3 + $0x500] sm:$0xff]
    %v430 = vld [vmem:[#allocation3 + $0x508] sm:$0xff]
    %v431 = vld [vmem:[#allocation3 + $0x510] sm:$0xff]
    %v432 = vld [vmem:[#allocation3 + $0x518] sm:$0xff]
    %v433 = vld [vmem:[#allocation3 + $0x520] sm:$0xff]
    %v434 = vld [vmem:[#allocation3 + $0x528] sm:$0xff]
    %v435 = vld [vmem:[#allocation3 + $0x530] sm:$0xff]
    %v436 = vld [vmem:[#allocation3 + $0x538] sm:$0xff]
    %v437 = vld [vmem:[#allocation3 + $0x540] sm:$0xff]
    %v438 = vld [vmem:[#allocation3 + $0x548] sm:$0xff]
    %v439 = vld [vmem:[#allocation3 + $0x550] sm:$0xff]
    %v440 = vld [vmem:[#allocation3 + $0x558] sm:$0xff]
    %v441 = vld [vmem:[#allocation3 + $0x560] sm:$0xff]
    %v442 = vld [vmem:[#allocation3 + $0x568] sm:$0xff]
    %v443 = vld [vmem:[#allocation3 + $0x570] sm:$0xff]
    %v444 = vld [vmem:[#allocation3 + $0x578] sm:$0xff]
    %v445 = vld [vmem:[#allocation3 + $0x580] sm:$0xff]
    %v446 = vld [vmem:[#allocation3 + $0x588] sm:$0xff]
    %v447 = vld [vmem:[#allocation3 + $0x590] sm:$0xff]
    %v448 = vld [vmem:[#allocation3 + $0x598] sm:$0xff]
    %v449 = vld [vmem:[#allocation3 + $0x5a0] sm:$0xff]
    %v450 = vld [vmem:[#allocation3 + $0x5a8] sm:$0xff]
    %v451 = vld [vmem:[#allocation3 + $0x5b0] sm:$0xff]
    %v452 = vld [vmem:[#allocation3 + $0x5b8] sm:$0xff]
    %v453 = vld [vmem:[#allocation3 + $0x5c0] sm:$0xff]
    %v454 = vld [vmem:[#allocation3 + $0x5c8] sm:$0xff]
    %v455 = vld [vmem:[#allocation3 + $0x5d0] sm:$0xff]
    %v456 = vld [vmem:[#allocation3 + $0x5d8] sm:$0xff]
    %v457 = vld [vmem:[#allocation3 + $0x5e0] sm:$0xff]
    %v458 = vld [vmem:[#allocation3 + $0x5e8] sm:$0xff]
    %v459 = vld [vmem:[#allocation3 + $0x5f0] sm:$0xff]
    %v460 = vld [vmem:[#allocation3 + $0x5f8] sm:$0xff]
    %v461 = vld [vmem:[#allocation3 + $0x600] sm:$0xff]
    %v462 = vld [vmem:[#allocation3 + $0x608] sm:$0xff]
    %v463 = vld [vmem:[#allocation3 + $0x610] sm:$0xff]
    %v464 = vld [vmem:[#allocation3 + $0x618] sm:$0xff]
    %v465 = vld [vmem:[#allocation3 + $0x620] sm:$0xff]
    %v466 = vld [vmem:[#allocation3 + $0x628] sm:$0xff]
    %v467 = vld [vmem:[#allocation3 + $0x630] sm:$0xff]
    %v468 = vld [vmem:[#allocation3 + $0x638] sm:$0xff]
    %v469 = vld [vmem:[#allocation3 + $0x640] sm:$0xff]
    %v470 = vld [vmem:[#allocation3 + $0x648] sm:$0xff]
    %v471 = vld [vmem:[#allocation3 + $0x650] sm:$0xff]
    %v472 = vld [vmem:[#allocation3 + $0x658] sm:$0xff]
    %v473 = vld [vmem:[#allocation3 + $0x660] sm:$0xff]
    %v474 = vld [vmem:[#allocation3 + $0x668] sm:$0xff]
    %v475 = vld [vmem:[#allocation3 + $0x670] sm:$0xff]
    %v476 = vld [vmem:[#allocation3 + $0x678] sm:$0xff]
    %v477 = vld [vmem:[#allocation3 + $0x680] sm:$0xff]
    %v478 = vld [vmem:[#allocation3 + $0x688] sm:$0xff]
    %v479 = vld [vmem:[#allocation3 + $0x690] sm:$0xff]
    %v480 = vld [vmem:[#allocation3 + $0x698] sm:$0xff]
    %v481 = vld [vmem:[#allocation3 + $0x6a0] sm:$0xff]
    %v482 = vld [vmem:[#allocation3 + $0x6a8] sm:$0xff]
    %v483 = vld [vmem:[#allocation3 + $0x6b0] sm:$0xff]
    %v484 = vld [vmem:[#allocation3 + $0x6b8] sm:$0xff]
    %v485 = vld [vmem:[#allocation3 + $0x6c0] sm:$0xff]
    %v486 = vld [vmem:[#allocation3 + $0x6c8] sm:$0xff]
    %v487 = vld [vmem:[#allocation3 + $0x6d0] sm:$0xff]
    %v488 = vld [vmem:[#allocation3 + $0x6d8] sm:$0xff]
    %v489 = vld [vmem:[#allocation3 + $0x6e0] sm:$0xff]
    %v490 = vld [vmem:[#allocation3 + $0x6e8] sm:$0xff]
    %v491 = vld [vmem:[#allocation3 + $0x6f0] sm:$0xff]
    %v492 = vld [vmem:[#allocation3 + $0x6f8] sm:$0xff]
    %v493 = vld [vmem:[#allocation3 + $0x700] sm:$0xff]
    %v494 = vld [vmem:[#allocation3 + $0x708] sm:$0xff]
    %v495 = vld [vmem:[#allocation3 + $0x710] sm:$0xff]
    %v496 = vld [vmem:[#allocation3 + $0x718] sm:$0xff]
    %v497 = vld [vmem:[#allocation3 + $0x720] sm:$0xff]
    %v498 = vld [vmem:[#allocation3 + $0x728] sm:$0xff]
    %v499 = vld [vmem:[#allocation3 + $0x730] sm:$0xff]
    %v500 = vld [vmem:[#allocation3 + $0x738] sm:$0xff]
    %v501 = vld [vmem:[#allocation3 + $0x740] sm:$0xff]
    %v502 = vld [vmem:[#allocation3 + $0x748] sm:$0xff]
    %v503 = vld [vmem:[#allocation3 + $0x750] sm:$0xff]
    %v504 = vld [vmem:[#allocation3 + $0x758] sm:$0xff]
    %v505 = vld [vmem:[#allocation3 + $0x760] sm:$0xff]
    %v506 = vld [vmem:[#allocation3 + $0x768] sm:$0xff]
    %v507 = vld [vmem:[#allocation3 + $0x770] sm:$0xff]
    %v508 = vld [vmem:[#allocation3 + $0x778] sm:$0xff]
    %v509 = vld [vmem:[#allocation3 + $0x780] sm:$0xff]
    %v510 = vld [vmem:[#allocation3 + $0x788] sm:$0xff]
    %v511 = vld [vmem:[#allocation3 + $0x790] sm:$0xff]
    %v512 = vld [vmem:[#allocation3 + $0x798] sm:$0xff]
    %v513 = vld [vmem:[#allocation3 + $0x7a0] sm:$0xff]
    %v514 = vld [vmem:[#allocation3 + $0x7a8] sm:$0xff]
    %v515 = vld [vmem:[#allocation3 + $0x7b0] sm:$0xff]
    %v516 = vld [vmem:[#allocation3 + $0x7b8] sm:$0xff]
    %v517 = vld [vmem:[#allocation3 + $0x7c0] sm:$0xff]
    %v518 = vld [vmem:[#allocation3 + $0x7c8] sm:$0xff]
    %v519 = vld [vmem:[#allocation3 + $0x7d0] sm:$0xff]
    %v520 = vld [vmem:[#allocation3 + $0x7d8] sm:$0xff]
    %v521 = vld [vmem:[#allocation3 + $0x7e0] sm:$0xff]
    %v522 = vld [vmem:[#allocation3 + $0x7e8] sm:$0xff]
    %v523 = vld [vmem:[#allocation3 + $0x7f0] sm:$0xff]
    %v524 = vld [vmem:[#allocation3 + $0x7f8] sm:$0xff]
    %v525 = vld [vmem:[#allocation3 + $0x800] sm:$0xff]
    %v526 = vld [vmem:[#allocation3 + $0x808] sm:$0xff]
    %v527 = vld [vmem:[#allocation3 + $0x810] sm:$0xff]
    %v528 = vld [vmem:[#allocation3 + $0x818] sm:$0xff]
    %v529 = vld [vmem:[#allocation3 + $0x820] sm:$0xff]
    %v530 = vld [vmem:[#allocation3 + $0x828] sm:$0xff]
    %v531 = vld [vmem:[#allocation3 + $0x830] sm:$0xff]
    %v532 = vld [vmem:[#allocation3 + $0x838] sm:$0xff]
    %v533 = vld [vmem:[#allocation3 + $0x840] sm:$0xff]
    %v534 = vld [vmem:[#allocation3 + $0x848] sm:$0xff]
    %v535 = vld [vmem:[#allocation3 + $0x850] sm:$0xff]
    %v536 = vld [vmem:[#allocation3 + $0x858] sm:$0xff]
    %v537 = vld [vmem:[#allocation3 + $0x860] sm:$0xff]
    %v538 = vld [vmem:[#allocation3 + $0x868] sm:$0xff]
    %v539 = vld [vmem:[#allocation3 + $0x870] sm:$0xff]
    %v540 = vld [vmem:[#allocation3 + $0x878] sm:$0xff]
    %v541 = vld [vmem:[#allocation3 + $0x880] sm:$0xff]
    %v542 = vld [vmem:[#allocation3 + $0x888] sm:$0xff]
    %v543 = vld [vmem:[#allocation3 + $0x890] sm:$0xff]
    %v544 = vld [vmem:[#allocation3 + $0x898] sm:$0xff]
    %v545 = vld [vmem:[#allocation3 + $0x8a0] sm:$0xff]
    %v546 = vld [vmem:[#allocation3 + $0x8a8] sm:$0xff]
    %v547 = vld [vmem:[#allocation3 + $0x8b0] sm:$0xff]
    %v548 = vld [vmem:[#allocation3 + $0x8b8] sm:$0xff]
    %v549 = vld [vmem:[#allocation3 + $0x8c0] sm:$0xff]
    %v550 = vld [vmem:[#allocation3 + $0x8c8] sm:$0xff]
    %v551 = vld [vmem:[#allocation3 + $0x8d0] sm:$0xff]
    %v552 = vld [vmem:[#allocation3 + $0x8d8] sm:$0xff]
    %v553 = vld [vmem:[#allocation3 + $0x8e0] sm:$0xff]
    %v554 = vld [vmem:[#allocation3 + $0x8e8] sm:$0xff]
    %v555 = vld [vmem:[#allocation3 + $0x8f0] sm:$0xff]
    %v556 = vld [vmem:[#allocation3 + $0x8f8] sm:$0xff]
    %v557 = vld [vmem:[#allocation6] sm:$0xff]
    %v559 = vlaneseq
    %v560 = vshrl.u32 %v559, 7
    %v561 = vsub.s32 0, %v560
    %v562 = vrot.slane %v557, %v561
    %v563 = vlaneseq
    %v564 = vshrl.u32 %v563, 7
    %v565 = vsub.s32 1, %v564
    %v566 = vrot.slane %v557, %v565
    %v567 = vlaneseq
    %v568 = vshrl.u32 %v567, 7
    %v569 = vsub.s32 2, %v568
    %v570 = vrot.slane %v557, %v569
    %v571 = vlaneseq
    %v572 = vshrl.u32 %v571, 7
    %v573 = vsub.s32 3, %v572
    %v574 = vrot.slane %v557, %v573
    %v575 = vlaneseq
    %v576 = vshrl.u32 %v575, 7
    %v577 = vsub.s32 4, %v576
    %v578 = vrot.slane %v557, %v577
    %v579 = vlaneseq
    %v580 = vshrl.u32 %v579, 7
    %v581 = vsub.s32 5, %v580
    %v582 = vrot.slane %v557, %v581
    %v583 = vlaneseq
    %v584 = vshrl.u32 %v583, 7
    %v585 = vsub.s32 6, %v584
    %v586 = vrot.slane %v557, %v585
    %v587 = vlaneseq
    %v588 = vshrl.u32 %v587, 7
    %v589 = vsub.s32 7, %v588
    %v590 = vrot.slane %v557, %v589
    %v887 = vunpack.c.l.b16 %v269
    %v888 = vunpack.c.h.b16 %v269
    %v889 = vunpack.c.l.b16 %v270
    %v890 = vunpack.c.h.b16 %v270
    %v891 = vunpack.c.l.b16 %v271
    %v892 = vunpack.c.h.b16 %v271
    %v893 = vunpack.c.l.b16 %v272
    %v894 = vunpack.c.h.b16 %v272
    %v895 = vunpack.c.l.b16 %v273
    %v896 = vunpack.c.h.b16 %v273
    %v897 = vunpack.c.l.b16 %v274
    %v898 = vunpack.c.h.b16 %v274
    %v899 = vunpack.c.l.b16 %v275
    %v900 = vunpack.c.h.b16 %v275
    %v901 = vunpack.c.l.b16 %v276
    %v902 = vunpack.c.h.b16 %v276
    %v903 = vunpack.c.l.b16 %v277
    %v904 = vunpack.c.h.b16 %v277
    %v905 = vunpack.c.l.b16 %v278
    %v906 = vunpack.c.h.b16 %v278
    %v907 = vunpack.c.l.b16 %v279
    %v908 = vunpack.c.h.b16 %v279
    %v909 = vunpack.c.l.b16 %v280
    %v910 = vunpack.c.h.b16 %v280
    %v911 = vunpack.c.l.b16 %v281
    %v912 = vunpack.c.h.b16 %v281
    %v913 = vunpack.c.l.b16 %v282
    %v914 = vunpack.c.h.b16 %v282
    %v915 = vunpack.c.l.b16 %v283
    %v916 = vunpack.c.h.b16 %v283
    %v917 = vunpack.c.l.b16 %v284
    %v918 = vunpack.c.h.b16 %v284
    %v919 = vunpack.c.l.b16 %v285
    %v920 = vunpack.c.h.b16 %v285
    %v921 = vunpack.c.l.b16 %v286
    %v922 = vunpack.c.h.b16 %v286
    %v923 = vunpack.c.l.b16 %v287
    %v924 = vunpack.c.h.b16 %v287
    %v925 = vunpack.c.l.b16 %v288
    %v926 = vunpack.c.h.b16 %v288
    %v927 = vunpack.c.l.b16 %v289
    %v928 = vunpack.c.h.b16 %v289
    %v929 = vunpack.c.l.b16 %v290
    %v930 = vunpack.c.h.b16 %v290
    %v931 = vunpack.c.l.b16 %v291
    %v932 = vunpack.c.h.b16 %v291
    %v933 = vunpack.c.l.b16 %v292
    %v934 = vunpack.c.h.b16 %v292
    %v935 = vunpack.c.l.b16 %v293
    %v936 = vunpack.c.h.b16 %v293
    %v937 = vunpack.c.l.b16 %v294
    %v938 = vunpack.c.h.b16 %v294
    %v939 = vunpack.c.l.b16 %v295
    %v940 = vunpack.c.h.b16 %v295
    %v941 = vunpack.c.l.b16 %v296
    %v942 = vunpack.c.h.b16 %v296
    %v943 = vunpack.c.l.b16 %v297
    %v944 = vunpack.c.h.b16 %v297
    %v945 = vunpack.c.l.b16 %v298
    %v946 = vunpack.c.h.b16 %v298
    %v947 = vunpack.c.l.b16 %v299
    %v948 = vunpack.c.h.b16 %v299
    %v949 = vunpack.c.l.b16 %v300
    %v950 = vunpack.c.h.b16 %v300
    %v951 = vunpack.c.l.b16 %v301
    %v952 = vunpack.c.h.b16 %v301
    %v953 = vunpack.c.l.b16 %v302
    %v954 = vunpack.c.h.b16 %v302
    %v955 = vunpack.c.l.b16 %v303
    %v956 = vunpack.c.h.b16 %v303
    %v957 = vunpack.c.l.b16 %v304
    %v958 = vunpack.c.h.b16 %v304
    %v959 = vunpack.c.l.b16 %v305
    %v960 = vunpack.c.h.b16 %v305
    %v961 = vunpack.c.l.b16 %v306
    %v962 = vunpack.c.h.b16 %v306
    %v963 = vunpack.c.l.b16 %v307
    %v964 = vunpack.c.h.b16 %v307
    %v965 = vunpack.c.l.b16 %v308
    %v966 = vunpack.c.h.b16 %v308
    %v967 = vunpack.c.l.b16 %v309
    %v968 = vunpack.c.h.b16 %v309
    %v969 = vunpack.c.l.b16 %v310
    %v970 = vunpack.c.h.b16 %v310
    %v971 = vunpack.c.l.b16 %v311
    %v972 = vunpack.c.h.b16 %v311
    %v973 = vunpack.c.l.b16 %v312
    %v974 = vunpack.c.h.b16 %v312
    %v975 = vunpack.c.l.b16 %v313
    %v976 = vunpack.c.h.b16 %v313
    %v977 = vunpack.c.l.b16 %v314
    %v978 = vunpack.c.h.b16 %v314
    %v979 = vunpack.c.l.b16 %v315
    %v980 = vunpack.c.h.b16 %v315
    %v981 = vunpack.c.l.b16 %v316
    %v982 = vunpack.c.h.b16 %v316
    %v983 = vunpack.c.l.b16 %v317
    %v984 = vunpack.c.h.b16 %v317
    %v985 = vunpack.c.l.b16 %v318
    %v986 = vunpack.c.h.b16 %v318
    %v987 = vunpack.c.l.b16 %v319
    %v988 = vunpack.c.h.b16 %v319
    %v989 = vunpack.c.l.b16 %v320
    %v990 = vunpack.c.h.b16 %v320
    %v991 = vunpack.c.l.b16 %v321
    %v992 = vunpack.c.h.b16 %v321
    %v993 = vunpack.c.l.b16 %v322
    %v994 = vunpack.c.h.b16 %v322
    %v995 = vunpack.c.l.b16 %v323
    %v996 = vunpack.c.h.b16 %v323
    %v997 = vunpack.c.l.b16 %v324
    %v998 = vunpack.c.h.b16 %v324
    %v999 = vunpack.c.l.b16 %v325
    %v1000 = vunpack.c.h.b16 %v325
    %v1001 = vunpack.c.l.b16 %v326
    %v1002 = vunpack.c.h.b16 %v326
    %v1003 = vunpack.c.l.b16 %v327
    %v1004 = vunpack.c.h.b16 %v327
    %v1005 = vunpack.c.l.b16 %v328
    %v1006 = vunpack.c.h.b16 %v328
    %v1007 = vunpack.c.l.b16 %v329
    %v1008 = vunpack.c.h.b16 %v329
    %v1009 = vunpack.c.l.b16 %v330
    %v1010 = vunpack.c.h.b16 %v330
    %v1011 = vunpack.c.l.b16 %v331
    %v1012 = vunpack.c.h.b16 %v331
    %v1013 = vunpack.c.l.b16 %v332
    %v1014 = vunpack.c.h.b16 %v332
    %v1015 = vunpack.c.l.b16 %v333
    %v1016 = vunpack.c.h.b16 %v333
    %v1017 = vunpack.c.l.b16 %v334
    %v1018 = vunpack.c.h.b16 %v334
    %v1019 = vunpack.c.l.b16 %v335
    %v1020 = vunpack.c.h.b16 %v335
    %v1021 = vunpack.c.l.b16 %v336
    %v1022 = vunpack.c.h.b16 %v336
    %v1023 = vunpack.c.l.b16 %v337
    %v1024 = vunpack.c.h.b16 %v337
    %v1025 = vunpack.c.l.b16 %v338
    %v1026 = vunpack.c.h.b16 %v338
    %v1027 = vunpack.c.l.b16 %v339
    %v1028 = vunpack.c.h.b16 %v339
    %v1029 = vunpack.c.l.b16 %v340
    %v1030 = vunpack.c.h.b16 %v340
    %v1031 = vunpack.c.l.b16 %v341
    %v1032 = vunpack.c.h.b16 %v341
    %v1033 = vunpack.c.l.b16 %v342
    %v1034 = vunpack.c.h.b16 %v342
    %v1035 = vunpack.c.l.b16 %v343
    %v1036 = vunpack.c.h.b16 %v343
    %v1037 = vunpack.c.l.b16 %v344
    %v1038 = vunpack.c.h.b16 %v344
    %v1039 = vunpack.c.l.b16 %v345
    %v1040 = vunpack.c.h.b16 %v345
    %v1041 = vunpack.c.l.b16 %v346
    %v1042 = vunpack.c.h.b16 %v346
    %v1043 = vunpack.c.l.b16 %v347
    %v1044 = vunpack.c.h.b16 %v347
    %v1045 = vunpack.c.l.b16 %v348
    %v1046 = vunpack.c.h.b16 %v348
    %v1047 = vunpack.c.l.b16 %v349
    %v1048 = vunpack.c.h.b16 %v349
    %v1049 = vunpack.c.l.b16 %v350
    %v1050 = vunpack.c.h.b16 %v350
    %v1051 = vunpack.c.l.b16 %v351
    %v1052 = vunpack.c.h.b16 %v351
    %v1053 = vunpack.c.l.b16 %v352
    %v1054 = vunpack.c.h.b16 %v352
    %v1055 = vunpack.c.l.b16 %v353
    %v1056 = vunpack.c.h.b16 %v353
    %v1057 = vunpack.c.l.b16 %v354
    %v1058 = vunpack.c.h.b16 %v354
    %v1059 = vunpack.c.l.b16 %v355
    %v1060 = vunpack.c.h.b16 %v355
    %v1061 = vunpack.c.l.b16 %v356
    %v1062 = vunpack.c.h.b16 %v356
    %v1063 = vunpack.c.l.b16 %v357
    %v1064 = vunpack.c.h.b16 %v357
    %v1065 = vunpack.c.l.b16 %v358
    %v1066 = vunpack.c.h.b16 %v358
    %v1067 = vunpack.c.l.b16 %v359
    %v1068 = vunpack.c.h.b16 %v359
    %v1069 = vunpack.c.l.b16 %v360
    %v1070 = vunpack.c.h.b16 %v360
    %v1071 = vunpack.c.l.b16 %v361
    %v1072 = vunpack.c.h.b16 %v361
    %v1073 = vunpack.c.l.b16 %v362
    %v1074 = vunpack.c.h.b16 %v362
    %v1075 = vunpack.c.l.b16 %v363
    %v1076 = vunpack.c.h.b16 %v363
    %v1077 = vunpack.c.l.b16 %v364
    %v1078 = vunpack.c.h.b16 %v364
    %v1079 = vunpack.c.l.b16 %v365
    %v1080 = vunpack.c.h.b16 %v365
    %v1081 = vunpack.c.l.b16 %v366
    %v1082 = vunpack.c.h.b16 %v366
    %v1083 = vunpack.c.l.b16 %v367
    %v1084 = vunpack.c.h.b16 %v367
    %v1085 = vunpack.c.l.b16 %v368
    %v1086 = vunpack.c.h.b16 %v368
    %v1087 = vunpack.c.l.b16 %v369
    %v1088 = vunpack.c.h.b16 %v369
    %v1089 = vunpack.c.l.b16 %v370
    %v1090 = vunpack.c.h.b16 %v370
    %v1091 = vunpack.c.l.b16 %v371
    %v1092 = vunpack.c.h.b16 %v371
    %v1093 = vunpack.c.l.b16 %v372
    %v1094 = vunpack.c.h.b16 %v372
    %v1095 = vunpack.c.l.b16 %v373
    %v1096 = vunpack.c.h.b16 %v373
    %v1097 = vunpack.c.l.b16 %v374
    %v1098 = vunpack.c.h.b16 %v374
    %v1099 = vunpack.c.l.b16 %v375
    %v1100 = vunpack.c.h.b16 %v375
    %v1101 = vunpack.c.l.b16 %v376
    %v1102 = vunpack.c.h.b16 %v376
    %v1103 = vunpack.c.l.b16 %v377
    %v1104 = vunpack.c.h.b16 %v377
    %v1105 = vunpack.c.l.b16 %v378
    %v1106 = vunpack.c.h.b16 %v378
    %v1107 = vunpack.c.l.b16 %v379
    %v1108 = vunpack.c.h.b16 %v379
    %v1109 = vunpack.c.l.b16 %v380
    %v1110 = vunpack.c.h.b16 %v380
    %v1111 = vunpack.c.l.b16 %v381
    %v1112 = vunpack.c.h.b16 %v381
    %v1113 = vunpack.c.l.b16 %v382
    %v1114 = vunpack.c.h.b16 %v382
    %v1115 = vunpack.c.l.b16 %v383
    %v1116 = vunpack.c.h.b16 %v383
    %v1117 = vunpack.c.l.b16 %v384
    %v1118 = vunpack.c.h.b16 %v384
    %v1119 = vunpack.c.l.b16 %v385
    %v1120 = vunpack.c.h.b16 %v385
    %v1121 = vunpack.c.l.b16 %v386
    %v1122 = vunpack.c.h.b16 %v386
    %v1123 = vunpack.c.l.b16 %v387
    %v1124 = vunpack.c.h.b16 %v387
    %v1125 = vunpack.c.l.b16 %v388
    %v1126 = vunpack.c.h.b16 %v388
    %v1127 = vunpack.c.l.b16 %v389
    %v1128 = vunpack.c.h.b16 %v389
    %v1129 = vunpack.c.l.b16 %v390
    %v1130 = vunpack.c.h.b16 %v390
    %v1131 = vunpack.c.l.b16 %v391
    %v1132 = vunpack.c.h.b16 %v391
    %v1133 = vunpack.c.l.b16 %v392
    %v1134 = vunpack.c.h.b16 %v392
    %v1135 = vunpack.c.l.b16 %v393
    %v1136 = vunpack.c.h.b16 %v393
    %v1137 = vunpack.c.l.b16 %v394
    %v1138 = vunpack.c.h.b16 %v394
    %v1139 = vunpack.c.l.b16 %v395
    %v1140 = vunpack.c.h.b16 %v395
    %v1141 = vunpack.c.l.b16 %v396
    %v1142 = vunpack.c.h.b16 %v396
    %v1143 = vunpack.c.l.b16 %v397
    %v1144 = vunpack.c.h.b16 %v397
    %v1145 = vunpack.c.l.b16 %v398
    %v1146 = vunpack.c.h.b16 %v398
    %v1147 = vunpack.c.l.b16 %v399
    %v1148 = vunpack.c.h.b16 %v399
    %v1149 = vunpack.c.l.b16 %v400
    %v1150 = vunpack.c.h.b16 %v400
    %v1151 = vunpack.c.l.b16 %v401
    %v1152 = vunpack.c.h.b16 %v401
    %v1153 = vunpack.c.l.b16 %v402
    %v1154 = vunpack.c.h.b16 %v402
    %v1155 = vunpack.c.l.b16 %v403
    %v1156 = vunpack.c.h.b16 %v403
    %v1157 = vunpack.c.l.b16 %v404
    %v1158 = vunpack.c.h.b16 %v404
    %v1159 = vunpack.c.l.b16 %v405
    %v1160 = vunpack.c.h.b16 %v405
    %v1161 = vunpack.c.l.b16 %v406
    %v1162 = vunpack.c.h.b16 %v406
    %v1163 = vunpack.c.l.b16 %v407
    %v1164 = vunpack.c.h.b16 %v407
    %v1165 = vunpack.c.l.b16 %v408
    %v1166 = vunpack.c.h.b16 %v408
    %v1167 = vunpack.c.l.b16 %v409
    %v1168 = vunpack.c.h.b16 %v409
    %v1169 = vunpack.c.l.b16 %v410
    %v1170 = vunpack.c.h.b16 %v410
    %v1171 = vunpack.c.l.b16 %v411
    %v1172 = vunpack.c.h.b16 %v411
    %v1173 = vunpack.c.l.b16 %v412
    %v1174 = vunpack.c.h.b16 %v412
    %v1175 = vunpack.c.l.b16 %v413
    %v1176 = vunpack.c.h.b16 %v413
    %v1177 = vunpack.c.l.b16 %v414
    %v1178 = vunpack.c.h.b16 %v414
    %v1179 = vunpack.c.l.b16 %v415
    %v1180 = vunpack.c.h.b16 %v415
    %v1181 = vunpack.c.l.b16 %v416
    %v1182 = vunpack.c.h.b16 %v416
    %v1183 = vunpack.c.l.b16 %v417
    %v1184 = vunpack.c.h.b16 %v417
    %v1185 = vunpack.c.l.b16 %v418
    %v1186 = vunpack.c.h.b16 %v418
    %v1187 = vunpack.c.l.b16 %v419
    %v1188 = vunpack.c.h.b16 %v419
    %v1189 = vunpack.c.l.b16 %v420
    %v1190 = vunpack.c.h.b16 %v420
    %v1191 = vunpack.c.l.b16 %v421
    %v1192 = vunpack.c.h.b16 %v421
    %v1193 = vunpack.c.l.b16 %v422
    %v1194 = vunpack.c.h.b16 %v422
    %v1195 = vunpack.c.l.b16 %v423
    %v1196 = vunpack.c.h.b16 %v423
    %v1197 = vunpack.c.l.b16 %v424
    %v1198 = vunpack.c.h.b16 %v424
    %v1199 = vunpack.c.l.b16 %v425
    %v1200 = vunpack.c.h.b16 %v425
    %v1201 = vunpack.c.l.b16 %v426
    %v1202 = vunpack.c.h.b16 %v426
    %v1203 = vunpack.c.l.b16 %v427
    %v1204 = vunpack.c.h.b16 %v427
    %v1205 = vunpack.c.l.b16 %v428
    %v1206 = vunpack.c.h.b16 %v428
    %v1207 = vunpack.c.l.b16 %v429
    %v1208 = vunpack.c.h.b16 %v429
    %v1209 = vunpack.c.l.b16 %v430
    %v1210 = vunpack.c.h.b16 %v430
    %v1211 = vunpack.c.l.b16 %v431
    %v1212 = vunpack.c.h.b16 %v431
    %v1213 = vunpack.c.l.b16 %v432
    %v1214 = vunpack.c.h.b16 %v432
    %v1215 = vunpack.c.l.b16 %v433
    %v1216 = vunpack.c.h.b16 %v433
    %v1217 = vunpack.c.l.b16 %v434
    %v1218 = vunpack.c.h.b16 %v434
    %v1219 = vunpack.c.l.b16 %v435
    %v1220 = vunpack.c.h.b16 %v435
    %v1221 = vunpack.c.l.b16 %v436
    %v1222 = vunpack.c.h.b16 %v436
    %v1223 = vunpack.c.l.b16 %v437
    %v1224 = vunpack.c.h.b16 %v437
    %v1225 = vunpack.c.l.b16 %v438
    %v1226 = vunpack.c.h.b16 %v438
    %v1227 = vunpack.c.l.b16 %v439
    %v1228 = vunpack.c.h.b16 %v439
    %v1229 = vunpack.c.l.b16 %v440
    %v1230 = vunpack.c.h.b16 %v440
    %v1231 = vunpack.c.l.b16 %v441
    %v1232 = vunpack.c.h.b16 %v441
    %v1233 = vunpack.c.l.b16 %v442
    %v1234 = vunpack.c.h.b16 %v442
    %v1235 = vunpack.c.l.b16 %v443
    %v1236 = vunpack.c.h.b16 %v443
    %v1237 = vunpack.c.l.b16 %v444
    %v1238 = vunpack.c.h.b16 %v444
    %v1239 = vunpack.c.l.b16 %v445
    %v1240 = vunpack.c.h.b16 %v445
    %v1241 = vunpack.c.l.b16 %v446
    %v1242 = vunpack.c.h.b16 %v446
    %v1243 = vunpack.c.l.b16 %v447
    %v1244 = vunpack.c.h.b16 %v447
    %v1245 = vunpack.c.l.b16 %v448
    %v1246 = vunpack.c.h.b16 %v448
    %v1247 = vunpack.c.l.b16 %v449
    %v1248 = vunpack.c.h.b16 %v449
    %v1249 = vunpack.c.l.b16 %v450
    %v1250 = vunpack.c.h.b16 %v450
    %v1251 = vunpack.c.l.b16 %v451
    %v1252 = vunpack.c.h.b16 %v451
    %v1253 = vunpack.c.l.b16 %v452
    %v1254 = vunpack.c.h.b16 %v452
    %v1255 = vunpack.c.l.b16 %v453
    %v1256 = vunpack.c.h.b16 %v453
    %v1257 = vunpack.c.l.b16 %v454
    %v1258 = vunpack.c.h.b16 %v454
    %v1259 = vunpack.c.l.b16 %v455
    %v1260 = vunpack.c.h.b16 %v455
    %v1261 = vunpack.c.l.b16 %v456
    %v1262 = vunpack.c.h.b16 %v456
    %v1263 = vunpack.c.l.b16 %v457
    %v1264 = vunpack.c.h.b16 %v457
    %v1265 = vunpack.c.l.b16 %v458
    %v1266 = vunpack.c.h.b16 %v458
    %v1267 = vunpack.c.l.b16 %v459
    %v1268 = vunpack.c.h.b16 %v459
    %v1269 = vunpack.c.l.b16 %v460
    %v1270 = vunpack.c.h.b16 %v460
    %v1271 = vunpack.c.l.b16 %v461
    %v1272 = vunpack.c.h.b16 %v461
    %v1273 = vunpack.c.l.b16 %v462
    %v1274 = vunpack.c.h.b16 %v462
    %v1275 = vunpack.c.l.b16 %v463
    %v1276 = vunpack.c.h.b16 %v463
    %v1277 = vunpack.c.l.b16 %v464
    %v1278 = vunpack.c.h.b16 %v464
    %v1279 = vunpack.c.l.b16 %v465
    %v1280 = vunpack.c.h.b16 %v465
    %v1281 = vunpack.c.l.b16 %v466
    %v1282 = vunpack.c.h.b16 %v466
    %v1283 = vunpack.c.l.b16 %v467
    %v1284 = vunpack.c.h.b16 %v467
    %v1285 = vunpack.c.l.b16 %v468
    %v1286 = vunpack.c.h.b16 %v468
    %v1287 = vunpack.c.l.b16 %v469
    %v1288 = vunpack.c.h.b16 %v469
    %v1289 = vunpack.c.l.b16 %v470
    %v1290 = vunpack.c.h.b16 %v470
    %v1291 = vunpack.c.l.b16 %v471
    %v1292 = vunpack.c.h.b16 %v471
    %v1293 = vunpack.c.l.b16 %v472
    %v1294 = vunpack.c.h.b16 %v472
    %v1295 = vunpack.c.l.b16 %v473
    %v1296 = vunpack.c.h.b16 %v473
    %v1297 = vunpack.c.l.b16 %v474
    %v1298 = vunpack.c.h.b16 %v474
    %v1299 = vunpack.c.l.b16 %v475
    %v1300 = vunpack.c.h.b16 %v475
    %v1301 = vunpack.c.l.b16 %v476
    %v1302 = vunpack.c.h.b16 %v476
    %v1303 = vunpack.c.l.b16 %v477
    %v1304 = vunpack.c.h.b16 %v477
    %v1305 = vunpack.c.l.b16 %v478
    %v1306 = vunpack.c.h.b16 %v478
    %v1307 = vunpack.c.l.b16 %v479
    %v1308 = vunpack.c.h.b16 %v479
    %v1309 = vunpack.c.l.b16 %v480
    %v1310 = vunpack.c.h.b16 %v480
    %v1311 = vunpack.c.l.b16 %v481
    %v1312 = vunpack.c.h.b16 %v481
    %v1313 = vunpack.c.l.b16 %v482
    %v1314 = vunpack.c.h.b16 %v482
    %v1315 = vunpack.c.l.b16 %v483
    %v1316 = vunpack.c.h.b16 %v483
    %v1317 = vunpack.c.l.b16 %v484
    %v1318 = vunpack.c.h.b16 %v484
    %v1319 = vunpack.c.l.b16 %v485
    %v1320 = vunpack.c.h.b16 %v485
    %v1321 = vunpack.c.l.b16 %v486
    %v1322 = vunpack.c.h.b16 %v486
    %v1323 = vunpack.c.l.b16 %v487
    %v1324 = vunpack.c.h.b16 %v487
    %v1325 = vunpack.c.l.b16 %v488
    %v1326 = vunpack.c.h.b16 %v488
    %v1327 = vunpack.c.l.b16 %v489
    %v1328 = vunpack.c.h.b16 %v489
    %v1329 = vunpack.c.l.b16 %v490
    %v1330 = vunpack.c.h.b16 %v490
    %v1331 = vunpack.c.l.b16 %v491
    %v1332 = vunpack.c.h.b16 %v491
    %v1333 = vunpack.c.l.b16 %v492
    %v1334 = vunpack.c.h.b16 %v492
    %v1335 = vunpack.c.l.b16 %v493
    %v1336 = vunpack.c.h.b16 %v493
    %v1337 = vunpack.c.l.b16 %v494
    %v1338 = vunpack.c.h.b16 %v494
    %v1339 = vunpack.c.l.b16 %v495
    %v1340 = vunpack.c.h.b16 %v495
    %v1341 = vunpack.c.l.b16 %v496
    %v1342 = vunpack.c.h.b16 %v496
    %v1343 = vunpack.c.l.b16 %v497
    %v1344 = vunpack.c.h.b16 %v497
    %v1345 = vunpack.c.l.b16 %v498
    %v1346 = vunpack.c.h.b16 %v498
    %v1347 = vunpack.c.l.b16 %v499
    %v1348 = vunpack.c.h.b16 %v499
    %v1349 = vunpack.c.l.b16 %v500
    %v1350 = vunpack.c.h.b16 %v500
    %v1351 = vunpack.c.l.b16 %v501
    %v1352 = vunpack.c.h.b16 %v501
    %v1353 = vunpack.c.l.b16 %v502
    %v1354 = vunpack.c.h.b16 %v502
    %v1355 = vunpack.c.l.b16 %v503
    %v1356 = vunpack.c.h.b16 %v503
    %v1357 = vunpack.c.l.b16 %v504
    %v1358 = vunpack.c.h.b16 %v504
    %v1359 = vunpack.c.l.b16 %v505
    %v1360 = vunpack.c.h.b16 %v505
    %v1361 = vunpack.c.l.b16 %v506
    %v1362 = vunpack.c.h.b16 %v506
    %v1363 = vunpack.c.l.b16 %v507
    %v1364 = vunpack.c.h.b16 %v507
    %v1365 = vunpack.c.l.b16 %v508
    %v1366 = vunpack.c.h.b16 %v508
    %v1367 = vunpack.c.l.b16 %v509
    %v1368 = vunpack.c.h.b16 %v509
    %v1369 = vunpack.c.l.b16 %v510
    %v1370 = vunpack.c.h.b16 %v510
    %v1371 = vunpack.c.l.b16 %v511
    %v1372 = vunpack.c.h.b16 %v511
    %v1373 = vunpack.c.l.b16 %v512
    %v1374 = vunpack.c.h.b16 %v512
    %v1375 = vunpack.c.l.b16 %v513
    %v1376 = vunpack.c.h.b16 %v513
    %v1377 = vunpack.c.l.b16 %v514
    %v1378 = vunpack.c.h.b16 %v514
    %v1379 = vunpack.c.l.b16 %v515
    %v1380 = vunpack.c.h.b16 %v515
    %v1381 = vunpack.c.l.b16 %v516
    %v1382 = vunpack.c.h.b16 %v516
    %v1383 = vunpack.c.l.b16 %v517
    %v1384 = vunpack.c.h.b16 %v517
    %v1385 = vunpack.c.l.b16 %v518
    %v1386 = vunpack.c.h.b16 %v518
    %v1387 = vunpack.c.l.b16 %v519
    %v1388 = vunpack.c.h.b16 %v519
    %v1389 = vunpack.c.l.b16 %v520
    %v1390 = vunpack.c.h.b16 %v520
    %v1391 = vunpack.c.l.b16 %v521
    %v1392 = vunpack.c.h.b16 %v521
    %v1393 = vunpack.c.l.b16 %v522
    %v1394 = vunpack.c.h.b16 %v522
    %v1395 = vunpack.c.l.b16 %v523
    %v1396 = vunpack.c.h.b16 %v523
    %v1397 = vunpack.c.l.b16 %v524
    %v1398 = vunpack.c.h.b16 %v524
    %v1399 = vunpack.c.l.b16 %v525
    %v1400 = vunpack.c.h.b16 %v525
    %v1401 = vunpack.c.l.b16 %v526
    %v1402 = vunpack.c.h.b16 %v526
    %v1403 = vunpack.c.l.b16 %v527
    %v1404 = vunpack.c.h.b16 %v527
    %v1405 = vunpack.c.l.b16 %v528
    %v1406 = vunpack.c.h.b16 %v528
    %v1407 = vunpack.c.l.b16 %v529
    %v1408 = vunpack.c.h.b16 %v529
    %v1409 = vunpack.c.l.b16 %v530
    %v1410 = vunpack.c.h.b16 %v530
    %v1411 = vunpack.c.l.b16 %v531
    %v1412 = vunpack.c.h.b16 %v531
    %v1413 = vunpack.c.l.b16 %v532
    %v1414 = vunpack.c.h.b16 %v532
    %v1415 = vunpack.c.l.b16 %v533
    %v1416 = vunpack.c.h.b16 %v533
    %v1417 = vunpack.c.l.b16 %v534
    %v1418 = vunpack.c.h.b16 %v534
    %v1419 = vunpack.c.l.b16 %v535
    %v1420 = vunpack.c.h.b16 %v535
    %v1421 = vunpack.c.l.b16 %v536
    %v1422 = vunpack.c.h.b16 %v536
    %v1423 = vunpack.c.l.b16 %v537
    %v1424 = vunpack.c.h.b16 %v537
    %v1425 = vunpack.c.l.b16 %v538
    %v1426 = vunpack.c.h.b16 %v538
    %v1427 = vunpack.c.l.b16 %v539
    %v1428 = vunpack.c.h.b16 %v539
    %v1429 = vunpack.c.l.b16 %v540
    %v1430 = vunpack.c.h.b16 %v540
    %v1431 = vunpack.c.l.b16 %v541
    %v1432 = vunpack.c.h.b16 %v541
    %v1433 = vunpack.c.l.b16 %v542
    %v1434 = vunpack.c.h.b16 %v542
    %v1435 = vunpack.c.l.b16 %v543
    %v1436 = vunpack.c.h.b16 %v543
    %v1437 = vunpack.c.l.b16 %v544
    %v1438 = vunpack.c.h.b16 %v544
    %v1439 = vunpack.c.l.b16 %v545
    %v1440 = vunpack.c.h.b16 %v545
    %v1441 = vunpack.c.l.b16 %v546
    %v1442 = vunpack.c.h.b16 %v546
    %v1443 = vunpack.c.l.b16 %v547
    %v1444 = vunpack.c.h.b16 %v547
    %v1445 = vunpack.c.l.b16 %v548
    %v1446 = vunpack.c.h.b16 %v548
    %v1447 = vunpack.c.l.b16 %v549
    %v1448 = vunpack.c.h.b16 %v549
    %v1449 = vunpack.c.l.b16 %v550
    %v1450 = vunpack.c.h.b16 %v550
    %v1451 = vunpack.c.l.b16 %v551
    %v1452 = vunpack.c.h.b16 %v551
    %v1453 = vunpack.c.l.b16 %v552
    %v1454 = vunpack.c.h.b16 %v552
    %v1455 = vunpack.c.l.b16 %v553
    %v1456 = vunpack.c.h.b16 %v553
    %v1457 = vunpack.c.l.b16 %v554
    %v1458 = vunpack.c.h.b16 %v554
    %v1459 = vunpack.c.l.b16 %v555
    %v1460 = vunpack.c.h.b16 %v555
    %v1461 = vunpack.c.l.b16 %v556
    %v1462 = vunpack.c.h.b16 %v556
    %v1463 = vpack.c.b16 %v895, %v887
    %v1464 = vpack.c.b16 %v896, %v888
    %v1465 = vpack.c.b16 %v897, %v889
    %v1466 = vpack.c.b16 %v898, %v890
    %v1467 = vpack.c.b16 %v899, %v891
    %v1468 = vpack.c.b16 %v900, %v892
    %v1469 = vpack.c.b16 %v901, %v893
    %v1470 = vpack.c.b16 %v902, %v894
    %v1471 = vpack.c.b16 %v911, %v903
    %v1472 = vpack.c.b16 %v912, %v904
    %v1473 = vpack.c.b16 %v913, %v905
    %v1474 = vpack.c.b16 %v914, %v906
    %v1475 = vpack.c.b16 %v915, %v907
    %v1476 = vpack.c.b16 %v916, %v908
    %v1477 = vpack.c.b16 %v917, %v909
    %v1478 = vpack.c.b16 %v918, %v910
    %v1479 = vpack.c.b16 %v927, %v919
    %v1480 = vpack.c.b16 %v928, %v920
    %v1481 = vpack.c.b16 %v929, %v921
    %v1482 = vpack.c.b16 %v930, %v922
    %v1483 = vpack.c.b16 %v931, %v923
    %v1484 = vpack.c.b16 %v932, %v924
    %v1485 = vpack.c.b16 %v933, %v925
    %v1486 = vpack.c.b16 %v934, %v926
    %v1487 = vpack.c.b16 %v943, %v935
    %v1488 = vpack.c.b16 %v944, %v936
    %v1489 = vpack.c.b16 %v945, %v937
    %v1490 = vpack.c.b16 %v946, %v938
    %v1491 = vpack.c.b16 %v947, %v939
    %v1492 = vpack.c.b16 %v948, %v940
    %v1493 = vpack.c.b16 %v949, %v941
    %v1494 = vpack.c.b16 %v950, %v942
    %v1495 = vpack.c.b16 %v959, %v951
    %v1496 = vpack.c.b16 %v960, %v952
    %v1497 = vpack.c.b16 %v961, %v953
    %v1498 = vpack.c.b16 %v962, %v954
    %v1499 = vpack.c.b16 %v963, %v955
    %v1500 = vpack.c.b16 %v964, %v956
    %v1501 = vpack.c.b16 %v965, %v957
    %v1502 = vpack.c.b16 %v966, %v958
    %v1503 = vpack.c.b16 %v975, %v967
    %v1504 = vpack.c.b16 %v976, %v968
    %v1505 = vpack.c.b16 %v977, %v969
    %v1506 = vpack.c.b16 %v978, %v970
    %v1507 = vpack.c.b16 %v979, %v971
    %v1508 = vpack.c.b16 %v980, %v972
    %v1509 = vpack.c.b16 %v981, %v973
    %v1510 = vpack.c.b16 %v982, %v974
    %v1511 = vpack.c.b16 %v991, %v983
    %v1512 = vpack.c.b16 %v992, %v984
    %v1513 = vpack.c.b16 %v993, %v985
    %v1514 = vpack.c.b16 %v994, %v986
    %v1515 = vpack.c.b16 %v995, %v987
    %v1516 = vpack.c.b16 %v996, %v988
    %v1517 = vpack.c.b16 %v997, %v989
    %v1518 = vpack.c.b16 %v998, %v990
    %v1519 = vpack.c.b16 %v1007, %v999
    %v1520 = vpack.c.b16 %v1008, %v1000
    %v1521 = vpack.c.b16 %v1009, %v1001
    %v1522 = vpack.c.b16 %v1010, %v1002
    %v1523 = vpack.c.b16 %v1011, %v1003
    %v1524 = vpack.c.b16 %v1012, %v1004
    %v1525 = vpack.c.b16 %v1013, %v1005
    %v1526 = vpack.c.b16 %v1014, %v1006
    %v1527 = vpack.c.b16 %v1023, %v1015
    %v1528 = vpack.c.b16 %v1024, %v1016
    %v1529 = vpack.c.b16 %v1025, %v1017
    %v1530 = vpack.c.b16 %v1026, %v1018
    %v1531 = vpack.c.b16 %v1027, %v1019
    %v1532 = vpack.c.b16 %v1028, %v1020
    %v1533 = vpack.c.b16 %v1029, %v1021
    %v1534 = vpack.c.b16 %v1030, %v1022
    %v1535 = vpack.c.b16 %v1039, %v1031
    %v1536 = vpack.c.b16 %v1040, %v1032
    %v1537 = vpack.c.b16 %v1041, %v1033
    %v1538 = vpack.c.b16 %v1042, %v1034
    %v1539 = vpack.c.b16 %v1043, %v1035
    %v1540 = vpack.c.b16 %v1044, %v1036
    %v1541 = vpack.c.b16 %v1045, %v1037
    %v1542 = vpack.c.b16 %v1046, %v1038
    %v1543 = vpack.c.b16 %v1055, %v1047
    %v1544 = vpack.c.b16 %v1056, %v1048
    %v1545 = vpack.c.b16 %v1057, %v1049
    %v1546 = vpack.c.b16 %v1058, %v1050
    %v1547 = vpack.c.b16 %v1059, %v1051
    %v1548 = vpack.c.b16 %v1060, %v1052
    %v1549 = vpack.c.b16 %v1061, %v1053
    %v1550 = vpack.c.b16 %v1062, %v1054
    %v1551 = vpack.c.b16 %v1071, %v1063
    %v1552 = vpack.c.b16 %v1072, %v1064
    %v1553 = vpack.c.b16 %v1073, %v1065
    %v1554 = vpack.c.b16 %v1074, %v1066
    %v1555 = vpack.c.b16 %v1075, %v1067
    %v1556 = vpack.c.b16 %v1076, %v1068
    %v1557 = vpack.c.b16 %v1077, %v1069
    %v1558 = vpack.c.b16 %v1078, %v1070
    %v1559 = vpack.c.b16 %v1087, %v1079
    %v1560 = vpack.c.b16 %v1088, %v1080
    %v1561 = vpack.c.b16 %v1089, %v1081
    %v1562 = vpack.c.b16 %v1090, %v1082
    %v1563 = vpack.c.b16 %v1091, %v1083
    %v1564 = vpack.c.b16 %v1092, %v1084
    %v1565 = vpack.c.b16 %v1093, %v1085
    %v1566 = vpack.c.b16 %v1094, %v1086
    %v1567 = vpack.c.b16 %v1103, %v1095
    %v1568 = vpack.c.b16 %v1104, %v1096
    %v1569 = vpack.c.b16 %v1105, %v1097
    %v1570 = vpack.c.b16 %v1106, %v1098
    %v1571 = vpack.c.b16 %v1107, %v1099
    %v1572 = vpack.c.b16 %v1108, %v1100
    %v1573 = vpack.c.b16 %v1109, %v1101
    %v1574 = vpack.c.b16 %v1110, %v1102
    %v1575 = vpack.c.b16 %v1119, %v1111
    %v1576 = vpack.c.b16 %v1120, %v1112
    %v1577 = vpack.c.b16 %v1121, %v1113
    %v1578 = vpack.c.b16 %v1122, %v1114
    %v1579 = vpack.c.b16 %v1123, %v1115
    %v1580 = vpack.c.b16 %v1124, %v1116
    %v1581 = vpack.c.b16 %v1125, %v1117
    %v1582 = vpack.c.b16 %v1126, %v1118
    %v1583 = vpack.c.b16 %v1135, %v1127
    %v1584 = vpack.c.b16 %v1136, %v1128
    %v1585 = vpack.c.b16 %v1137, %v1129
    %v1586 = vpack.c.b16 %v1138, %v1130
    %v1587 = vpack.c.b16 %v1139, %v1131
    %v1588 = vpack.c.b16 %v1140, %v1132
    %v1589 = vpack.c.b16 %v1141, %v1133
    %v1590 = vpack.c.b16 %v1142, %v1134
    %v1591 = vpack.c.b16 %v1151, %v1143
    %v1592 = vpack.c.b16 %v1152, %v1144
    %v1593 = vpack.c.b16 %v1153, %v1145
    %v1594 = vpack.c.b16 %v1154, %v1146
    %v1595 = vpack.c.b16 %v1155, %v1147
    %v1596 = vpack.c.b16 %v1156, %v1148
    %v1597 = vpack.c.b16 %v1157, %v1149
    %v1598 = vpack.c.b16 %v1158, %v1150
    %v1599 = vpack.c.b16 %v1167, %v1159
    %v1600 = vpack.c.b16 %v1168, %v1160
    %v1601 = vpack.c.b16 %v1169, %v1161
    %v1602 = vpack.c.b16 %v1170, %v1162
    %v1603 = vpack.c.b16 %v1171, %v1163
    %v1604 = vpack.c.b16 %v1172, %v1164
    %v1605 = vpack.c.b16 %v1173, %v1165
    %v1606 = vpack.c.b16 %v1174, %v1166
    %v1607 = vpack.c.b16 %v1183, %v1175
    %v1608 = vpack.c.b16 %v1184, %v1176
    %v1609 = vpack.c.b16 %v1185, %v1177
    %v1610 = vpack.c.b16 %v1186, %v1178
    %v1611 = vpack.c.b16 %v1187, %v1179
    %v1612 = vpack.c.b16 %v1188, %v1180
    %v1613 = vpack.c.b16 %v1189, %v1181
    %v1614 = vpack.c.b16 %v1190, %v1182
    %v1615 = vpack.c.b16 %v1199, %v1191
    %v1616 = vpack.c.b16 %v1200, %v1192
    %v1617 = vpack.c.b16 %v1201, %v1193
    %v1618 = vpack.c.b16 %v1202, %v1194
    %v1619 = vpack.c.b16 %v1203, %v1195
    %v1620 = vpack.c.b16 %v1204, %v1196
    %v1621 = vpack.c.b16 %v1205, %v1197
    %v1622 = vpack.c.b16 %v1206, %v1198
    %v1623 = vpack.c.b16 %v1215, %v1207
    %v1624 = vpack.c.b16 %v1216, %v1208
    %v1625 = vpack.c.b16 %v1217, %v1209
    %v1626 = vpack.c.b16 %v1218, %v1210
    %v1627 = vpack.c.b16 %v1219, %v1211
    %v1628 = vpack.c.b16 %v1220, %v1212
    %v1629 = vpack.c.b16 %v1221, %v1213
    %v1630 = vpack.c.b16 %v1222, %v1214
    %v1631 = vpack.c.b16 %v1231, %v1223
    %v1632 = vpack.c.b16 %v1232, %v1224
    %v1633 = vpack.c.b16 %v1233, %v1225
    %v1634 = vpack.c.b16 %v1234, %v1226
    %v1635 = vpack.c.b16 %v1235, %v1227
    %v1636 = vpack.c.b16 %v1236, %v1228
    %v1637 = vpack.c.b16 %v1237, %v1229
    %v1638 = vpack.c.b16 %v1238, %v1230
    %v1639 = vpack.c.b16 %v1247, %v1239
    %v1640 = vpack.c.b16 %v1248, %v1240
    %v1641 = vpack.c.b16 %v1249, %v1241
    %v1642 = vpack.c.b16 %v1250, %v1242
    %v1643 = vpack.c.b16 %v1251, %v1243
    %v1644 = vpack.c.b16 %v1252, %v1244
    %v1645 = vpack.c.b16 %v1253, %v1245
    %v1646 = vpack.c.b16 %v1254, %v1246
    %v1647 = vpack.c.b16 %v1263, %v1255
    %v1648 = vpack.c.b16 %v1264, %v1256
    %v1649 = vpack.c.b16 %v1265, %v1257
    %v1650 = vpack.c.b16 %v1266, %v1258
    %v1651 = vpack.c.b16 %v1267, %v1259
    %v1652 = vpack.c.b16 %v1268, %v1260
    %v1653 = vpack.c.b16 %v1269, %v1261
    %v1654 = vpack.c.b16 %v1270, %v1262
    %v1655 = vpack.c.b16 %v1279, %v1271
    %v1656 = vpack.c.b16 %v1280, %v1272
    %v1657 = vpack.c.b16 %v1281, %v1273
    %v1658 = vpack.c.b16 %v1282, %v1274
    %v1659 = vpack.c.b16 %v1283, %v1275
    %v1660 = vpack.c.b16 %v1284, %v1276
    %v1661 = vpack.c.b16 %v1285, %v1277
    %v1662 = vpack.c.b16 %v1286, %v1278
    %v1663 = vpack.c.b16 %v1295, %v1287
    %v1664 = vpack.c.b16 %v1296, %v1288
    %v1665 = vpack.c.b16 %v1297, %v1289
    %v1666 = vpack.c.b16 %v1298, %v1290
    %v1667 = vpack.c.b16 %v1299, %v1291
    %v1668 = vpack.c.b16 %v1300, %v1292
    %v1669 = vpack.c.b16 %v1301, %v1293
    %v1670 = vpack.c.b16 %v1302, %v1294
    %v1671 = vpack.c.b16 %v1311, %v1303
    %v1672 = vpack.c.b16 %v1312, %v1304
    %v1673 = vpack.c.b16 %v1313, %v1305
    %v1674 = vpack.c.b16 %v1314, %v1306
    %v1675 = vpack.c.b16 %v1315, %v1307
    %v1676 = vpack.c.b16 %v1316, %v1308
    %v1677 = vpack.c.b16 %v1317, %v1309
    %v1678 = vpack.c.b16 %v1318, %v1310
    %v1679 = vpack.c.b16 %v1327, %v1319
    %v1680 = vpack.c.b16 %v1328, %v1320
    %v1681 = vpack.c.b16 %v1329, %v1321
    %v1682 = vpack.c.b16 %v1330, %v1322
    %v1683 = vpack.c.b16 %v1331, %v1323
    %v1684 = vpack.c.b16 %v1332, %v1324
    %v1685 = vpack.c.b16 %v1333, %v1325
    %v1686 = vpack.c.b16 %v1334, %v1326
    %v1687 = vpack.c.b16 %v1343, %v1335
    %v1688 = vpack.c.b16 %v1344, %v1336
    %v1689 = vpack.c.b16 %v1345, %v1337
    %v1690 = vpack.c.b16 %v1346, %v1338
    %v1691 = vpack.c.b16 %v1347, %v1339
    %v1692 = vpack.c.b16 %v1348, %v1340
    %v1693 = vpack.c.b16 %v1349, %v1341
    %v1694 = vpack.c.b16 %v1350, %v1342
    %v1695 = vpack.c.b16 %v1359, %v1351
    %v1696 = vpack.c.b16 %v1360, %v1352
    %v1697 = vpack.c.b16 %v1361, %v1353
    %v1698 = vpack.c.b16 %v1362, %v1354
    %v1699 = vpack.c.b16 %v1363, %v1355
    %v1700 = vpack.c.b16 %v1364, %v1356
    %v1701 = vpack.c.b16 %v1365, %v1357
    %v1702 = vpack.c.b16 %v1366, %v1358
    %v1703 = vpack.c.b16 %v1375, %v1367
    %v1704 = vpack.c.b16 %v1376, %v1368
    %v1705 = vpack.c.b16 %v1377, %v1369
    %v1706 = vpack.c.b16 %v1378, %v1370
    %v1707 = vpack.c.b16 %v1379, %v1371
    %v1708 = vpack.c.b16 %v1380, %v1372
    %v1709 = vpack.c.b16 %v1381, %v1373
    %v1710 = vpack.c.b16 %v1382, %v1374
    %v1711 = vpack.c.b16 %v1391, %v1383
    %v1712 = vpack.c.b16 %v1392, %v1384
    %v1713 = vpack.c.b16 %v1393, %v1385
    %v1714 = vpack.c.b16 %v1394, %v1386
    %v1715 = vpack.c.b16 %v1395, %v1387
    %v1716 = vpack.c.b16 %v1396, %v1388
    %v1717 = vpack.c.b16 %v1397, %v1389
    %v1718 = vpack.c.b16 %v1398, %v1390
    %v1719 = vpack.c.b16 %v1407, %v1399
    %v1720 = vpack.c.b16 %v1408, %v1400
    %v1721 = vpack.c.b16 %v1409, %v1401
    %v1722 = vpack.c.b16 %v1410, %v1402
    %v1723 = vpack.c.b16 %v1411, %v1403
    %v1724 = vpack.c.b16 %v1412, %v1404
    %v1725 = vpack.c.b16 %v1413, %v1405
    %v1726 = vpack.c.b16 %v1414, %v1406
    %v1727 = vpack.c.b16 %v1423, %v1415
    %v1728 = vpack.c.b16 %v1424, %v1416
    %v1729 = vpack.c.b16 %v1425, %v1417
    %v1730 = vpack.c.b16 %v1426, %v1418
    %v1731 = vpack.c.b16 %v1427, %v1419
    %v1732 = vpack.c.b16 %v1428, %v1420
    %v1733 = vpack.c.b16 %v1429, %v1421
    %v1734 = vpack.c.b16 %v1430, %v1422
    %v1735 = vpack.c.b16 %v1439, %v1431
    %v1736 = vpack.c.b16 %v1440, %v1432
    %v1737 = vpack.c.b16 %v1441, %v1433
    %v1738 = vpack.c.b16 %v1442, %v1434
    %v1739 = vpack.c.b16 %v1443, %v1435
    %v1740 = vpack.c.b16 %v1444, %v1436
    %v1741 = vpack.c.b16 %v1445, %v1437
    %v1742 = vpack.c.b16 %v1446, %v1438
    %v1743 = vpack.c.b16 %v1455, %v1447
    %v1744 = vpack.c.b16 %v1456, %v1448
    %v1745 = vpack.c.b16 %v1457, %v1449
    %v1746 = vpack.c.b16 %v1458, %v1450
    %v1747 = vpack.c.b16 %v1459, %v1451
    %v1748 = vpack.c.b16 %v1460, %v1452
    %v1749 = vpack.c.b16 %v1461, %v1453
    %v1750 = vpack.c.b16 %v1462, %v1454
    %vm2039 = vcmask 523264
    %v2041 = vsel %vm2039, %v268, 0
    %2043 = vmatprep.subr.bf16.mxu0 %v1464
    %2044 = vmatpush1.bf16.msra.mxu0 %v1463
    %2045 = vmatprep.subr.bf16.mxu0 %v1472
    %2046 = vmatpush1.bf16.msra.mxu0 %v1471
    %2047 = vmatprep.subr.bf16.mxu0 %v1480
    %2048 = vmatpush1.bf16.msra.mxu0 %v1479
    %2049 = vmatprep.subr.bf16.mxu0 %v1488
    %2050 = vmatpush1.bf16.msra.mxu0 %v1487
    %2051 = vmatprep.subr.bf16.mxu0 %v1496
    %2052 = vmatpush1.bf16.msra.mxu0 %v1495
    %2053 = vmatprep.subr.bf16.mxu0 %v1504
    %2054 = vmatpush1.bf16.msra.mxu0 %v1503
    %2055 = vmatprep.subr.bf16.mxu0 %v1512
    %2056 = vmatpush1.bf16.msra.mxu0 %v1511
    %2057 = vmatprep.subr.bf16.mxu0 %v1520
    %2058 = vmatpush1.bf16.msra.mxu0 %v1519
    %2059 = vmatprep.subr.bf16.mxu0 %v1528
    %2060 = vmatpush1.bf16.msra.mxu0 %v1527
    %2061 = vmatprep.subr.bf16.mxu0 %v1536
    %2062 = vmatpush1.bf16.msra.mxu0 %v1535
    %2063 = vmatprep.subr.bf16.mxu0 %v1544
    %2064 = vmatpush1.bf16.msra.mxu0 %v1543
    %2065 = vmatprep.subr.bf16.mxu0 %v1552
    %2066 = vmatpush1.bf16.msra.mxu0 %v1551
    %2067 = vmatprep.subr.bf16.mxu0 %v1560
    %2068 = vmatpush1.bf16.msra.mxu0 %v1559
    %2069 = vmatprep.subr.bf16.mxu0 %v1568
    %2070 = vmatpush1.bf16.msra.mxu0 %v1567
    %2071 = vmatprep.subr.bf16.mxu0 %v1576
    %2072 = vmatpush1.bf16.msra.mxu0 %v1575
    %2073 = vmatprep.subr.bf16.mxu0 %v1584
    %2074 = vmatpush1.bf16.msra.mxu0 %v1583
    %2075 = vmatprep.mubr.bf16.mxu0 %v265
    %2076 = vmatmul.mubr.bf16.gmra.mrb[0].mxu0 %v264
    %v2077 = vpop.f32.mrb[0].mxu0
    %v2078 = vadd.f32 %v562, %v2077
    %v2079 = vpop.f32.mrb[0].mxu0
    %v2080 = vadd.f32 %v566, %v2079
    %v2081 = vpop.f32.mrb[0].mxu0
    %v2082 = vadd.f32 %v562, %v2081
    %v2083 = vpop.f32.mrb[0].mxu0
    %v2084 = vadd.f32 %v566, %v2083
    %2085 = vdwg.mxu0
    %2086 = vmatprep.subr.bf16.mxu0 %v1592
    %2087 = vmatpush1.bf16.msra.mxu0 %v1591
    %2088 = vmatprep.subr.bf16.mxu0 %v1600
    %2089 = vmatpush1.bf16.msra.mxu0 %v1599
    %2090 = vmatprep.subr.bf16.mxu0 %v1608
    %2091 = vmatpush1.bf16.msra.mxu0 %v1607
    %2092 = vmatprep.subr.bf16.mxu0 %v1616
    %2093 = vmatpush1.bf16.msra.mxu0 %v1615
    %2094 = vmatprep.subr.bf16.mxu0 %v1624
    %2095 = vmatpush1.bf16.msra.mxu0 %v1623
    %2096 = vmatprep.subr.bf16.mxu0 %v1632
    %2097 = vmatpush1.bf16.msra.mxu0 %v1631
    %2098 = vmatprep.subr.bf16.mxu0 %v1640
    %2099 = vmatpush1.bf16.msra.mxu0 %v1639
    %2100 = vmatprep.subr.bf16.mxu0 %v1648
    %2101 = vmatpush1.bf16.msra.mxu0 %v1647
    %2102 = vmatprep.subr.bf16.mxu0 %v1656
    %2103 = vmatpush1.bf16.msra.mxu0 %v1655
    %2104 = vmatprep.subr.bf16.mxu0 %v1664
    %2105 = vmatpush1.bf16.msra.mxu0 %v1663
    %2106 = vmatprep.subr.bf16.mxu0 %v1672
    %2107 = vmatpush1.bf16.msra.mxu0 %v1671
    %2108 = vmatprep.subr.bf16.mxu0 %v1680
    %2109 = vmatpush1.bf16.msra.mxu0 %v1679
    %2110 = vmatprep.subr.bf16.mxu0 %v1688
    %2111 = vmatpush1.bf16.msra.mxu0 %v1687
    %2112 = vmatprep.subr.bf16.mxu0 %v1696
    %2113 = vmatpush1.bf16.msra.mxu0 %v1695
    %2114 = vmatprep.subr.bf16.mxu0 %v1704
    %2115 = vmatpush1.bf16.msra.mxu0 %v1703
    %2116 = vmatprep.subr.bf16.mxu0 %v1712
    %2117 = vmatpush1.bf16.msra.mxu0 %v1711
    %2118 = vmatprep.mubr.bf16.mxu0 %v267
    %2119 = vmatmul.mubr.bf16.gmra.mrb[0].mxu0 %v266
    %v2120 = vpop.f32.mrb[0].mxu0
    %v2121 = vadd.f32 %v2078, %v2120
    %v2122 = vpop.f32.mrb[0].mxu0
    %v2123 = vadd.f32 %v2080, %v2122
    %v2124 = vpop.f32.mrb[0].mxu0
    %v2125 = vadd.f32 %v2082, %v2124
    %v2126 = vpop.f32.mrb[0].mxu0
    %v2127 = vadd.f32 %v2084, %v2126
    %2128 = vdwg.mxu0
    %2129 = vmatprep.subr.bf16.mxu0 %v1720
    %2130 = vmatpush1.bf16.msra.mxu0 %v1719
    %2131 = vmatprep.subr.bf16.mxu0 %v1728
    %2132 = vmatpush1.bf16.msra.mxu0 %v1727
    %2133 = vmatprep.subr.bf16.mxu0 %v1736
    %2134 = vmatpush1.bf16.msra.mxu0 %v1735
    %2135 = vmatprep.subr.bf16.mxu0 %v1744
    %2136 = vmatpush1.bf16.msra.mxu0 %v1743
    %2137 = vmatprep.subr.bf16.mxu0 0
    %2138 = vmatpush1.bf16.msra.mxu0 0
    %2139 = vmatprep.subr.bf16.mxu0 0
    %2140 = vmatpush1.bf16.msra.mxu0 0
    %2141 = vmatprep.subr.bf16.mxu0 0
    %2142 = vmatpush1.bf16.msra.mxu0 0
    %2143 = vmatprep.subr.bf16.mxu0 0
    %2144 = vmatpush1.bf16.msra.mxu0 0
    %2145 = vmatprep.subr.bf16.mxu0 0
    %2146 = vmatpush1.bf16.msra.mxu0 0
    %2147 = vmatprep.subr.bf16.mxu0 0
    %2148 = vmatpush1.bf16.msra.mxu0 0
    %2149 = vmatprep.subr.bf16.mxu0 0
    %2150 = vmatpush1.bf16.msra.mxu0 0
    %2151 = vmatprep.subr.bf16.mxu0 0
    %2152 = vmatpush1.bf16.msra.mxu0 0
    %2153 = vmatprep.subr.bf16.mxu0 0
    %2154 = vmatpush1.bf16.msra.mxu0 0
    %2155 = vmatprep.subr.bf16.mxu0 0
    %2156 = vmatpush1.bf16.msra.mxu0 0
    %2157 = vmatprep.subr.bf16.mxu0 0
    %2158 = vmatpush1.bf16.msra.mxu0 0
    %2159 = vmatprep.subr.bf16.mxu0 0
    %2160 = vmatpush1.bf16.msra.mxu0 0
    %2161 = vmatprep.mubr.bf16.mxu0 0
    %2162 = vmatmul.mubr.bf16.gmra.mrb[0].mxu0 %v2041
    %v2163 = vpop.f32.mrb[0].mxu0
    %v2164 = vadd.f32 %v2121, %v2163
    %v2165 = vpop.f32.mrb[0].mxu0
    %v2166 = vadd.f32 %v2123, %v2165
    %v2167 = vpop.f32.mrb[0].mxu0
    %v2168 = vadd.f32 %v2125, %v2167
    %v2169 = vpop.f32.mrb[0].mxu0
    %v2170 = vadd.f32 %v2127, %v2169
    %2171 = vdwg.mxu0
    %2172 = vmatprep.subr.bf16.mxu0 %v1466
    %2173 = vmatpush1.bf16.msra.mxu0 %v1465
    %2174 = vmatprep.subr.bf16.mxu0 %v1474
    %2175 = vmatpush1.bf16.msra.mxu0 %v1473
    %2176 = vmatprep.subr.bf16.mxu0 %v1482
    %2177 = vmatpush1.bf16.msra.mxu0 %v1481
    %2178 = vmatprep.subr.bf16.mxu0 %v1490
    %2179 = vmatpush1.bf16.msra.mxu0 %v1489
    %2180 = vmatprep.subr.bf16.mxu0 %v1498
    %2181 = vmatpush1.bf16.msra.mxu0 %v1497
    %2182 = vmatprep.subr.bf16.mxu0 %v1506
    %2183 = vmatpush1.bf16.msra.mxu0 %v1505
    %2184 = vmatprep.subr.bf16.mxu0 %v1514
    %2185 = vmatpush1.bf16.msra.mxu0 %v1513
    %2186 = vmatprep.subr.bf16.mxu0 %v1522
    %2187 = vmatpush1.bf16.msra.mxu0 %v1521
    %2188 = vmatprep.subr.bf16.mxu0 %v1530
    %2189 = vmatpush1.bf16.msra.mxu0 %v1529
    %2190 = vmatprep.subr.bf16.mxu0 %v1538
    %2191 = vmatpush1.bf16.msra.mxu0 %v1537
    %2192 = vmatprep.subr.bf16.mxu0 %v1546
    %2193 = vmatpush1.bf16.msra.mxu0 %v1545
    %2194 = vmatprep.subr.bf16.mxu0 %v1554
    %2195 = vmatpush1.bf16.msra.mxu0 %v1553
    %2196 = vmatprep.subr.bf16.mxu0 %v1562
    %2197 = vmatpush1.bf16.msra.mxu0 %v1561
    %2198 = vmatprep.subr.bf16.mxu0 %v1570
    %2199 = vmatpush1.bf16.msra.mxu0 %v1569
    %2200 = vmatprep.subr.bf16.mxu0 %v1578
    %2201 = vmatpush1.bf16.msra.mxu0 %v1577
    %2202 = vmatprep.subr.bf16.mxu0 %v1586
    %2203 = vmatpush1.bf16.msra.mxu0 %v1585
    %2204 = vmatprep.mubr.bf16.mxu0 %v265
    %2205 = vmatmul.mubr.bf16.gmra.mrb[0].mxu0 %v264
    %v2206 = vpop.f32.mrb[0].mxu0
    %v2207 = vadd.f32 %v570, %v2206
    %v2208 = vpop.f32.mrb[0].mxu0
    %v2209 = vadd.f32 %v574, %v2208
    %v2210 = vpop.f32.mrb[0].mxu0
    %v2211 = vadd.f32 %v570, %v2210
    %v2212 = vpop.f32.mrb[0].mxu0
    %v2213 = vadd.f32 %v574, %v2212
    %2214 = vdwg.mxu0
    %2215 = vmatprep.subr.bf16.mxu0 %v1594
    %2216 = vmatpush1.bf16.msra.mxu0 %v1593
    %2217 = vmatprep.subr.bf16.mxu0 %v1602
    %2218 = vmatpush1.bf16.msra.mxu0 %v1601
    %2219 = vmatprep.subr.bf16.mxu0 %v1610
    %2220 = vmatpush1.bf16.msra.mxu0 %v1609
    %2221 = vmatprep.subr.bf16.mxu0 %v1618
    %2222 = vmatpush1.bf16.msra.mxu0 %v1617
    %2223 = vmatprep.subr.bf16.mxu0 %v1626
    %2224 = vmatpush1.bf16.msra.mxu0 %v1625
    %2225 = vmatprep.subr.bf16.mxu0 %v1634
    %2226 = vmatpush1.bf16.msra.mxu0 %v1633
    %2227 = vmatprep.subr.bf16.mxu0 %v1642
    %2228 = vmatpush1.bf16.msra.mxu0 %v1641
    %2229 = vmatprep.subr.bf16.mxu0 %v1650
    %2230 = vmatpush1.bf16.msra.mxu0 %v1649
    %2231 = vmatprep.subr.bf16.mxu0 %v1658
    %2232 = vmatpush1.bf16.msra.mxu0 %v1657
    %2233 = vmatprep.subr.bf16.mxu0 %v1666
    %2234 = vmatpush1.bf16.msra.mxu0 %v1665
    %2235 = vmatprep.subr.bf16.mxu0 %v1674
    %2236 = vmatpush1.bf16.msra.mxu0 %v1673
    %2237 = vmatprep.subr.bf16.mxu0 %v1682
    %2238 = vmatpush1.bf16.msra.mxu0 %v1681
    %2239 = vmatprep.subr.bf16.mxu0 %v1690
    %2240 = vmatpush1.bf16.msra.mxu0 %v1689
    %2241 = vmatprep.subr.bf16.mxu0 %v1698
    %2242 = vmatpush1.bf16.msra.mxu0 %v1697
    %2243 = vmatprep.subr.bf16.mxu0 %v1706
    %2244 = vmatpush1.bf16.msra.mxu0 %v1705
    %2245 = vmatprep.subr.bf16.mxu0 %v1714
    %2246 = vmatpush1.bf16.msra.mxu0 %v1713
    %2247 = vmatprep.mubr.bf16.mxu0 %v267
    %2248 = vmatmul.mubr.bf16.gmra.mrb[0].mxu0 %v266
    %v2249 = vpop.f32.mrb[0].mxu0
    %v2250 = vadd.f32 %v2207, %v2249
    %v2251 = vpop.f32.mrb[0].mxu0
    %v2252 = vadd.f32 %v2209, %v2251
    %v2253 = vpop.f32.mrb[0].mxu0
    %v2254 = vadd.f32 %v2211, %v2253
    %v2255 = vpop.f32.mrb[0].mxu0
    %v2256 = vadd.f32 %v2213, %v2255
    %2257 = vdwg.mxu0
    %2258 = vmatprep.subr.bf16.mxu0 %v1722
    %2259 = vmatpush1.bf16.msra.mxu0 %v1721
    %2260 = vmatprep.subr.bf16.mxu0 %v1730
    %2261 = vmatpush1.bf16.msra.mxu0 %v1729
    %2262 = vmatprep.subr.bf16.mxu0 %v1738
    %2263 = vmatpush1.bf16.msra.mxu0 %v1737
    %2264 = vmatprep.subr.bf16.mxu0 %v1746
    %2265 = vmatpush1.bf16.msra.mxu0 %v1745
    %2266 = vmatprep.subr.bf16.mxu0 0
    %2267 = vmatpush1.bf16.msra.mxu0 0
    %2268 = vmatprep.subr.bf16.mxu0 0
    %2269 = vmatpush1.bf16.msra.mxu0 0
    %2270 = vmatprep.subr.bf16.mxu0 0
    %2271 = vmatpush1.bf16.msra.mxu0 0
    %2272 = vmatprep.subr.bf16.mxu0 0
    %2273 = vmatpush1.bf16.msra.mxu0 0
    %2274 = vmatprep.subr.bf16.mxu0 0
    %2275 = vmatpush1.bf16.msra.mxu0 0
    %2276 = vmatprep.subr.bf16.mxu0 0
    %2277 = vmatpush1.bf16.msra.mxu0 0
    %2278 = vmatprep.subr.bf16.mxu0 0
    %2279 = vmatpush1.bf16.msra.mxu0 0
    %2280 = vmatprep.subr.bf16.mxu0 0
    %2281 = vmatpush1.bf16.msra.mxu0 0
    %2282 = vmatprep.subr.bf16.mxu0 0
    %2283 = vmatpush1.bf16.msra.mxu0 0
    %2284 = vmatprep.subr.bf16.mxu0 0
    %2285 = vmatpush1.bf16.msra.mxu0 0
    %2286 = vmatprep.subr.bf16.mxu0 0
    %2287 = vmatpush1.bf16.msra.mxu0 0
    %2288 = vmatprep.subr.bf16.mxu0 0
    %2289 = vmatpush1.bf16.msra.mxu0 0
    %2290 = vmatprep.mubr.bf16.mxu0 0
    %2291 = vmatmul.mubr.bf16.gmra.mrb[0].mxu0 %v2041
    %v2292 = vpop.f32.mrb[0].mxu0
    %v2293 = vadd.f32 %v2250, %v2292
    %v2294 = vpop.f32.mrb[0].mxu0
    %v2295 = vadd.f32 %v2252, %v2294
    %v2296 = vpop.f32.mrb[0].mxu0
    %v2297 = vadd.f32 %v2254, %v2296
    %v2298 = vpop.f32.mrb[0].mxu0
    %v2299 = vadd.f32 %v2256, %v2298
    %2300 = vdwg.mxu0
    %2301 = vmatprep.subr.bf16.mxu0 %v1468
    %2302 = vmatpush1.bf16.msra.mxu0 %v1467
    %2303 = vmatprep.subr.bf16.mxu0 %v1476
    %2304 = vmatpush1.bf16.msra.mxu0 %v1475
    %2305 = vmatprep.subr.bf16.mxu0 %v1484
    %2306 = vmatpush1.bf16.msra.mxu0 %v1483
    %2307 = vmatprep.subr.bf16.mxu0 %v1492
    %2308 = vmatpush1.bf16.msra.mxu0 %v1491
    %2309 = vmatprep.subr.bf16.mxu0 %v1500
    %2310 = vmatpush1.bf16.msra.mxu0 %v1499
    %2311 = vmatprep.subr.bf16.mxu0 %v1508
    %2312 = vmatpush1.bf16.msra.mxu0 %v1507
    %2313 = vmatprep.subr.bf16.mxu0 %v1516
    %2314 = vmatpush1.bf16.msra.mxu0 %v1515
    %2315 = vmatprep.subr.bf16.mxu0 %v1524
    %2316 = vmatpush1.bf16.msra.mxu0 %v1523
    %2317 = vmatprep.subr.bf16.mxu0 %v1532
    %2318 = vmatpush1.bf16.msra.mxu0 %v1531
    %2319 = vmatprep.subr.bf16.mxu0 %v1540
    %2320 = vmatpush1.bf16.msra.mxu0 %v1539
    %2321 = vmatprep.subr.bf16.mxu0 %v1548
    %2322 = vmatpush1.bf16.msra.mxu0 %v1547
    %2323 = vmatprep.subr.bf16.mxu0 %v1556
    %2324 = vmatpush1.bf16.msra.mxu0 %v1555
    %2325 = vmatprep.subr.bf16.mxu0 %v1564
    %2326 = vmatpush1.bf16.msra.mxu0 %v1563
    %2327 = vmatprep.subr.bf16.mxu0 %v1572
    %2328 = vmatpush1.bf16.msra.mxu0 %v1571
    %2329 = vmatprep.subr.bf16.mxu0 %v1580
    %2330 = vmatpush1.bf16.msra.mxu0 %v1579
    %2331 = vmatprep.subr.bf16.mxu0 %v1588
    %2332 = vmatpush1.bf16.msra.mxu0 %v1587
    %2333 = vmatprep.mubr.bf16.mxu0 %v265
    %2334 = vmatmul.mubr.bf16.gmra.mrb[0].mxu0 %v264
    %v2335 = vpop.f32.mrb[0].mxu0
    %v2336 = vadd.f32 %v578, %v2335
    %v2337 = vpop.f32.mrb[0].mxu0
    %v2338 = vadd.f32 %v582, %v2337
    %v2339 = vpop.f32.mrb[0].mxu0
    %v2340 = vadd.f32 %v578, %v2339
    %v2341 = vpop.f32.mrb[0].mxu0
    %v2342 = vadd.f32 %v582, %v2341
    %2343 = vdwg.mxu0
    %2344 = vmatprep.subr.bf16.mxu0 %v1596
    %2345 = vmatpush1.bf16.msra.mxu0 %v1595
    %2346 = vmatprep.subr.bf16.mxu0 %v1604
    %2347 = vmatpush1.bf16.msra.mxu0 %v1603
    %2348 = vmatprep.subr.bf16.mxu0 %v1612
    %2349 = vmatpush1.bf16.msra.mxu0 %v1611
    %2350 = vmatprep.subr.bf16.mxu0 %v1620
    %2351 = vmatpush1.bf16.msra.mxu0 %v1619
    %2352 = vmatprep.subr.bf16.mxu0 %v1628
    %2353 = vmatpush1.bf16.msra.mxu0 %v1627
    %2354 = vmatprep.subr.bf16.mxu0 %v1636
    %2355 = vmatpush1.bf16.msra.mxu0 %v1635
    %2356 = vmatprep.subr.bf16.mxu0 %v1644
    %2357 = vmatpush1.bf16.msra.mxu0 %v1643
    %2358 = vmatprep.subr.bf16.mxu0 %v1652
    %2359 = vmatpush1.bf16.msra.mxu0 %v1651
    %2360 = vmatprep.subr.bf16.mxu0 %v1660
    %2361 = vmatpush1.bf16.msra.mxu0 %v1659
    %2362 = vmatprep.subr.bf16.mxu0 %v1668
    %2363 = vmatpush1.bf16.msra.mxu0 %v1667
    %2364 = vmatprep.subr.bf16.mxu0 %v1676
    %2365 = vmatpush1.bf16.msra.mxu0 %v1675
    %2366 = vmatprep.subr.bf16.mxu0 %v1684
    %2367 = vmatpush1.bf16.msra.mxu0 %v1683
    %2368 = vmatprep.subr.bf16.mxu0 %v1692
    %2369 = vmatpush1.bf16.msra.mxu0 %v1691
    %2370 = vmatprep.subr.bf16.mxu0 %v1700
    %2371 = vmatpush1.bf16.msra.mxu0 %v1699
    %2372 = vmatprep.subr.bf16.mxu0 %v1708
    %2373 = vmatpush1.bf16.msra.mxu0 %v1707
    %2374 = vmatprep.subr.bf16.mxu0 %v1716
    %2375 = vmatpush1.bf16.msra.mxu0 %v1715
    %2376 = vmatprep.mubr.bf16.mxu0 %v267
    %2377 = vmatmul.mubr.bf16.gmra.mrb[0].mxu0 %v266
    %v2378 = vpop.f32.mrb[0].mxu0
    %v2379 = vadd.f32 %v2336, %v2378
    %v2380 = vpop.f32.mrb[0].mxu0
    %v2381 = vadd.f32 %v2338, %v2380
    %v2382 = vpop.f32.mrb[0].mxu0
    %v2383 = vadd.f32 %v2340, %v2382
    %v2384 = vpop.f32.mrb[0].mxu0
    %v2385 = vadd.f32 %v2342, %v2384
    %2386 = vdwg.mxu0
    %2387 = vmatprep.subr.bf16.mxu0 %v1724
    %2388 = vmatpush1.bf16.msra.mxu0 %v1723
    %2389 = vmatprep.subr.bf16.mxu0 %v1732
    %2390 = vmatpush1.bf16.msra.mxu0 %v1731
    %2391 = vmatprep.subr.bf16.mxu0 %v1740
    %2392 = vmatpush1.bf16.msra.mxu0 %v1739
    %2393 = vmatprep.subr.bf16.mxu0 %v1748
    %2394 = vmatpush1.bf16.msra.mxu0 %v1747
    %2395 = vmatprep.subr.bf16.mxu0 0
    %2396 = vmatpush1.bf16.msra.mxu0 0
    %2397 = vmatprep.subr.bf16.mxu0 0
    %2398 = vmatpush1.bf16.msra.mxu0 0
    %2399 = vmatprep.subr.bf16.mxu0 0
    %2400 = vmatpush1.bf16.msra.mxu0 0
    %2401 = vmatprep.subr.bf16.mxu0 0
    %2402 = vmatpush1.bf16.msra.mxu0 0
    %2403 = vmatprep.subr.bf16.mxu0 0
    %2404 = vmatpush1.bf16.msra.mxu0 0
    %2405 = vmatprep.subr.bf16.mxu0 0
    %2406 = vmatpush1.bf16.msra.mxu0 0
    %2407 = vmatprep.subr.bf16.mxu0 0
    %2408 = vmatpush1.bf16.msra.mxu0 0
    %2409 = vmatprep.subr.bf16.mxu0 0
    %2410 = vmatpush1.bf16.msra.mxu0 0
    %2411 = vmatprep.subr.bf16.mxu0 0
    %2412 = vmatpush1.bf16.msra.mxu0 0
    %2413 = vmatprep.subr.bf16.mxu0 0
    %2414 = vmatpush1.bf16.msra.mxu0 0
    %2415 = vmatprep.subr.bf16.mxu0 0
    %2416 = vmatpush1.bf16.msra.mxu0 0
    %2417 = vmatprep.subr.bf16.mxu0 0
    %2418 = vmatpush1.bf16.msra.mxu0 0
    %2419 = vmatprep.mubr.bf16.mxu0 0
    %2420 = vmatmul.mubr.bf16.gmra.mrb[0].mxu0 %v2041
    %v2421 = vpop.f32.mrb[0].mxu0
    %v2422 = vadd.f32 %v2379, %v2421
    %v2423 = vpop.f32.mrb[0].mxu0
    %v2424 = vadd.f32 %v2381, %v2423
    %v2425 = vpop.f32.mrb[0].mxu0
    %v2426 = vadd.f32 %v2383, %v2425
    %v2427 = vpop.f32.mrb[0].mxu0
    %v2428 = vadd.f32 %v2385, %v2427
    %2429 = vdwg.mxu0
    %2430 = vmatprep.subr.bf16.mxu0 %v1470
    %2431 = vmatpush1.bf16.msra.mxu0 %v1469
    %2432 = vmatprep.subr.bf16.mxu0 %v1478
    %2433 = vmatpush1.bf16.msra.mxu0 %v1477
    %2434 = vmatprep.subr.bf16.mxu0 %v1486
    %2435 = vmatpush1.bf16.msra.mxu0 %v1485
    %2436 = vmatprep.subr.bf16.mxu0 %v1494
    %2437 = vmatpush1.bf16.msra.mxu0 %v1493
    %2438 = vmatprep.subr.bf16.mxu0 %v1502
    %2439 = vmatpush1.bf16.msra.mxu0 %v1501
    %2440 = vmatprep.subr.bf16.mxu0 %v1510
    %2441 = vmatpush1.bf16.msra.mxu0 %v1509
    %2442 = vmatprep.subr.bf16.mxu0 %v1518
    %2443 = vmatpush1.bf16.msra.mxu0 %v1517
    %2444 = vmatprep.subr.bf16.mxu0 %v1526
    %2445 = vmatpush1.bf16.msra.mxu0 %v1525
    %2446 = vmatprep.subr.bf16.mxu0 %v1534
    %2447 = vmatpush1.bf16.msra.mxu0 %v1533
    %2448 = vmatprep.subr.bf16.mxu0 %v1542
    %2449 = vmatpush1.bf16.msra.mxu0 %v1541
    %2450 = vmatprep.subr.bf16.mxu0 %v1550
    %2451 = vmatpush1.bf16.msra.mxu0 %v1549
    %2452 = vmatprep.subr.bf16.mxu0 %v1558
    %2453 = vmatpush1.bf16.msra.mxu0 %v1557
    %2454 = vmatprep.subr.bf16.mxu0 %v1566
    %2455 = vmatpush1.bf16.msra.mxu0 %v1565
    %2456 = vmatprep.subr.bf16.mxu0 %v1574
    %2457 = vmatpush1.bf16.msra.mxu0 %v1573
    %2458 = vmatprep.subr.bf16.mxu0 %v1582
    %2459 = vmatpush1.bf16.msra.mxu0 %v1581
    %2460 = vmatprep.subr.bf16.mxu0 %v1590
    %2461 = vmatpush1.bf16.msra.mxu0 %v1589
    %2462 = vmatprep.mubr.bf16.mxu0 %v265
    %2463 = vmatmul.mubr.bf16.gmra.mrb[0].mxu0 %v264
    %v2464 = vpop.f32.mrb[0].mxu0
    %v2465 = vadd.f32 %v586, %v2464
    %v2466 = vpop.f32.mrb[0].mxu0
    %v2467 = vadd.f32 %v590, %v2466
    %v2468 = vpop.f32.mrb[0].mxu0
    %v2469 = vadd.f32 %v586, %v2468
    %v2470 = vpop.f32.mrb[0].mxu0
    %v2471 = vadd.f32 %v590, %v2470
    %2472 = vdwg.mxu0
    %2473 = vmatprep.subr.bf16.mxu0 %v1598
    %2474 = vmatpush1.bf16.msra.mxu0 %v1597
    %2475 = vmatprep.subr.bf16.mxu0 %v1606
    %2476 = vmatpush1.bf16.msra.mxu0 %v1605
    %2477 = vmatprep.subr.bf16.mxu0 %v1614
    %2478 = vmatpush1.bf16.msra.mxu0 %v1613
    %2479 = vmatprep.subr.bf16.mxu0 %v1622
    %2480 = vmatpush1.bf16.msra.mxu0 %v1621
    %2481 = vmatprep.subr.bf16.mxu0 %v1630
    %2482 = vmatpush1.bf16.msra.mxu0 %v1629
    %2483 = vmatprep.subr.bf16.mxu0 %v1638
    %2484 = vmatpush1.bf16.msra.mxu0 %v1637
    %2485 = vmatprep.subr.bf16.mxu0 %v1646
    %2486 = vmatpush1.bf16.msra.mxu0 %v1645
    %2487 = vmatprep.subr.bf16.mxu0 %v1654
    %2488 = vmatpush1.bf16.msra.mxu0 %v1653
    %2489 = vmatprep.subr.bf16.mxu0 %v1662
    %2490 = vmatpush1.bf16.msra.mxu0 %v1661
    %2491 = vmatprep.subr.bf16.mxu0 %v1670
    %2492 = vmatpush1.bf16.msra.mxu0 %v1669
    %2493 = vmatprep.subr.bf16.mxu0 %v1678
    %2494 = vmatpush1.bf16.msra.mxu0 %v1677
    %2495 = vmatprep.subr.bf16.mxu0 %v1686
    %2496 = vmatpush1.bf16.msra.mxu0 %v1685
    %2497 = vmatprep.subr.bf16.mxu0 %v1694
    %2498 = vmatpush1.bf16.msra.mxu0 %v1693
    %2499 = vmatprep.subr.bf16.mxu0 %v1702
    %2500 = vmatpush1.bf16.msra.mxu0 %v1701
    %2501 = vmatprep.subr.bf16.mxu0 %v1710
    %2502 = vmatpush1.bf16.msra.mxu0 %v1709
    %2503 = vmatprep.subr.bf16.mxu0 %v1718
    %2504 = vmatpush1.bf16.msra.mxu0 %v1717
    %2505 = vmatprep.mubr.bf16.mxu0 %v267
    %2506 = vmatmul.mubr.bf16.gmra.mrb[0].mxu0 %v266
    %v2507 = vpop.f32.mrb[0].mxu0
    %v2508 = vadd.f32 %v2465, %v2507
    %v2509 = vpop.f32.mrb[0].mxu0
    %v2510 = vadd.f32 %v2467, %v2509
    %v2511 = vpop.f32.mrb[0].mxu0
    %v2512 = vadd.f32 %v2469, %v2511
    %v2513 = vpop.f32.mrb[0].mxu0
    %v2514 = vadd.f32 %v2471, %v2513
    %2515 = vdwg.mxu0
    %2516 = vmatprep.subr.bf16.mxu0 %v1726
    %2517 = vmatpush1.bf16.msra.mxu0 %v1725
    %2518 = vmatprep.subr.bf16.mxu0 %v1734
    %2519 = vmatpush1.bf16.msra.mxu0 %v1733
    %2520 = vmatprep.subr.bf16.mxu0 %v1742
    %2521 = vmatpush1.bf16.msra.mxu0 %v1741
    %2522 = vmatprep.subr.bf16.mxu0 %v1750
    %2523 = vmatpush1.bf16.msra.mxu0 %v1749
    %2524 = vmatprep.subr.bf16.mxu0 0
    %2525 = vmatpush1.bf16.msra.mxu0 0
    %2526 = vmatprep.subr.bf16.mxu0 0
    %2527 = vmatpush1.bf16.msra.mxu0 0
    %2528 = vmatprep.subr.bf16.mxu0 0
    %2529 = vmatpush1.bf16.msra.mxu0 0
    %2530 = vmatprep.subr.bf16.mxu0 0
    %2531 = vmatpush1.bf16.msra.mxu0 0
    %2532 = vmatprep.subr.bf16.mxu0 0
    %2533 = vmatpush1.bf16.msra.mxu0 0
    %2534 = vmatprep.subr.bf16.mxu0 0
    %2535 = vmatpush1.bf16.msra.mxu0 0
    %2536 = vmatprep.subr.bf16.mxu0 0
    %2537 = vmatpush1.bf16.msra.mxu0 0
    %2538 = vmatprep.subr.bf16.mxu0 0
    %2539 = vmatpush1.bf16.msra.mxu0 0
    %2540 = vmatprep.subr.bf16.mxu0 0
    %2541 = vmatpush1.bf16.msra.mxu0 0
    %2542 = vmatprep.subr.bf16.mxu0 0
    %2543 = vmatpush1.bf16.msra.mxu0 0
    %2544 = vmatprep.subr.bf16.mxu0 0
    %2545 = vmatpush1.bf16.msra.mxu0 0
    %2546 = vmatprep.subr.bf16.mxu0 0
    %2547 = vmatpush1.bf16.msra.mxu0 0
    %2548 = vmatprep.mubr.bf16.mxu0 0
    %2549 = vmatmul.mubr.bf16.gmra.mrb[0].mxu0 %v2041
    %v2550 = vpop.f32.mrb[0].mxu0
    %v2551 = vadd.f32 %v2508, %v2550
    %v2552 = vpop.f32.mrb[0].mxu0
    %v2553 = vadd.f32 %v2510, %v2552
    %v2554 = vpop.f32.mrb[0].mxu0
    %v2555 = vadd.f32 %v2512, %v2554
    %v2556 = vpop.f32.mrb[0].mxu0
    %v2557 = vadd.f32 %v2514, %v2556
    %2558 = vdwg.mxu0
    %v2559 = vmax.f32 %v2164, 0.0
    %v2560 = vmax.f32 %v2166, 0.0
    %v2561 = vmax.f32 %v2293, 0.0
    %v2562 = vmax.f32 %v2295, 0.0
    %v2563 = vmax.f32 %v2422, 0.0
    %v2564 = vmax.f32 %v2424, 0.0
    %v2565 = vmax.f32 %v2551, 0.0
    %v2566 = vmax.f32 %v2553, 0.0
    %v2567 = vmax.f32 %v2168, 0.0
    %v2568 = vmax.f32 %v2170, 0.0
    %v2569 = vmax.f32 %v2297, 0.0
    %v2570 = vmax.f32 %v2299, 0.0
    %v2571 = vmax.f32 %v2426, 0.0
    %v2572 = vmax.f32 %v2428, 0.0
    %v2573 = vmax.f32 %v2555, 0.0
    %v2574 = vmax.f32 %v2557, 0.0
    %v2575 = vpack.c.bf16 %v2567, %v2559
    %v2576 = vpack.c.bf16 %v2568, %v2560
    %v2577 = vpack.c.bf16 %v2569, %v2561
    %v2578 = vpack.c.bf16 %v2570, %v2562
    %v2579 = vpack.c.bf16 %v2571, %v2563
    %v2580 = vpack.c.bf16 %v2572, %v2564
    %v2581 = vpack.c.bf16 %v2573, %v2565
    %v2582 = vpack.c.bf16 %v2574, %v2566
    %v2583 = vld [vmem:[#allocation8] sm:$0xff]
    %v2584 = vld [vmem:[#allocation8 + $0x8] sm:$0xff]
    %v2585 = vld [vmem:[#allocation8 + $0x10] sm:$0xff]
    %v2586 = vld [vmem:[#allocation8 + $0x18] sm:$0xff]
    %v2587 = vld [vmem:[#allocation8 + $0x20] sm:$0xff]
    %v2588 = vld [vmem:[#allocation8 + $0x28] sm:$0xff]
    %v2589 = vld [vmem:[#allocation8 + $0x30] sm:$0xff]
    %v2590 = vld [vmem:[#allocation8 + $0x38] sm:$0xff]
    %v2591 = vld [vmem:[#allocation8 + $0x40] sm:$0xff]
    %v2592 = vld [vmem:[#allocation8 + $0x48] sm:$0xff]
    %v2593 = vld [vmem:[#allocation8 + $0x50] sm:$0xff]
    %v2594 = vld [vmem:[#allocation8 + $0x58] sm:$0xff]
    %v2595 = vld [vmem:[#allocation8 + $0x60] sm:$0xff]
    %v2596 = vld [vmem:[#allocation8 + $0x68] sm:$0xff]
    %v2597 = vld [vmem:[#allocation8 + $0x70] sm:$0xff]
    %v2598 = vld [vmem:[#allocation8 + $0x78] sm:$0xff]
    %v2599 = vld [vmem:[#allocation8 + $0x80] sm:$0xff]
    %v2600 = vld [vmem:[#allocation8 + $0x88] sm:$0xff]
    %v2601 = vld [vmem:[#allocation8 + $0x90] sm:$0xff]
    %v2602 = vld [vmem:[#allocation8 + $0x98] sm:$0xff]
    %v2603 = vld [vmem:[#allocation8 + $0xa0] sm:$0xff]
    %v2604 = vld [vmem:[#allocation8 + $0xa8] sm:$0xff]
    %v2605 = vld [vmem:[#allocation8 + $0xb0] sm:$0xff]
    %v2606 = vld [vmem:[#allocation8 + $0xb8] sm:$0xff]
    %v2607 = vld [vmem:[#allocation8 + $0xc0] sm:$0xff]
    %v2608 = vld [vmem:[#allocation8 + $0xc8] sm:$0xff]
    %v2609 = vld [vmem:[#allocation8 + $0xd0] sm:$0xff]
    %v2610 = vld [vmem:[#allocation8 + $0xd8] sm:$0xff]
    %v2611 = vld [vmem:[#allocation8 + $0xe0] sm:$0xff]
    %v2612 = vld [vmem:[#allocation8 + $0xe8] sm:$0xff]
    %v2613 = vld [vmem:[#allocation8 + $0xf0] sm:$0xff]
    %v2614 = vld [vmem:[#allocation8 + $0xf8] sm:$0xff]
    %v2615 = vld [vmem:[#allocation8 + $0x100] sm:$0xff]
    %v2616 = vld [vmem:[#allocation8 + $0x108] sm:$0xff]
    %v2617 = vld [vmem:[#allocation8 + $0x110] sm:$0xff]
    %v2618 = vld [vmem:[#allocation8 + $0x118] sm:$0xff]
    %v2619 = vld [vmem:[#allocation8 + $0x120] sm:$0xff]
    %v2620 = vld [vmem:[#allocation8 + $0x128] sm:$0xff]
    %v2621 = vld [vmem:[#allocation8 + $0x130] sm:$0xff]
    %v2622 = vld [vmem:[#allocation8 + $0x138] sm:$0xff]
    %v2623 = vld [vmem:[#allocation8 + $0x140] sm:$0xff]
    %v2624 = vld [vmem:[#allocation8 + $0x148] sm:$0xff]
    %v2625 = vld [vmem:[#allocation8 + $0x150] sm:$0xff]
    %v2626 = vld [vmem:[#allocation8 + $0x158] sm:$0xff]
    %v2627 = vld [vmem:[#allocation8 + $0x160] sm:$0xff]
    %v2628 = vld [vmem:[#allocation8 + $0x168] sm:$0xff]
    %v2629 = vld [vmem:[#allocation8 + $0x170] sm:$0xff]
    %v2630 = vld [vmem:[#allocation8 + $0x178] sm:$0xff]
    %v2631 = vld [vmem:[#allocation8 + $0x180] sm:$0xff]
    %v2632 = vld [vmem:[#allocation8 + $0x188] sm:$0xff]
    %v2633 = vld [vmem:[#allocation8 + $0x190] sm:$0xff]
    %v2634 = vld [vmem:[#allocation8 + $0x198] sm:$0xff]
    %v2635 = vld [vmem:[#allocation8 + $0x1a0] sm:$0xff]
    %v2636 = vld [vmem:[#allocation8 + $0x1a8] sm:$0xff]
    %v2637 = vld [vmem:[#allocation8 + $0x1b0] sm:$0xff]
    %v2638 = vld [vmem:[#allocation8 + $0x1b8] sm:$0xff]
    %v2639 = vld [vmem:[#allocation8 + $0x1c0] sm:$0xff]
    %v2640 = vld [vmem:[#allocation8 + $0x1c8] sm:$0xff]
    %v2641 = vld [vmem:[#allocation8 + $0x1d0] sm:$0xff]
    %v2642 = vld [vmem:[#allocation8 + $0x1d8] sm:$0xff]
    %v2643 = vld [vmem:[#allocation8 + $0x1e0] sm:$0xff]
    %v2644 = vld [vmem:[#allocation8 + $0x1e8] sm:$0xff]
    %v2645 = vld [vmem:[#allocation8 + $0x1f0] sm:$0xff]
    %v2646 = vld [vmem:[#allocation8 + $0x1f8] sm:$0xff]
    %v2647 = vld [vmem:[#allocation8 + $0x200] sm:$0xff]
    %v2648 = vld [vmem:[#allocation8 + $0x208] sm:$0xff]
    %v2649 = vld [vmem:[#allocation8 + $0x210] sm:$0xff]
    %v2650 = vld [vmem:[#allocation8 + $0x218] sm:$0xff]
    %v2651 = vld [vmem:[#allocation8 + $0x220] sm:$0xff]
    %v2652 = vld [vmem:[#allocation8 + $0x228] sm:$0xff]
    %v2653 = vld [vmem:[#allocation8 + $0x230] sm:$0xff]
    %v2654 = vld [vmem:[#allocation8 + $0x238] sm:$0xff]
    %v2655 = vld [vmem:[#allocation8 + $0x240] sm:$0xff]
    %v2656 = vld [vmem:[#allocation8 + $0x248] sm:$0xff]
    %v2657 = vld [vmem:[#allocation8 + $0x250] sm:$0xff]
    %v2658 = vld [vmem:[#allocation8 + $0x258] sm:$0xff]
    %v2659 = vld [vmem:[#allocation8 + $0x260] sm:$0xff]
    %v2660 = vld [vmem:[#allocation8 + $0x268] sm:$0xff]
    %v2661 = vld [vmem:[#allocation8 + $0x270] sm:$0xff]
    %v2662 = vld [vmem:[#allocation8 + $0x278] sm:$0xff]
    %v2663 = vld [vmem:[#allocation8 + $0x280] sm:$0xff]
    %v2664 = vld [vmem:[#allocation8 + $0x288] sm:$0xff]
    %v2665 = vld [vmem:[#allocation8 + $0x290] sm:$0xff]
    %v2666 = vld [vmem:[#allocation8 + $0x298] sm:$0xff]
    %v2667 = vld [vmem:[#allocation8 + $0x2a0] sm:$0xff]
    %v2668 = vld [vmem:[#allocation8 + $0x2a8] sm:$0xff]
    %v2669 = vld [vmem:[#allocation8 + $0x2b0] sm:$0xff]
    %v2670 = vld [vmem:[#allocation8 + $0x2b8] sm:$0xff]
    %v2671 = vld [vmem:[#allocation8 + $0x2c0] sm:$0xff]
    %v2672 = vld [vmem:[#allocation8 + $0x2c8] sm:$0xff]
    %v2673 = vld [vmem:[#allocation8 + $0x2d0] sm:$0xff]
    %v2674 = vld [vmem:[#allocation8 + $0x2d8] sm:$0xff]
    %v2675 = vld [vmem:[#allocation8 + $0x2e0] sm:$0xff]
    %v2676 = vld [vmem:[#allocation8 + $0x2e8] sm:$0xff]
    %v2677 = vld [vmem:[#allocation8 + $0x2f0] sm:$0xff]
    %v2678 = vld [vmem:[#allocation8 + $0x2f8] sm:$0xff]
    %v2679 = vld [vmem:[#allocation8 + $0x300] sm:$0xff]
    %v2680 = vld [vmem:[#allocation8 + $0x308] sm:$0xff]
    %v2681 = vld [vmem:[#allocation8 + $0x310] sm:$0xff]
    %v2682 = vld [vmem:[#allocation8 + $0x318] sm:$0xff]
    %v2683 = vld [vmem:[#allocation8 + $0x320] sm:$0xff]
    %v2684 = vld [vmem:[#allocation8 + $0x328] sm:$0xff]
    %v2685 = vld [vmem:[#allocation8 + $0x330] sm:$0xff]
    %v2686 = vld [vmem:[#allocation8 + $0x338] sm:$0xff]
    %v2687 = vld [vmem:[#allocation8 + $0x340] sm:$0xff]
    %v2688 = vld [vmem:[#allocation8 + $0x348] sm:$0xff]
    %v2689 = vld [vmem:[#allocation8 + $0x350] sm:$0xff]
    %v2690 = vld [vmem:[#allocation8 + $0x358] sm:$0xff]
    %v2691 = vld [vmem:[#allocation8 + $0x360] sm:$0xff]
    %v2692 = vld [vmem:[#allocation8 + $0x368] sm:$0xff]
    %v2693 = vld [vmem:[#allocation8 + $0x370] sm:$0xff]
    %v2694 = vld [vmem:[#allocation8 + $0x378] sm:$0xff]
    %v2695 = vld [vmem:[#allocation8 + $0x380] sm:$0xff]
    %v2696 = vld [vmem:[#allocation8 + $0x388] sm:$0xff]
    %v2697 = vld [vmem:[#allocation8 + $0x390] sm:$0xff]
    %v2698 = vld [vmem:[#allocation8 + $0x398] sm:$0xff]
    %v2699 = vld [vmem:[#allocation8 + $0x3a0] sm:$0xff]
    %v2700 = vld [vmem:[#allocation8 + $0x3a8] sm:$0xff]
    %v2701 = vld [vmem:[#allocation8 + $0x3b0] sm:$0xff]
    %v2702 = vld [vmem:[#allocation8 + $0x3b8] sm:$0xff]
    %v2703 = vld [vmem:[#allocation8 + $0x3c0] sm:$0xff]
    %v2704 = vld [vmem:[#allocation8 + $0x3c8] sm:$0xff]
    %v2705 = vld [vmem:[#allocation8 + $0x3d0] sm:$0xff]
    %v2706 = vld [vmem:[#allocation8 + $0x3d8] sm:$0xff]
    %v2707 = vld [vmem:[#allocation8 + $0x3e0] sm:$0xff]
    %v2708 = vld [vmem:[#allocation8 + $0x3e8] sm:$0xff]
    %v2709 = vld [vmem:[#allocation8 + $0x3f0] sm:$0xff]
    %v2710 = vld [vmem:[#allocation8 + $0x3f8] sm:$0xff]
    %v2711 = vld [vmem:[#allocation8 + $0x400] sm:$0xff]
    %v2712 = vld [vmem:[#allocation8 + $0x408] sm:$0xff]
    %v2713 = vld [vmem:[#allocation8 + $0x410] sm:$0xff]
    %v2714 = vld [vmem:[#allocation8 + $0x418] sm:$0xff]
    %v2715 = vld [vmem:[#allocation8 + $0x420] sm:$0xff]
    %v2716 = vld [vmem:[#allocation8 + $0x428] sm:$0xff]
    %v2717 = vld [vmem:[#allocation8 + $0x430] sm:$0xff]
    %v2718 = vld [vmem:[#allocation8 + $0x438] sm:$0xff]
    %v2719 = vld [vmem:[#allocation8 + $0x440] sm:$0xff]
    %v2720 = vld [vmem:[#allocation8 + $0x448] sm:$0xff]
    %v2721 = vld [vmem:[#allocation8 + $0x450] sm:$0xff]
    %v2722 = vld [vmem:[#allocation8 + $0x458] sm:$0xff]
    %v2723 = vld [vmem:[#allocation8 + $0x460] sm:$0xff]
    %v2724 = vld [vmem:[#allocation8 + $0x468] sm:$0xff]
    %v2725 = vld [vmem:[#allocation8 + $0x470] sm:$0xff]
    %v2726 = vld [vmem:[#allocation8 + $0x478] sm:$0xff]
    %v2727 = vld [vmem:[#allocation8 + $0x480] sm:$0xff]
    %v2728 = vld [vmem:[#allocation8 + $0x488] sm:$0xff]
    %v2729 = vld [vmem:[#allocation8 + $0x490] sm:$0xff]
    %v2730 = vld [vmem:[#allocation8 + $0x498] sm:$0xff]
    %v2731 = vld [vmem:[#allocation8 + $0x4a0] sm:$0xff]
    %v2732 = vld [vmem:[#allocation8 + $0x4a8] sm:$0xff]
    %v2733 = vld [vmem:[#allocation8 + $0x4b0] sm:$0xff]
    %v2734 = vld [vmem:[#allocation8 + $0x4b8] sm:$0xff]
    %v2735 = vld [vmem:[#allocation8 + $0x4c0] sm:$0xff]
    %v2736 = vld [vmem:[#allocation8 + $0x4c8] sm:$0xff]
    %v2737 = vld [vmem:[#allocation8 + $0x4d0] sm:$0xff]
    %v2738 = vld [vmem:[#allocation8 + $0x4d8] sm:$0xff]
    %v2739 = vld [vmem:[#allocation8 + $0x4e0] sm:$0xff]
    %v2740 = vld [vmem:[#allocation8 + $0x4e8] sm:$0xff]
    %v2741 = vld [vmem:[#allocation8 + $0x4f0] sm:$0xff]
    %v2742 = vld [vmem:[#allocation8 + $0x4f8] sm:$0xff]
    %v2743 = vld [vmem:[#allocation8 + $0x500] sm:$0xff]
    %v2744 = vld [vmem:[#allocation8 + $0x508] sm:$0xff]
    %v2745 = vld [vmem:[#allocation8 + $0x510] sm:$0xff]
    %v2746 = vld [vmem:[#allocation8 + $0x518] sm:$0xff]
    %v2747 = vld [vmem:[#allocation8 + $0x520] sm:$0xff]
    %v2748 = vld [vmem:[#allocation8 + $0x528] sm:$0xff]
    %v2749 = vld [vmem:[#allocation8 + $0x530] sm:$0xff]
    %v2750 = vld [vmem:[#allocation8 + $0x538] sm:$0xff]
    %v2751 = vld [vmem:[#allocation8 + $0x540] sm:$0xff]
    %v2752 = vld [vmem:[#allocation8 + $0x548] sm:$0xff]
    %v2753 = vld [vmem:[#allocation8 + $0x550] sm:$0xff]
    %v2754 = vld [vmem:[#allocation8 + $0x558] sm:$0xff]
    %v2755 = vld [vmem:[#allocation8 + $0x560] sm:$0xff]
    %v2756 = vld [vmem:[#allocation8 + $0x568] sm:$0xff]
    %v2757 = vld [vmem:[#allocation8 + $0x570] sm:$0xff]
    %v2758 = vld [vmem:[#allocation8 + $0x578] sm:$0xff]
    %v2759 = vld [vmem:[#allocation8 + $0x580] sm:$0xff]
    %v2760 = vld [vmem:[#allocation8 + $0x588] sm:$0xff]
    %v2761 = vld [vmem:[#allocation8 + $0x590] sm:$0xff]
    %v2762 = vld [vmem:[#allocation8 + $0x598] sm:$0xff]
    %v2763 = vld [vmem:[#allocation8 + $0x5a0] sm:$0xff]
    %v2764 = vld [vmem:[#allocation8 + $0x5a8] sm:$0xff]
    %v2765 = vld [vmem:[#allocation8 + $0x5b0] sm:$0xff]
    %v2766 = vld [vmem:[#allocation8 + $0x5b8] sm:$0xff]
    %v2767 = vld [vmem:[#allocation8 + $0x5c0] sm:$0xff]
    %v2768 = vld [vmem:[#allocation8 + $0x5c8] sm:$0xff]
    %v2769 = vld [vmem:[#allocation8 + $0x5d0] sm:$0xff]
    %v2770 = vld [vmem:[#allocation8 + $0x5d8] sm:$0xff]
    %v2771 = vld [vmem:[#allocation8 + $0x5e0] sm:$0xff]
    %v2772 = vld [vmem:[#allocation8 + $0x5e8] sm:$0xff]
    %v2773 = vld [vmem:[#allocation8 + $0x5f0] sm:$0xff]
    %v2774 = vld [vmem:[#allocation8 + $0x5f8] sm:$0xff]
    %v2775 = vld [vmem:[#allocation8 + $0x600] sm:$0xff]
    %v2776 = vld [vmem:[#allocation8 + $0x608] sm:$0xff]
    %v2777 = vld [vmem:[#allocation8 + $0x610] sm:$0xff]
    %v2778 = vld [vmem:[#allocation8 + $0x618] sm:$0xff]
    %v2779 = vld [vmem:[#allocation8 + $0x620] sm:$0xff]
    %v2780 = vld [vmem:[#allocation8 + $0x628] sm:$0xff]
    %v2781 = vld [vmem:[#allocation8 + $0x630] sm:$0xff]
    %v2782 = vld [vmem:[#allocation8 + $0x638] sm:$0xff]
    %v2783 = vld [vmem:[#allocation8 + $0x640] sm:$0xff]
    %v2784 = vld [vmem:[#allocation8 + $0x648] sm:$0xff]
    %v2785 = vld [vmem:[#allocation8 + $0x650] sm:$0xff]
    %v2786 = vld [vmem:[#allocation8 + $0x658] sm:$0xff]
    %v2787 = vld [vmem:[#allocation8 + $0x660] sm:$0xff]
    %v2788 = vld [vmem:[#allocation8 + $0x668] sm:$0xff]
    %v2789 = vld [vmem:[#allocation8 + $0x670] sm:$0xff]
    %v2790 = vld [vmem:[#allocation8 + $0x678] sm:$0xff]
    %v2791 = vld [vmem:[#allocation8 + $0x680] sm:$0xff]
    %v2792 = vld [vmem:[#allocation8 + $0x688] sm:$0xff]
    %v2793 = vld [vmem:[#allocation8 + $0x690] sm:$0xff]
    %v2794 = vld [vmem:[#allocation8 + $0x698] sm:$0xff]
    %v2795 = vld [vmem:[#allocation8 + $0x6a0] sm:$0xff]
    %v2796 = vld [vmem:[#allocation8 + $0x6a8] sm:$0xff]
    %v2797 = vld [vmem:[#allocation8 + $0x6b0] sm:$0xff]
    %v2798 = vld [vmem:[#allocation8 + $0x6b8] sm:$0xff]
    %v2799 = vld [vmem:[#allocation8 + $0x6c0] sm:$0xff]
    %v2800 = vld [vmem:[#allocation8 + $0x6c8] sm:$0xff]
    %v2801 = vld [vmem:[#allocation8 + $0x6d0] sm:$0xff]
    %v2802 = vld [vmem:[#allocation8 + $0x6d8] sm:$0xff]
    %v2803 = vld [vmem:[#allocation8 + $0x6e0] sm:$0xff]
    %v2804 = vld [vmem:[#allocation8 + $0x6e8] sm:$0xff]
    %v2805 = vld [vmem:[#allocation8 + $0x6f0] sm:$0xff]
    %v2806 = vld [vmem:[#allocation8 + $0x6f8] sm:$0xff]
    %v2807 = vld [vmem:[#allocation8 + $0x700] sm:$0xff]
    %v2808 = vld [vmem:[#allocation8 + $0x708] sm:$0xff]
    %v2809 = vld [vmem:[#allocation8 + $0x710] sm:$0xff]
    %v2810 = vld [vmem:[#allocation8 + $0x718] sm:$0xff]
    %v2811 = vld [vmem:[#allocation8 + $0x720] sm:$0xff]
    %v2812 = vld [vmem:[#allocation8 + $0x728] sm:$0xff]
    %v2813 = vld [vmem:[#allocation8 + $0x730] sm:$0xff]
    %v2814 = vld [vmem:[#allocation8 + $0x738] sm:$0xff]
    %v2815 = vld [vmem:[#allocation8 + $0x740] sm:$0xff]
    %v2816 = vld [vmem:[#allocation8 + $0x748] sm:$0xff]
    %v2817 = vld [vmem:[#allocation8 + $0x750] sm:$0xff]
    %v2818 = vld [vmem:[#allocation8 + $0x758] sm:$0xff]
    %v2819 = vld [vmem:[#allocation8 + $0x760] sm:$0xff]
    %v2820 = vld [vmem:[#allocation8 + $0x768] sm:$0xff]
    %v2821 = vld [vmem:[#allocation8 + $0x770] sm:$0xff]
    %v2822 = vld [vmem:[#allocation8 + $0x778] sm:$0xff]
    %v2823 = vld [vmem:[#allocation8 + $0x780] sm:$0xff]
    %v2824 = vld [vmem:[#allocation8 + $0x788] sm:$0xff]
    %v2825 = vld [vmem:[#allocation8 + $0x790] sm:$0xff]
    %v2826 = vld [vmem:[#allocation8 + $0x798] sm:$0xff]
    %v2827 = vld [vmem:[#allocation8 + $0x7a0] sm:$0xff]
    %v2828 = vld [vmem:[#allocation8 + $0x7a8] sm:$0xff]
    %v2829 = vld [vmem:[#allocation8 + $0x7b0] sm:$0xff]
    %v2830 = vld [vmem:[#allocation8 + $0x7b8] sm:$0xff]
    %v2831 = vld [vmem:[#allocation8 + $0x7c0] sm:$0xff]
    %v2832 = vld [vmem:[#allocation8 + $0x7c8] sm:$0xff]
    %v2833 = vld [vmem:[#allocation8 + $0x7d0] sm:$0xff]
    %v2834 = vld [vmem:[#allocation8 + $0x7d8] sm:$0xff]
    %v2835 = vld [vmem:[#allocation8 + $0x7e0] sm:$0xff]
    %v2836 = vld [vmem:[#allocation8 + $0x7e8] sm:$0xff]
    %v2837 = vld [vmem:[#allocation8 + $0x7f0] sm:$0xff]
    %v2838 = vld [vmem:[#allocation8 + $0x7f8] sm:$0xff]
    %v2839 = vld [vmem:[#allocation9] sm:$0xf]
    %v2841 = vlaneseq
    %v2842 = vshrl.u32 %v2841, 7
    %v2843 = vsub.s32 0, %v2842
    %v2844 = vrot.slane %v2839, %v2843
    %v2845 = vlaneseq
    %v2846 = vshrl.u32 %v2845, 7
    %v2847 = vsub.s32 1, %v2846
    %v2848 = vrot.slane %v2839, %v2847
    %v2849 = vlaneseq
    %v2850 = vshrl.u32 %v2849, 7
    %v2851 = vsub.s32 2, %v2850
    %v2852 = vrot.slane %v2839, %v2851
    %v2853 = vlaneseq
    %v2854 = vshrl.u32 %v2853, 7
    %v2855 = vsub.s32 3, %v2854
    %v2856 = vrot.slane %v2839, %v2855
    %v3117 = vunpack.c.l.b16 %v2583
    %v3118 = vunpack.c.h.b16 %v2583
    %v3119 = vunpack.c.l.b16 %v2584
    %v3120 = vunpack.c.h.b16 %v2584
    %v3121 = vunpack.c.l.b16 %v2585
    %v3122 = vunpack.c.h.b16 %v2585
    %v3123 = vunpack.c.l.b16 %v2586
    %v3124 = vunpack.c.h.b16 %v2586
    %v3125 = vunpack.c.l.b16 %v2587
    %v3126 = vunpack.c.h.b16 %v2587
    %v3127 = vunpack.c.l.b16 %v2588
    %v3128 = vunpack.c.h.b16 %v2588
    %v3129 = vunpack.c.l.b16 %v2589
    %v3130 = vunpack.c.h.b16 %v2589
    %v3131 = vunpack.c.l.b16 %v2590
    %v3132 = vunpack.c.h.b16 %v2590
    %v3133 = vunpack.c.l.b16 %v2591
    %v3134 = vunpack.c.h.b16 %v2591
    %v3135 = vunpack.c.l.b16 %v2592
    %v3136 = vunpack.c.h.b16 %v2592
    %v3137 = vunpack.c.l.b16 %v2593
    %v3138 = vunpack.c.h.b16 %v2593
    %v3139 = vunpack.c.l.b16 %v2594
    %v3140 = vunpack.c.h.b16 %v2594
    %v3141 = vunpack.c.l.b16 %v2595
    %v3142 = vunpack.c.h.b16 %v2595
    %v3143 = vunpack.c.l.b16 %v2596
    %v3144 = vunpack.c.h.b16 %v2596
    %v3145 = vunpack.c.l.b16 %v2597
    %v3146 = vunpack.c.h.b16 %v2597
    %v3147 = vunpack.c.l.b16 %v2598
    %v3148 = vunpack.c.h.b16 %v2598
    %v3149 = vunpack.c.l.b16 %v2599
    %v3150 = vunpack.c.h.b16 %v2599
    %v3151 = vunpack.c.l.b16 %v2600
    %v3152 = vunpack.c.h.b16 %v2600
    %v3153 = vunpack.c.l.b16 %v2601
    %v3154 = vunpack.c.h.b16 %v2601
    %v3155 = vunpack.c.l.b16 %v2602
    %v3156 = vunpack.c.h.b16 %v2602
    %v3157 = vunpack.c.l.b16 %v2603
    %v3158 = vunpack.c.h.b16 %v2603
    %v3159 = vunpack.c.l.b16 %v2604
    %v3160 = vunpack.c.h.b16 %v2604
    %v3161 = vunpack.c.l.b16 %v2605
    %v3162 = vunpack.c.h.b16 %v2605
    %v3163 = vunpack.c.l.b16 %v2606
    %v3164 = vunpack.c.h.b16 %v2606
    %v3165 = vunpack.c.l.b16 %v2607
    %v3166 = vunpack.c.h.b16 %v2607
    %v3167 = vunpack.c.l.b16 %v2608
    %v3168 = vunpack.c.h.b16 %v2608
    %v3169 = vunpack.c.l.b16 %v2609
    %v3170 = vunpack.c.h.b16 %v2609
    %v3171 = vunpack.c.l.b16 %v2610
    %v3172 = vunpack.c.h.b16 %v2610
    %v3173 = vunpack.c.l.b16 %v2611
    %v3174 = vunpack.c.h.b16 %v2611
    %v3175 = vunpack.c.l.b16 %v2612
    %v3176 = vunpack.c.h.b16 %v2612
    %v3177 = vunpack.c.l.b16 %v2613
    %v3178 = vunpack.c.h.b16 %v2613
    %v3179 = vunpack.c.l.b16 %v2614
    %v3180 = vunpack.c.h.b16 %v2614
    %v3181 = vunpack.c.l.b16 %v2615
    %v3182 = vunpack.c.h.b16 %v2615
    %v3183 = vunpack.c.l.b16 %v2616
    %v3184 = vunpack.c.h.b16 %v2616
    %v3185 = vunpack.c.l.b16 %v2617
    %v3186 = vunpack.c.h.b16 %v2617
    %v3187 = vunpack.c.l.b16 %v2618
    %v3188 = vunpack.c.h.b16 %v2618
    %v3189 = vunpack.c.l.b16 %v2619
    %v3190 = vunpack.c.h.b16 %v2619
    %v3191 = vunpack.c.l.b16 %v2620
    %v3192 = vunpack.c.h.b16 %v2620
    %v3193 = vunpack.c.l.b16 %v2621
    %v3194 = vunpack.c.h.b16 %v2621
    %v3195 = vunpack.c.l.b16 %v2622
    %v3196 = vunpack.c.h.b16 %v2622
    %v3197 = vunpack.c.l.b16 %v2623
    %v3198 = vunpack.c.h.b16 %v2623
    %v3199 = vunpack.c.l.b16 %v2624
    %v3200 = vunpack.c.h.b16 %v2624
    %v3201 = vunpack.c.l.b16 %v2625
    %v3202 = vunpack.c.h.b16 %v2625
    %v3203 = vunpack.c.l.b16 %v2626
    %v3204 = vunpack.c.h.b16 %v2626
    %v3205 = vunpack.c.l.b16 %v2627
    %v3206 = vunpack.c.h.b16 %v2627
    %v3207 = vunpack.c.l.b16 %v2628
    %v3208 = vunpack.c.h.b16 %v2628
    %v3209 = vunpack.c.l.b16 %v2629
    %v3210 = vunpack.c.h.b16 %v2629
    %v3211 = vunpack.c.l.b16 %v2630
    %v3212 = vunpack.c.h.b16 %v2630
    %v3213 = vunpack.c.l.b16 %v2631
    %v3214 = vunpack.c.h.b16 %v2631
    %v3215 = vunpack.c.l.b16 %v2632
    %v3216 = vunpack.c.h.b16 %v2632
    %v3217 = vunpack.c.l.b16 %v2633
    %v3218 = vunpack.c.h.b16 %v2633
    %v3219 = vunpack.c.l.b16 %v2634
    %v3220 = vunpack.c.h.b16 %v2634
    %v3221 = vunpack.c.l.b16 %v2635
    %v3222 = vunpack.c.h.b16 %v2635
    %v3223 = vunpack.c.l.b16 %v2636
    %v3224 = vunpack.c.h.b16 %v2636
    %v3225 = vunpack.c.l.b16 %v2637
    %v3226 = vunpack.c.h.b16 %v2637
    %v3227 = vunpack.c.l.b16 %v2638
    %v3228 = vunpack.c.h.b16 %v2638
    %v3229 = vunpack.c.l.b16 %v2639
    %v3230 = vunpack.c.h.b16 %v2639
    %v3231 = vunpack.c.l.b16 %v2640
    %v3232 = vunpack.c.h.b16 %v2640
    %v3233 = vunpack.c.l.b16 %v2641
    %v3234 = vunpack.c.h.b16 %v2641
    %v3235 = vunpack.c.l.b16 %v2642
    %v3236 = vunpack.c.h.b16 %v2642
    %v3237 = vunpack.c.l.b16 %v2643
    %v3238 = vunpack.c.h.b16 %v2643
    %v3239 = vunpack.c.l.b16 %v2644
    %v3240 = vunpack.c.h.b16 %v2644
    %v3241 = vunpack.c.l.b16 %v2645
    %v3242 = vunpack.c.h.b16 %v2645
    %v3243 = vunpack.c.l.b16 %v2646
    %v3244 = vunpack.c.h.b16 %v2646
    %v3245 = vunpack.c.l.b16 %v2647
    %v3246 = vunpack.c.h.b16 %v2647
    %v3247 = vunpack.c.l.b16 %v2648
    %v3248 = vunpack.c.h.b16 %v2648
    %v3249 = vunpack.c.l.b16 %v2649
    %v3250 = vunpack.c.h.b16 %v2649
    %v3251 = vunpack.c.l.b16 %v2650
    %v3252 = vunpack.c.h.b16 %v2650
    %v3253 = vunpack.c.l.b16 %v2651
    %v3254 = vunpack.c.h.b16 %v2651
    %v3255 = vunpack.c.l.b16 %v2652
    %v3256 = vunpack.c.h.b16 %v2652
    %v3257 = vunpack.c.l.b16 %v2653
    %v3258 = vunpack.c.h.b16 %v2653
    %v3259 = vunpack.c.l.b16 %v2654
    %v3260 = vunpack.c.h.b16 %v2654
    %v3261 = vunpack.c.l.b16 %v2655
    %v3262 = vunpack.c.h.b16 %v2655
    %v3263 = vunpack.c.l.b16 %v2656
    %v3264 = vunpack.c.h.b16 %v2656
    %v3265 = vunpack.c.l.b16 %v2657
    %v3266 = vunpack.c.h.b16 %v2657
    %v3267 = vunpack.c.l.b16 %v2658
    %v3268 = vunpack.c.h.b16 %v2658
    %v3269 = vunpack.c.l.b16 %v2659
    %v3270 = vunpack.c.h.b16 %v2659
    %v3271 = vunpack.c.l.b16 %v2660
    %v3272 = vunpack.c.h.b16 %v2660
    %v3273 = vunpack.c.l.b16 %v2661
    %v3274 = vunpack.c.h.b16 %v2661
    %v3275 = vunpack.c.l.b16 %v2662
    %v3276 = vunpack.c.h.b16 %v2662
    %v3277 = vunpack.c.l.b16 %v2663
    %v3278 = vunpack.c.h.b16 %v2663
    %v3279 = vunpack.c.l.b16 %v2664
    %v3280 = vunpack.c.h.b16 %v2664
    %v3281 = vunpack.c.l.b16 %v2665
    %v3282 = vunpack.c.h.b16 %v2665
    %v3283 = vunpack.c.l.b16 %v2666
    %v3284 = vunpack.c.h.b16 %v2666
    %v3285 = vunpack.c.l.b16 %v2667
    %v3286 = vunpack.c.h.b16 %v2667
    %v3287 = vunpack.c.l.b16 %v2668
    %v3288 = vunpack.c.h.b16 %v2668
    %v3289 = vunpack.c.l.b16 %v2669
    %v3290 = vunpack.c.h.b16 %v2669
    %v3291 = vunpack.c.l.b16 %v2670
    %v3292 = vunpack.c.h.b16 %v2670
    %v3293 = vunpack.c.l.b16 %v2671
    %v3294 = vunpack.c.h.b16 %v2671
    %v3295 = vunpack.c.l.b16 %v2672
    %v3296 = vunpack.c.h.b16 %v2672
    %v3297 = vunpack.c.l.b16 %v2673
    %v3298 = vunpack.c.h.b16 %v2673
    %v3299 = vunpack.c.l.b16 %v2674
    %v3300 = vunpack.c.h.b16 %v2674
    %v3301 = vunpack.c.l.b16 %v2675
    %v3302 = vunpack.c.h.b16 %v2675
    %v3303 = vunpack.c.l.b16 %v2676
    %v3304 = vunpack.c.h.b16 %v2676
    %v3305 = vunpack.c.l.b16 %v2677
    %v3306 = vunpack.c.h.b16 %v2677
    %v3307 = vunpack.c.l.b16 %v2678
    %v3308 = vunpack.c.h.b16 %v2678
    %v3309 = vunpack.c.l.b16 %v2679
    %v3310 = vunpack.c.h.b16 %v2679
    %v3311 = vunpack.c.l.b16 %v2680
    %v3312 = vunpack.c.h.b16 %v2680
    %v3313 = vunpack.c.l.b16 %v2681
    %v3314 = vunpack.c.h.b16 %v2681
    %v3315 = vunpack.c.l.b16 %v2682
    %v3316 = vunpack.c.h.b16 %v2682
    %v3317 = vunpack.c.l.b16 %v2683
    %v3318 = vunpack.c.h.b16 %v2683
    %v3319 = vunpack.c.l.b16 %v2684
    %v3320 = vunpack.c.h.b16 %v2684
    %v3321 = vunpack.c.l.b16 %v2685
    %v3322 = vunpack.c.h.b16 %v2685
    %v3323 = vunpack.c.l.b16 %v2686
    %v3324 = vunpack.c.h.b16 %v2686
    %v3325 = vunpack.c.l.b16 %v2687
    %v3326 = vunpack.c.h.b16 %v2687
    %v3327 = vunpack.c.l.b16 %v2688
    %v3328 = vunpack.c.h.b16 %v2688
    %v3329 = vunpack.c.l.b16 %v2689
    %v3330 = vunpack.c.h.b16 %v2689
    %v3331 = vunpack.c.l.b16 %v2690
    %v3332 = vunpack.c.h.b16 %v2690
    %v3333 = vunpack.c.l.b16 %v2691
    %v3334 = vunpack.c.h.b16 %v2691
    %v3335 = vunpack.c.l.b16 %v2692
    %v3336 = vunpack.c.h.b16 %v2692
    %v3337 = vunpack.c.l.b16 %v2693
    %v3338 = vunpack.c.h.b16 %v2693
    %v3339 = vunpack.c.l.b16 %v2694
    %v3340 = vunpack.c.h.b16 %v2694
    %v3341 = vunpack.c.l.b16 %v2695
    %v3342 = vunpack.c.h.b16 %v2695
    %v3343 = vunpack.c.l.b16 %v2696
    %v3344 = vunpack.c.h.b16 %v2696
    %v3345 = vunpack.c.l.b16 %v2697
    %v3346 = vunpack.c.h.b16 %v2697
    %v3347 = vunpack.c.l.b16 %v2698
    %v3348 = vunpack.c.h.b16 %v2698
    %v3349 = vunpack.c.l.b16 %v2699
    %v3350 = vunpack.c.h.b16 %v2699
    %v3351 = vunpack.c.l.b16 %v2700
    %v3352 = vunpack.c.h.b16 %v2700
    %v3353 = vunpack.c.l.b16 %v2701
    %v3354 = vunpack.c.h.b16 %v2701
    %v3355 = vunpack.c.l.b16 %v2702
    %v3356 = vunpack.c.h.b16 %v2702
    %v3357 = vunpack.c.l.b16 %v2703
    %v3358 = vunpack.c.h.b16 %v2703
    %v3359 = vunpack.c.l.b16 %v2704
    %v3360 = vunpack.c.h.b16 %v2704
    %v3361 = vunpack.c.l.b16 %v2705
    %v3362 = vunpack.c.h.b16 %v2705
    %v3363 = vunpack.c.l.b16 %v2706
    %v3364 = vunpack.c.h.b16 %v2706
    %v3365 = vunpack.c.l.b16 %v2707
    %v3366 = vunpack.c.h.b16 %v2707
    %v3367 = vunpack.c.l.b16 %v2708
    %v3368 = vunpack.c.h.b16 %v2708
    %v3369 = vunpack.c.l.b16 %v2709
    %v3370 = vunpack.c.h.b16 %v2709
    %v3371 = vunpack.c.l.b16 %v2710
    %v3372 = vunpack.c.h.b16 %v2710
    %v3373 = vunpack.c.l.b16 %v2711
    %v3374 = vunpack.c.h.b16 %v2711
    %v3375 = vunpack.c.l.b16 %v2712
    %v3376 = vunpack.c.h.b16 %v2712
    %v3377 = vunpack.c.l.b16 %v2713
    %v3378 = vunpack.c.h.b16 %v2713
    %v3379 = vunpack.c.l.b16 %v2714
    %v3380 = vunpack.c.h.b16 %v2714
    %v3381 = vunpack.c.l.b16 %v2715
    %v3382 = vunpack.c.h.b16 %v2715
    %v3383 = vunpack.c.l.b16 %v2716
    %v3384 = vunpack.c.h.b16 %v2716
    %v3385 = vunpack.c.l.b16 %v2717
    %v3386 = vunpack.c.h.b16 %v2717
    %v3387 = vunpack.c.l.b16 %v2718
    %v3388 = vunpack.c.h.b16 %v2718
    %v3389 = vunpack.c.l.b16 %v2719
    %v3390 = vunpack.c.h.b16 %v2719
    %v3391 = vunpack.c.l.b16 %v2720
    %v3392 = vunpack.c.h.b16 %v2720
    %v3393 = vunpack.c.l.b16 %v2721
    %v3394 = vunpack.c.h.b16 %v2721
    %v3395 = vunpack.c.l.b16 %v2722
    %v3396 = vunpack.c.h.b16 %v2722
    %v3397 = vunpack.c.l.b16 %v2723
    %v3398 = vunpack.c.h.b16 %v2723
    %v3399 = vunpack.c.l.b16 %v2724
    %v3400 = vunpack.c.h.b16 %v2724
    %v3401 = vunpack.c.l.b16 %v2725
    %v3402 = vunpack.c.h.b16 %v2725
    %v3403 = vunpack.c.l.b16 %v2726
    %v3404 = vunpack.c.h.b16 %v2726
    %v3405 = vunpack.c.l.b16 %v2727
    %v3406 = vunpack.c.h.b16 %v2727
    %v3407 = vunpack.c.l.b16 %v2728
    %v3408 = vunpack.c.h.b16 %v2728
    %v3409 = vunpack.c.l.b16 %v2729
    %v3410 = vunpack.c.h.b16 %v2729
    %v3411 = vunpack.c.l.b16 %v2730
    %v3412 = vunpack.c.h.b16 %v2730
    %v3413 = vunpack.c.l.b16 %v2731
    %v3414 = vunpack.c.h.b16 %v2731
    %v3415 = vunpack.c.l.b16 %v2732
    %v3416 = vunpack.c.h.b16 %v2732
    %v3417 = vunpack.c.l.b16 %v2733
    %v3418 = vunpack.c.h.b16 %v2733
    %v3419 = vunpack.c.l.b16 %v2734
    %v3420 = vunpack.c.h.b16 %v2734
    %v3421 = vunpack.c.l.b16 %v2735
    %v3422 = vunpack.c.h.b16 %v2735
    %v3423 = vunpack.c.l.b16 %v2736
    %v3424 = vunpack.c.h.b16 %v2736
    %v3425 = vunpack.c.l.b16 %v2737
    %v3426 = vunpack.c.h.b16 %v2737
    %v3427 = vunpack.c.l.b16 %v2738
    %v3428 = vunpack.c.h.b16 %v2738
    %v3429 = vunpack.c.l.b16 %v2739
    %v3430 = vunpack.c.h.b16 %v2739
    %v3431 = vunpack.c.l.b16 %v2740
    %v3432 = vunpack.c.h.b16 %v2740
    %v3433 = vunpack.c.l.b16 %v2741
    %v3434 = vunpack.c.h.b16 %v2741
    %v3435 = vunpack.c.l.b16 %v2742
    %v3436 = vunpack.c.h.b16 %v2742
    %v3437 = vunpack.c.l.b16 %v2743
    %v3438 = vunpack.c.h.b16 %v2743
    %v3439 = vunpack.c.l.b16 %v2744
    %v3440 = vunpack.c.h.b16 %v2744
    %v3441 = vunpack.c.l.b16 %v2745
    %v3442 = vunpack.c.h.b16 %v2745
    %v3443 = vunpack.c.l.b16 %v2746
    %v3444 = vunpack.c.h.b16 %v2746
    %v3445 = vunpack.c.l.b16 %v2747
    %v3446 = vunpack.c.h.b16 %v2747
    %v3447 = vunpack.c.l.b16 %v2748
    %v3448 = vunpack.c.h.b16 %v2748
    %v3449 = vunpack.c.l.b16 %v2749
    %v3450 = vunpack.c.h.b16 %v2749
    %v3451 = vunpack.c.l.b16 %v2750
    %v3452 = vunpack.c.h.b16 %v2750
    %v3453 = vunpack.c.l.b16 %v2751
    %v3454 = vunpack.c.h.b16 %v2751
    %v3455 = vunpack.c.l.b16 %v2752
    %v3456 = vunpack.c.h.b16 %v2752
    %v3457 = vunpack.c.l.b16 %v2753
    %v3458 = vunpack.c.h.b16 %v2753
    %v3459 = vunpack.c.l.b16 %v2754
    %v3460 = vunpack.c.h.b16 %v2754
    %v3461 = vunpack.c.l.b16 %v2755
    %v3462 = vunpack.c.h.b16 %v2755
    %v3463 = vunpack.c.l.b16 %v2756
    %v3464 = vunpack.c.h.b16 %v2756
    %v3465 = vunpack.c.l.b16 %v2757
    %v3466 = vunpack.c.h.b16 %v2757
    %v3467 = vunpack.c.l.b16 %v2758
    %v3468 = vunpack.c.h.b16 %v2758
    %v3469 = vunpack.c.l.b16 %v2759
    %v3470 = vunpack.c.h.b16 %v2759
    %v3471 = vunpack.c.l.b16 %v2760
    %v3472 = vunpack.c.h.b16 %v2760
    %v3473 = vunpack.c.l.b16 %v2761
    %v3474 = vunpack.c.h.b16 %v2761
    %v3475 = vunpack.c.l.b16 %v2762
    %v3476 = vunpack.c.h.b16 %v2762
    %v3477 = vunpack.c.l.b16 %v2763
    %v3478 = vunpack.c.h.b16 %v2763
    %v3479 = vunpack.c.l.b16 %v2764
    %v3480 = vunpack.c.h.b16 %v2764
    %v3481 = vunpack.c.l.b16 %v2765
    %v3482 = vunpack.c.h.b16 %v2765
    %v3483 = vunpack.c.l.b16 %v2766
    %v3484 = vunpack.c.h.b16 %v2766
    %v3485 = vunpack.c.l.b16 %v2767
    %v3486 = vunpack.c.h.b16 %v2767
    %v3487 = vunpack.c.l.b16 %v2768
    %v3488 = vunpack.c.h.b16 %v2768
    %v3489 = vunpack.c.l.b16 %v2769
    %v3490 = vunpack.c.h.b16 %v2769
    %v3491 = vunpack.c.l.b16 %v2770
    %v3492 = vunpack.c.h.b16 %v2770
    %v3493 = vunpack.c.l.b16 %v2771
    %v3494 = vunpack.c.h.b16 %v2771
    %v3495 = vunpack.c.l.b16 %v2772
    %v3496 = vunpack.c.h.b16 %v2772
    %v3497 = vunpack.c.l.b16 %v2773
    %v3498 = vunpack.c.h.b16 %v2773
    %v3499 = vunpack.c.l.b16 %v2774
    %v3500 = vunpack.c.h.b16 %v2774
    %v3501 = vunpack.c.l.b16 %v2775
    %v3502 = vunpack.c.h.b16 %v2775
    %v3503 = vunpack.c.l.b16 %v2776
    %v3504 = vunpack.c.h.b16 %v2776
    %v3505 = vunpack.c.l.b16 %v2777
    %v3506 = vunpack.c.h.b16 %v2777
    %v3507 = vunpack.c.l.b16 %v2778
    %v3508 = vunpack.c.h.b16 %v2778
    %v3509 = vunpack.c.l.b16 %v2779
    %v3510 = vunpack.c.h.b16 %v2779
    %v3511 = vunpack.c.l.b16 %v2780
    %v3512 = vunpack.c.h.b16 %v2780
    %v3513 = vunpack.c.l.b16 %v2781
    %v3514 = vunpack.c.h.b16 %v2781
    %v3515 = vunpack.c.l.b16 %v2782
    %v3516 = vunpack.c.h.b16 %v2782
    %v3517 = vunpack.c.l.b16 %v2783
    %v3518 = vunpack.c.h.b16 %v2783
    %v3519 = vunpack.c.l.b16 %v2784
    %v3520 = vunpack.c.h.b16 %v2784
    %v3521 = vunpack.c.l.b16 %v2785
    %v3522 = vunpack.c.h.b16 %v2785
    %v3523 = vunpack.c.l.b16 %v2786
    %v3524 = vunpack.c.h.b16 %v2786
    %v3525 = vunpack.c.l.b16 %v2787
    %v3526 = vunpack.c.h.b16 %v2787
    %v3527 = vunpack.c.l.b16 %v2788
    %v3528 = vunpack.c.h.b16 %v2788
    %v3529 = vunpack.c.l.b16 %v2789
    %v3530 = vunpack.c.h.b16 %v2789
    %v3531 = vunpack.c.l.b16 %v2790
    %v3532 = vunpack.c.h.b16 %v2790
    %v3533 = vunpack.c.l.b16 %v2791
    %v3534 = vunpack.c.h.b16 %v2791
    %v3535 = vunpack.c.l.b16 %v2792
    %v3536 = vunpack.c.h.b16 %v2792
    %v3537 = vunpack.c.l.b16 %v2793
    %v3538 = vunpack.c.h.b16 %v2793
    %v3539 = vunpack.c.l.b16 %v2794
    %v3540 = vunpack.c.h.b16 %v2794
    %v3541 = vunpack.c.l.b16 %v2795
    %v3542 = vunpack.c.h.b16 %v2795
    %v3543 = vunpack.c.l.b16 %v2796
    %v3544 = vunpack.c.h.b16 %v2796
    %v3545 = vunpack.c.l.b16 %v2797
    %v3546 = vunpack.c.h.b16 %v2797
    %v3547 = vunpack.c.l.b16 %v2798
    %v3548 = vunpack.c.h.b16 %v2798
    %v3549 = vunpack.c.l.b16 %v2799
    %v3550 = vunpack.c.h.b16 %v2799
    %v3551 = vunpack.c.l.b16 %v2800
    %v3552 = vunpack.c.h.b16 %v2800
    %v3553 = vunpack.c.l.b16 %v2801
    %v3554 = vunpack.c.h.b16 %v2801
    %v3555 = vunpack.c.l.b16 %v2802
    %v3556 = vunpack.c.h.b16 %v2802
    %v3557 = vunpack.c.l.b16 %v2803
    %v3558 = vunpack.c.h.b16 %v2803
    %v3559 = vunpack.c.l.b16 %v2804
    %v3560 = vunpack.c.h.b16 %v2804
    %v3561 = vunpack.c.l.b16 %v2805
    %v3562 = vunpack.c.h.b16 %v2805
    %v3563 = vunpack.c.l.b16 %v2806
    %v3564 = vunpack.c.h.b16 %v2806
    %v3565 = vunpack.c.l.b16 %v2807
    %v3566 = vunpack.c.h.b16 %v2807
    %v3567 = vunpack.c.l.b16 %v2808
    %v3568 = vunpack.c.h.b16 %v2808
    %v3569 = vunpack.c.l.b16 %v2809
    %v3570 = vunpack.c.h.b16 %v2809
    %v3571 = vunpack.c.l.b16 %v2810
    %v3572 = vunpack.c.h.b16 %v2810
    %v3573 = vunpack.c.l.b16 %v2811
    %v3574 = vunpack.c.h.b16 %v2811
    %v3575 = vunpack.c.l.b16 %v2812
    %v3576 = vunpack.c.h.b16 %v2812
    %v3577 = vunpack.c.l.b16 %v2813
    %v3578 = vunpack.c.h.b16 %v2813
    %v3579 = vunpack.c.l.b16 %v2814
    %v3580 = vunpack.c.h.b16 %v2814
    %v3581 = vunpack.c.l.b16 %v2815
    %v3582 = vunpack.c.h.b16 %v2815
    %v3583 = vunpack.c.l.b16 %v2816
    %v3584 = vunpack.c.h.b16 %v2816
    %v3585 = vunpack.c.l.b16 %v2817
    %v3586 = vunpack.c.h.b16 %v2817
    %v3587 = vunpack.c.l.b16 %v2818
    %v3588 = vunpack.c.h.b16 %v2818
    %v3589 = vunpack.c.l.b16 %v2819
    %v3590 = vunpack.c.h.b16 %v2819
    %v3591 = vunpack.c.l.b16 %v2820
    %v3592 = vunpack.c.h.b16 %v2820
    %v3593 = vunpack.c.l.b16 %v2821
    %v3594 = vunpack.c.h.b16 %v2821
    %v3595 = vunpack.c.l.b16 %v2822
    %v3596 = vunpack.c.h.b16 %v2822
    %v3597 = vunpack.c.l.b16 %v2823
    %v3598 = vunpack.c.h.b16 %v2823
    %v3599 = vunpack.c.l.b16 %v2824
    %v3600 = vunpack.c.h.b16 %v2824
    %v3601 = vunpack.c.l.b16 %v2825
    %v3602 = vunpack.c.h.b16 %v2825
    %v3603 = vunpack.c.l.b16 %v2826
    %v3604 = vunpack.c.h.b16 %v2826
    %v3605 = vunpack.c.l.b16 %v2827
    %v3606 = vunpack.c.h.b16 %v2827
    %v3607 = vunpack.c.l.b16 %v2828
    %v3608 = vunpack.c.h.b16 %v2828
    %v3609 = vunpack.c.l.b16 %v2829
    %v3610 = vunpack.c.h.b16 %v2829
    %v3611 = vunpack.c.l.b16 %v2830
    %v3612 = vunpack.c.h.b16 %v2830
    %v3613 = vunpack.c.l.b16 %v2831
    %v3614 = vunpack.c.h.b16 %v2831
    %v3615 = vunpack.c.l.b16 %v2832
    %v3616 = vunpack.c.h.b16 %v2832
    %v3617 = vunpack.c.l.b16 %v2833
    %v3618 = vunpack.c.h.b16 %v2833
    %v3619 = vunpack.c.l.b16 %v2834
    %v3620 = vunpack.c.h.b16 %v2834
    %v3621 = vunpack.c.l.b16 %v2835
    %v3622 = vunpack.c.h.b16 %v2835
    %v3623 = vunpack.c.l.b16 %v2836
    %v3624 = vunpack.c.h.b16 %v2836
    %v3625 = vunpack.c.l.b16 %v2837
    %v3626 = vunpack.c.h.b16 %v2837
    %v3627 = vunpack.c.l.b16 %v2838
    %v3628 = vunpack.c.h.b16 %v2838
    %v3629 = vpack.c.b16 %v3121, %v3117
    %v3630 = vpack.c.b16 %v3122, %v3118
    %v3631 = vpack.c.b16 %v3123, %v3119
    %v3632 = vpack.c.b16 %v3124, %v3120
    %v3633 = vpack.c.b16 %v3129, %v3125
    %v3634 = vpack.c.b16 %v3130, %v3126
    %v3635 = vpack.c.b16 %v3131, %v3127
    %v3636 = vpack.c.b16 %v3132, %v3128
    %v3637 = vpack.c.b16 %v3137, %v3133
    %v3638 = vpack.c.b16 %v3138, %v3134
    %v3639 = vpack.c.b16 %v3139, %v3135
    %v3640 = vpack.c.b16 %v3140, %v3136
    %v3641 = vpack.c.b16 %v3145, %v3141
    %v3642 = vpack.c.b16 %v3146, %v3142
    %v3643 = vpack.c.b16 %v3147, %v3143
    %v3644 = vpack.c.b16 %v3148, %v3144
    %v3645 = vpack.c.b16 %v3153, %v3149
    %v3646 = vpack.c.b16 %v3154, %v3150
    %v3647 = vpack.c.b16 %v3155, %v3151
    %v3648 = vpack.c.b16 %v3156, %v3152
    %v3649 = vpack.c.b16 %v3161, %v3157
    %v3650 = vpack.c.b16 %v3162, %v3158
    %v3651 = vpack.c.b16 %v3163, %v3159
    %v3652 = vpack.c.b16 %v3164, %v3160
    %v3653 = vpack.c.b16 %v3169, %v3165
    %v3654 = vpack.c.b16 %v3170, %v3166
    %v3655 = vpack.c.b16 %v3171, %v3167
    %v3656 = vpack.c.b16 %v3172, %v3168
    %v3657 = vpack.c.b16 %v3177, %v3173
    %v3658 = vpack.c.b16 %v3178, %v3174
    %v3659 = vpack.c.b16 %v3179, %v3175
    %v3660 = vpack.c.b16 %v3180, %v3176
    %v3661 = vpack.c.b16 %v3185, %v3181
    %v3662 = vpack.c.b16 %v3186, %v3182
    %v3663 = vpack.c.b16 %v3187, %v3183
    %v3664 = vpack.c.b16 %v3188, %v3184
    %v3665 = vpack.c.b16 %v3193, %v3189
    %v3666 = vpack.c.b16 %v3194, %v3190
    %v3667 = vpack.c.b16 %v3195, %v3191
    %v3668 = vpack.c.b16 %v3196, %v3192
    %v3669 = vpack.c.b16 %v3201, %v3197
    %v3670 = vpack.c.b16 %v3202, %v3198
    %v3671 = vpack.c.b16 %v3203, %v3199
    %v3672 = vpack.c.b16 %v3204, %v3200
    %v3673 = vpack.c.b16 %v3209, %v3205
    %v3674 = vpack.c.b16 %v3210, %v3206
    %v3675 = vpack.c.b16 %v3211, %v3207
    %v3676 = vpack.c.b16 %v3212, %v3208
    %v3677 = vpack.c.b16 %v3217, %v3213
    %v3678 = vpack.c.b16 %v3218, %v3214
    %v3679 = vpack.c.b16 %v3219, %v3215
    %v3680 = vpack.c.b16 %v3220, %v3216
    %v3681 = vpack.c.b16 %v3225, %v3221
    %v3682 = vpack.c.b16 %v3226, %v3222
    %v3683 = vpack.c.b16 %v3227, %v3223
    %v3684 = vpack.c.b16 %v3228, %v3224
    %v3685 = vpack.c.b16 %v3233, %v3229
    %v3686 = vpack.c.b16 %v3234, %v3230
    %v3687 = vpack.c.b16 %v3235, %v3231
    %v3688 = vpack.c.b16 %v3236, %v3232
    %v3689 = vpack.c.b16 %v3241, %v3237
    %v3690 = vpack.c.b16 %v3242, %v3238
    %v3691 = vpack.c.b16 %v3243, %v3239
    %v3692 = vpack.c.b16 %v3244, %v3240
    %v3693 = vpack.c.b16 %v3249, %v3245
    %v3694 = vpack.c.b16 %v3250, %v3246
    %v3695 = vpack.c.b16 %v3251, %v3247
    %v3696 = vpack.c.b16 %v3252, %v3248
    %v3697 = vpack.c.b16 %v3257, %v3253
    %v3698 = vpack.c.b16 %v3258, %v3254
    %v3699 = vpack.c.b16 %v3259, %v3255
    %v3700 = vpack.c.b16 %v3260, %v3256
    %v3701 = vpack.c.b16 %v3265, %v3261
    %v3702 = vpack.c.b16 %v3266, %v3262
    %v3703 = vpack.c.b16 %v3267, %v3263
    %v3704 = vpack.c.b16 %v3268, %v3264
    %v3705 = vpack.c.b16 %v3273, %v3269
    %v3706 = vpack.c.b16 %v3274, %v3270
    %v3707 = vpack.c.b16 %v3275, %v3271
    %v3708 = vpack.c.b16 %v3276, %v3272
    %v3709 = vpack.c.b16 %v3281, %v3277
    %v3710 = vpack.c.b16 %v3282, %v3278
    %v3711 = vpack.c.b16 %v3283, %v3279
    %v3712 = vpack.c.b16 %v3284, %v3280
    %v3713 = vpack.c.b16 %v3289, %v3285
    %v3714 = vpack.c.b16 %v3290, %v3286
    %v3715 = vpack.c.b16 %v3291, %v3287
    %v3716 = vpack.c.b16 %v3292, %v3288
    %v3717 = vpack.c.b16 %v3297, %v3293
    %v3718 = vpack.c.b16 %v3298, %v3294
    %v3719 = vpack.c.b16 %v3299, %v3295
    %v3720 = vpack.c.b16 %v3300, %v3296
    %v3721 = vpack.c.b16 %v3305, %v3301
    %v3722 = vpack.c.b16 %v3306, %v3302
    %v3723 = vpack.c.b16 %v3307, %v3303
    %v3724 = vpack.c.b16 %v3308, %v3304
    %v3725 = vpack.c.b16 %v3313, %v3309
    %v3726 = vpack.c.b16 %v3314, %v3310
    %v3727 = vpack.c.b16 %v3315, %v3311
    %v3728 = vpack.c.b16 %v3316, %v3312
    %v3729 = vpack.c.b16 %v3321, %v3317
    %v3730 = vpack.c.b16 %v3322, %v3318
    %v3731 = vpack.c.b16 %v3323, %v3319
    %v3732 = vpack.c.b16 %v3324, %v3320
    %v3733 = vpack.c.b16 %v3329, %v3325
    %v3734 = vpack.c.b16 %v3330, %v3326
    %v3735 = vpack.c.b16 %v3331, %v3327
    %v3736 = vpack.c.b16 %v3332, %v3328
    %v3737 = vpack.c.b16 %v3337, %v3333
    %v3738 = vpack.c.b16 %v3338, %v3334
    %v3739 = vpack.c.b16 %v3339, %v3335
    %v3740 = vpack.c.b16 %v3340, %v3336
    %v3741 = vpack.c.b16 %v3345, %v3341
    %v3742 = vpack.c.b16 %v3346, %v3342
    %v3743 = vpack.c.b16 %v3347, %v3343
    %v3744 = vpack.c.b16 %v3348, %v3344
    %v3745 = vpack.c.b16 %v3353, %v3349
    %v3746 = vpack.c.b16 %v3354, %v3350
    %v3747 = vpack.c.b16 %v3355, %v3351
    %v3748 = vpack.c.b16 %v3356, %v3352
    %v3749 = vpack.c.b16 %v3361, %v3357
    %v3750 = vpack.c.b16 %v3362, %v3358
    %v3751 = vpack.c.b16 %v3363, %v3359
    %v3752 = vpack.c.b16 %v3364, %v3360
    %v3753 = vpack.c.b16 %v3369, %v3365
    %v3754 = vpack.c.b16 %v3370, %v3366
    %v3755 = vpack.c.b16 %v3371, %v3367
    %v3756 = vpack.c.b16 %v3372, %v3368
    %v3757 = vpack.c.b16 %v3377, %v3373
    %v3758 = vpack.c.b16 %v3378, %v3374
    %v3759 = vpack.c.b16 %v3379, %v3375
    %v3760 = vpack.c.b16 %v3380, %v3376
    %v3761 = vpack.c.b16 %v3385, %v3381
    %v3762 = vpack.c.b16 %v3386, %v3382
    %v3763 = vpack.c.b16 %v3387, %v3383
    %v3764 = vpack.c.b16 %v3388, %v3384
    %v3765 = vpack.c.b16 %v3393, %v3389
    %v3766 = vpack.c.b16 %v3394, %v3390
    %v3767 = vpack.c.b16 %v3395, %v3391
    %v3768 = vpack.c.b16 %v3396, %v3392
    %v3769 = vpack.c.b16 %v3401, %v3397
    %v3770 = vpack.c.b16 %v3402, %v3398
    %v3771 = vpack.c.b16 %v3403, %v3399
    %v3772 = vpack.c.b16 %v3404, %v3400
    %v3773 = vpack.c.b16 %v3409, %v3405
    %v3774 = vpack.c.b16 %v3410, %v3406
    %v3775 = vpack.c.b16 %v3411, %v3407
    %v3776 = vpack.c.b16 %v3412, %v3408
    %v3777 = vpack.c.b16 %v3417, %v3413
    %v3778 = vpack.c.b16 %v3418, %v3414
    %v3779 = vpack.c.b16 %v3419, %v3415
    %v3780 = vpack.c.b16 %v3420, %v3416
    %v3781 = vpack.c.b16 %v3425, %v3421
    %v3782 = vpack.c.b16 %v3426, %v3422
    %v3783 = vpack.c.b16 %v3427, %v3423
    %v3784 = vpack.c.b16 %v3428, %v3424
    %v3785 = vpack.c.b16 %v3433, %v3429
    %v3786 = vpack.c.b16 %v3434, %v3430
    %v3787 = vpack.c.b16 %v3435, %v3431
    %v3788 = vpack.c.b16 %v3436, %v3432
    %v3789 = vpack.c.b16 %v3441, %v3437
    %v3790 = vpack.c.b16 %v3442, %v3438
    %v3791 = vpack.c.b16 %v3443, %v3439
    %v3792 = vpack.c.b16 %v3444, %v3440
    %v3793 = vpack.c.b16 %v3449, %v3445
    %v3794 = vpack.c.b16 %v3450, %v3446
    %v3795 = vpack.c.b16 %v3451, %v3447
    %v3796 = vpack.c.b16 %v3452, %v3448
    %v3797 = vpack.c.b16 %v3457, %v3453
    %v3798 = vpack.c.b16 %v3458, %v3454
    %v3799 = vpack.c.b16 %v3459, %v3455
    %v3800 = vpack.c.b16 %v3460, %v3456
    %v3801 = vpack.c.b16 %v3465, %v3461
    %v3802 = vpack.c.b16 %v3466, %v3462
    %v3803 = vpack.c.b16 %v3467, %v3463
    %v3804 = vpack.c.b16 %v3468, %v3464
    %v3805 = vpack.c.b16 %v3473, %v3469
    %v3806 = vpack.c.b16 %v3474, %v3470
    %v3807 = vpack.c.b16 %v3475, %v3471
    %v3808 = vpack.c.b16 %v3476, %v3472
    %v3809 = vpack.c.b16 %v3481, %v3477
    %v3810 = vpack.c.b16 %v3482, %v3478
    %v3811 = vpack.c.b16 %v3483, %v3479
    %v3812 = vpack.c.b16 %v3484, %v3480
    %v3813 = vpack.c.b16 %v3489, %v3485
    %v3814 = vpack.c.b16 %v3490, %v3486
    %v3815 = vpack.c.b16 %v3491, %v3487
    %v3816 = vpack.c.b16 %v3492, %v3488
    %v3817 = vpack.c.b16 %v3497, %v3493
    %v3818 = vpack.c.b16 %v3498, %v3494
    %v3819 = vpack.c.b16 %v3499, %v3495
    %v3820 = vpack.c.b16 %v3500, %v3496
    %v3821 = vpack.c.b16 %v3505, %v3501
    %v3822 = vpack.c.b16 %v3506, %v3502
    %v3823 = vpack.c.b16 %v3507, %v3503
    %v3824 = vpack.c.b16 %v3508, %v3504
    %v3825 = vpack.c.b16 %v3513, %v3509
    %v3826 = vpack.c.b16 %v3514, %v3510
    %v3827 = vpack.c.b16 %v3515, %v3511
    %v3828 = vpack.c.b16 %v3516, %v3512
    %v3829 = vpack.c.b16 %v3521, %v3517
    %v3830 = vpack.c.b16 %v3522, %v3518
    %v3831 = vpack.c.b16 %v3523, %v3519
    %v3832 = vpack.c.b16 %v3524, %v3520
    %v3833 = vpack.c.b16 %v3529, %v3525
    %v3834 = vpack.c.b16 %v3530, %v3526
    %v3835 = vpack.c.b16 %v3531, %v3527
    %v3836 = vpack.c.b16 %v3532, %v3528
    %v3837 = vpack.c.b16 %v3537, %v3533
    %v3838 = vpack.c.b16 %v3538, %v3534
    %v3839 = vpack.c.b16 %v3539, %v3535
    %v3840 = vpack.c.b16 %v3540, %v3536
    %v3841 = vpack.c.b16 %v3545, %v3541
    %v3842 = vpack.c.b16 %v3546, %v3542
    %v3843 = vpack.c.b16 %v3547, %v3543
    %v3844 = vpack.c.b16 %v3548, %v3544
    %v3845 = vpack.c.b16 %v3553, %v3549
    %v3846 = vpack.c.b16 %v3554, %v3550
    %v3847 = vpack.c.b16 %v3555, %v3551
    %v3848 = vpack.c.b16 %v3556, %v3552
    %v3849 = vpack.c.b16 %v3561, %v3557
    %v3850 = vpack.c.b16 %v3562, %v3558
    %v3851 = vpack.c.b16 %v3563, %v3559
    %v3852 = vpack.c.b16 %v3564, %v3560
    %v3853 = vpack.c.b16 %v3569, %v3565
    %v3854 = vpack.c.b16 %v3570, %v3566
    %v3855 = vpack.c.b16 %v3571, %v3567
    %v3856 = vpack.c.b16 %v3572, %v3568
    %v3857 = vpack.c.b16 %v3577, %v3573
    %v3858 = vpack.c.b16 %v3578, %v3574
    %v3859 = vpack.c.b16 %v3579, %v3575
    %v3860 = vpack.c.b16 %v3580, %v3576
    %v3861 = vpack.c.b16 %v3585, %v3581
    %v3862 = vpack.c.b16 %v3586, %v3582
    %v3863 = vpack.c.b16 %v3587, %v3583
    %v3864 = vpack.c.b16 %v3588, %v3584
    %v3865 = vpack.c.b16 %v3593, %v3589
    %v3866 = vpack.c.b16 %v3594, %v3590
    %v3867 = vpack.c.b16 %v3595, %v3591
    %v3868 = vpack.c.b16 %v3596, %v3592
    %v3869 = vpack.c.b16 %v3601, %v3597
    %v3870 = vpack.c.b16 %v3602, %v3598
    %v3871 = vpack.c.b16 %v3603, %v3599
    %v3872 = vpack.c.b16 %v3604, %v3600
    %v3873 = vpack.c.b16 %v3609, %v3605
    %v3874 = vpack.c.b16 %v3610, %v3606
    %v3875 = vpack.c.b16 %v3611, %v3607
    %v3876 = vpack.c.b16 %v3612, %v3608
    %v3877 = vpack.c.b16 %v3617, %v3613
    %v3878 = vpack.c.b16 %v3618, %v3614
    %v3879 = vpack.c.b16 %v3619, %v3615
    %v3880 = vpack.c.b16 %v3620, %v3616
    %v3881 = vpack.c.b16 %v3625, %v3621
    %v3882 = vpack.c.b16 %v3626, %v3622
    %v3883 = vpack.c.b16 %v3627, %v3623
    %v3884 = vpack.c.b16 %v3628, %v3624
    %4141 = vmatprep.subr.bf16.mxu0 %v3630
    %4142 = vmatpush1.bf16.msra.mxu0 %v3629
    %4143 = vmatprep.subr.bf16.mxu0 %v3634
    %4144 = vmatpush1.bf16.msra.mxu0 %v3633
    %4145 = vmatprep.subr.bf16.mxu0 %v3638
    %4146 = vmatpush1.bf16.msra.mxu0 %v3637
    %4147 = vmatprep.subr.bf16.mxu0 %v3642
    %4148 = vmatpush1.bf16.msra.mxu0 %v3641
    %4149 = vmatprep.subr.bf16.mxu0 %v3646
    %4150 = vmatpush1.bf16.msra.mxu0 %v3645
    %4151 = vmatprep.subr.bf16.mxu0 %v3650
    %4152 = vmatpush1.bf16.msra.mxu0 %v3649
    %4153 = vmatprep.subr.bf16.mxu0 %v3654
    %4154 = vmatpush1.bf16.msra.mxu0 %v3653
    %4155 = vmatprep.subr.bf16.mxu0 %v3658
    %4156 = vmatpush1.bf16.msra.mxu0 %v3657
    %4157 = vmatprep.subr.bf16.mxu0 %v3662
    %4158 = vmatpush1.bf16.msra.mxu0 %v3661
    %4159 = vmatprep.subr.bf16.mxu0 %v3666
    %4160 = vmatpush1.bf16.msra.mxu0 %v3665
    %4161 = vmatprep.subr.bf16.mxu0 %v3670
    %4162 = vmatpush1.bf16.msra.mxu0 %v3669
    %4163 = vmatprep.subr.bf16.mxu0 %v3674
    %4164 = vmatpush1.bf16.msra.mxu0 %v3673
    %4165 = vmatprep.subr.bf16.mxu0 %v3678
    %4166 = vmatpush1.bf16.msra.mxu0 %v3677
    %4167 = vmatprep.subr.bf16.mxu0 %v3682
    %4168 = vmatpush1.bf16.msra.mxu0 %v3681
    %4169 = vmatprep.subr.bf16.mxu0 %v3686
    %4170 = vmatpush1.bf16.msra.mxu0 %v3685
    %4171 = vmatprep.subr.bf16.mxu0 %v3690
    %4172 = vmatpush1.bf16.msra.mxu0 %v3689
    %4173 = vmatprep.mubr.bf16.mxu0 %v2576
    %4174 = vmatmul.mubr.bf16.gmra.mrb[0].mxu0 %v2575
    %v4175 = vpop.f32.mrb[0].mxu0
    %v4176 = vadd.f32 %v2844, %v4175
    %v4177 = vpop.f32.mrb[0].mxu0
    %v4178 = vadd.f32 %v2848, %v4177
    %v4179 = vpop.f32.mrb[0].mxu0
    %v4180 = vadd.f32 %v2844, %v4179
    %v4181 = vpop.f32.mrb[0].mxu0
    %v4182 = vadd.f32 %v2848, %v4181
    %4183 = vdwg.mxu0
    %4184 = vmatprep.subr.bf16.mxu0 %v3694
    %4185 = vmatpush1.bf16.msra.mxu0 %v3693
    %4186 = vmatprep.subr.bf16.mxu0 %v3698
    %4187 = vmatpush1.bf16.msra.mxu0 %v3697
    %4188 = vmatprep.subr.bf16.mxu0 %v3702
    %4189 = vmatpush1.bf16.msra.mxu0 %v3701
    %4190 = vmatprep.subr.bf16.mxu0 %v3706
    %4191 = vmatpush1.bf16.msra.mxu0 %v3705
    %4192 = vmatprep.subr.bf16.mxu0 %v3710
    %4193 = vmatpush1.bf16.msra.mxu0 %v3709
    %4194 = vmatprep.subr.bf16.mxu0 %v3714
    %4195 = vmatpush1.bf16.msra.mxu0 %v3713
    %4196 = vmatprep.subr.bf16.mxu0 %v3718
    %4197 = vmatpush1.bf16.msra.mxu0 %v3717
    %4198 = vmatprep.subr.bf16.mxu0 %v3722
    %4199 = vmatpush1.bf16.msra.mxu0 %v3721
    %4200 = vmatprep.subr.bf16.mxu0 %v3726
    %4201 = vmatpush1.bf16.msra.mxu0 %v3725
    %4202 = vmatprep.subr.bf16.mxu0 %v3730
    %4203 = vmatpush1.bf16.msra.mxu0 %v3729
    %4204 = vmatprep.subr.bf16.mxu0 %v3734
    %4205 = vmatpush1.bf16.msra.mxu0 %v3733
    %4206 = vmatprep.subr.bf16.mxu0 %v3738
    %4207 = vmatpush1.bf16.msra.mxu0 %v3737
    %4208 = vmatprep.subr.bf16.mxu0 %v3742
    %4209 = vmatpush1.bf16.msra.mxu0 %v3741
    %4210 = vmatprep.subr.bf16.mxu0 %v3746
    %4211 = vmatpush1.bf16.msra.mxu0 %v3745
    %4212 = vmatprep.subr.bf16.mxu0 %v3750
    %4213 = vmatpush1.bf16.msra.mxu0 %v3749
    %4214 = vmatprep.subr.bf16.mxu0 %v3754
    %4215 = vmatpush1.bf16.msra.mxu0 %v3753
    %4216 = vmatprep.mubr.bf16.mxu0 %v2578
    %4217 = vmatmul.mubr.bf16.gmra.mrb[0].mxu0 %v2577
    %v4218 = vpop.f32.mrb[0].mxu0
    %v4219 = vadd.f32 %v4176, %v4218
    %v4220 = vpop.f32.mrb[0].mxu0
    %v4221 = vadd.f32 %v4178, %v4220
    %v4222 = vpop.f32.mrb[0].mxu0
    %v4223 = vadd.f32 %v4180, %v4222
    %v4224 = vpop.f32.mrb[0].mxu0
    %v4225 = vadd.f32 %v4182, %v4224
    %4226 = vdwg.mxu0
    %4227 = vmatprep.subr.bf16.mxu0 %v3758
    %4228 = vmatpush1.bf16.msra.mxu0 %v3757
    %4229 = vmatprep.subr.bf16.mxu0 %v3762
    %4230 = vmatpush1.bf16.msra.mxu0 %v3761
    %4231 = vmatprep.subr.bf16.mxu0 %v3766
    %4232 = vmatpush1.bf16.msra.mxu0 %v3765
    %4233 = vmatprep.subr.bf16.mxu0 %v3770
    %4234 = vmatpush1.bf16.msra.mxu0 %v3769
    %4235 = vmatprep.subr.bf16.mxu0 %v3774
    %4236 = vmatpush1.bf16.msra.mxu0 %v3773
    %4237 = vmatprep.subr.bf16.mxu0 %v3778
    %4238 = vmatpush1.bf16.msra.mxu0 %v3777
    %4239 = vmatprep.subr.bf16.mxu0 %v3782
    %4240 = vmatpush1.bf16.msra.mxu0 %v3781
    %4241 = vmatprep.subr.bf16.mxu0 %v3786
    %4242 = vmatpush1.bf16.msra.mxu0 %v3785
    %4243 = vmatprep.subr.bf16.mxu0 %v3790
    %4244 = vmatpush1.bf16.msra.mxu0 %v3789
    %4245 = vmatprep.subr.bf16.mxu0 %v3794
    %4246 = vmatpush1.bf16.msra.mxu0 %v3793
    %4247 = vmatprep.subr.bf16.mxu0 %v3798
    %4248 = vmatpush1.bf16.msra.mxu0 %v3797
    %4249 = vmatprep.subr.bf16.mxu0 %v3802
    %4250 = vmatpush1.bf16.msra.mxu0 %v3801
    %4251 = vmatprep.subr.bf16.mxu0 %v3806
    %4252 = vmatpush1.bf16.msra.mxu0 %v3805
    %4253 = vmatprep.subr.bf16.mxu0 %v3810
    %4254 = vmatpush1.bf16.msra.mxu0 %v3809
    %4255 = vmatprep.subr.bf16.mxu0 %v3814
    %4256 = vmatpush1.bf16.msra.mxu0 %v3813
    %4257 = vmatprep.subr.bf16.mxu0 %v3818
    %4258 = vmatpush1.bf16.msra.mxu0 %v3817
    %4259 = vmatprep.mubr.bf16.mxu0 %v2580
    %4260 = vmatmul.mubr.bf16.gmra.mrb[0].mxu0 %v2579
    %v4261 = vpop.f32.mrb[0].mxu0
    %v4262 = vadd.f32 %v4219, %v4261
    %v4263 = vpop.f32.mrb[0].mxu0
    %v4264 = vadd.f32 %v4221, %v4263
    %v4265 = vpop.f32.mrb[0].mxu0
    %v4266 = vadd.f32 %v4223, %v4265
    %v4267 = vpop.f32.mrb[0].mxu0
    %v4268 = vadd.f32 %v4225, %v4267
    %4269 = vdwg.mxu0
    %4270 = vmatprep.subr.bf16.mxu0 %v3822
    %4271 = vmatpush1.bf16.msra.mxu0 %v3821
    %4272 = vmatprep.subr.bf16.mxu0 %v3826
    %4273 = vmatpush1.bf16.msra.mxu0 %v3825
    %4274 = vmatprep.subr.bf16.mxu0 %v3830
    %4275 = vmatpush1.bf16.msra.mxu0 %v3829
    %4276 = vmatprep.subr.bf16.mxu0 %v3834
    %4277 = vmatpush1.bf16.msra.mxu0 %v3833
    %4278 = vmatprep.subr.bf16.mxu0 %v3838
    %4279 = vmatpush1.bf16.msra.mxu0 %v3837
    %4280 = vmatprep.subr.bf16.mxu0 %v3842
    %4281 = vmatpush1.bf16.msra.mxu0 %v3841
    %4282 = vmatprep.subr.bf16.mxu0 %v3846
    %4283 = vmatpush1.bf16.msra.mxu0 %v3845
    %4284 = vmatprep.subr.bf16.mxu0 %v3850
    %4285 = vmatpush1.bf16.msra.mxu0 %v3849
    %4286 = vmatprep.subr.bf16.mxu0 %v3854
    %4287 = vmatpush1.bf16.msra.mxu0 %v3853
    %4288 = vmatprep.subr.bf16.mxu0 %v3858
    %4289 = vmatpush1.bf16.msra.mxu0 %v3857
    %4290 = vmatprep.subr.bf16.mxu0 %v3862
    %4291 = vmatpush1.bf16.msra.mxu0 %v3861
    %4292 = vmatprep.subr.bf16.mxu0 %v3866
    %4293 = vmatpush1.bf16.msra.mxu0 %v3865
    %4294 = vmatprep.subr.bf16.mxu0 %v3870
    %4295 = vmatpush1.bf16.msra.mxu0 %v3869
    %4296 = vmatprep.subr.bf16.mxu0 %v3874
    %4297 = vmatpush1.bf16.msra.mxu0 %v3873
    %4298 = vmatprep.subr.bf16.mxu0 %v3878
    %4299 = vmatpush1.bf16.msra.mxu0 %v3877
    %4300 = vmatprep.subr.bf16.mxu0 %v3882
    %4301 = vmatpush1.bf16.msra.mxu0 %v3881
    %4302 = vmatprep.mubr.bf16.mxu0 %v2582
    %4303 = vmatmul.mubr.bf16.gmra.mrb[0].mxu0 %v2581
    %v4304 = vpop.f32.mrb[0].mxu0
    %v4305 = vadd.f32 %v4262, %v4304
    %v4306 = vpop.f32.mrb[0].mxu0
    %v4307 = vadd.f32 %v4264, %v4306
    %v4308 = vpop.f32.mrb[0].mxu0
    %v4309 = vadd.f32 %v4266, %v4308
    %v4310 = vpop.f32.mrb[0].mxu0
    %v4311 = vadd.f32 %v4268, %v4310
    %4312 = vdwg.mxu0
    %4313 = vmatprep.subr.bf16.mxu0 %v3632
    %4314 = vmatpush1.bf16.msra.mxu0 %v3631
    %4315 = vmatprep.subr.bf16.mxu0 %v3636
    %4316 = vmatpush1.bf16.msra.mxu0 %v3635
    %4317 = vmatprep.subr.bf16.mxu0 %v3640
    %4318 = vmatpush1.bf16.msra.mxu0 %v3639
    %4319 = vmatprep.subr.bf16.mxu0 %v3644
    %4320 = vmatpush1.bf16.msra.mxu0 %v3643
    %4321 = vmatprep.subr.bf16.mxu0 %v3648
    %4322 = vmatpush1.bf16.msra.mxu0 %v3647
    %4323 = vmatprep.subr.bf16.mxu0 %v3652
    %4324 = vmatpush1.bf16.msra.mxu0 %v3651
    %4325 = vmatprep.subr.bf16.mxu0 %v3656
    %4326 = vmatpush1.bf16.msra.mxu0 %v3655
    %4327 = vmatprep.subr.bf16.mxu0 %v3660
    %4328 = vmatpush1.bf16.msra.mxu0 %v3659
    %4329 = vmatprep.subr.bf16.mxu0 %v3664
    %4330 = vmatpush1.bf16.msra.mxu0 %v3663
    %4331 = vmatprep.subr.bf16.mxu0 %v3668
    %4332 = vmatpush1.bf16.msra.mxu0 %v3667
    %4333 = vmatprep.subr.bf16.mxu0 %v3672
    %4334 = vmatpush1.bf16.msra.mxu0 %v3671
    %4335 = vmatprep.subr.bf16.mxu0 %v3676
    %4336 = vmatpush1.bf16.msra.mxu0 %v3675
    %4337 = vmatprep.subr.bf16.mxu0 %v3680
    %4338 = vmatpush1.bf16.msra.mxu0 %v3679
    %4339 = vmatprep.subr.bf16.mxu0 %v3684
    %4340 = vmatpush1.bf16.msra.mxu0 %v3683
    %4341 = vmatprep.subr.bf16.mxu0 %v3688
    %4342 = vmatpush1.bf16.msra.mxu0 %v3687
    %4343 = vmatprep.subr.bf16.mxu0 %v3692
    %4344 = vmatpush1.bf16.msra.mxu0 %v3691
    %4345 = vmatprep.mubr.bf16.mxu0 %v2576
    %4346 = vmatmul.mubr.bf16.gmra.mrb[0].mxu0 %v2575
    %v4347 = vpop.f32.mrb[0].mxu0
    %v4348 = vadd.f32 %v2852, %v4347
    %v4349 = vpop.f32.mrb[0].mxu0
    %v4350 = vadd.f32 %v2856, %v4349
    %v4351 = vpop.f32.mrb[0].mxu0
    %v4352 = vadd.f32 %v2852, %v4351
    %v4353 = vpop.f32.mrb[0].mxu0
    %v4354 = vadd.f32 %v2856, %v4353
    %4355 = vdwg.mxu0
    %4356 = vmatprep.subr.bf16.mxu0 %v3696
    %4357 = vmatpush1.bf16.msra.mxu0 %v3695
    %4358 = vmatprep.subr.bf16.mxu0 %v3700
    %4359 = vmatpush1.bf16.msra.mxu0 %v3699
    %4360 = vmatprep.subr.bf16.mxu0 %v3704
    %4361 = vmatpush1.bf16.msra.mxu0 %v3703
    %4362 = vmatprep.subr.bf16.mxu0 %v3708
    %4363 = vmatpush1.bf16.msra.mxu0 %v3707
    %4364 = vmatprep.subr.bf16.mxu0 %v3712
    %4365 = vmatpush1.bf16.msra.mxu0 %v3711
    %4366 = vmatprep.subr.bf16.mxu0 %v3716
    %4367 = vmatpush1.bf16.msra.mxu0 %v3715
    %4368 = vmatprep.subr.bf16.mxu0 %v3720
    %4369 = vmatpush1.bf16.msra.mxu0 %v3719
    %4370 = vmatprep.subr.bf16.mxu0 %v3724
    %4371 = vmatpush1.bf16.msra.mxu0 %v3723
    %4372 = vmatprep.subr.bf16.mxu0 %v3728
    %4373 = vmatpush1.bf16.msra.mxu0 %v3727
    %4374 = vmatprep.subr.bf16.mxu0 %v3732
    %4375 = vmatpush1.bf16.msra.mxu0 %v3731
    %4376 = vmatprep.subr.bf16.mxu0 %v3736
    %4377 = vmatpush1.bf16.msra.mxu0 %v3735
    %4378 = vmatprep.subr.bf16.mxu0 %v3740
    %4379 = vmatpush1.bf16.msra.mxu0 %v3739
    %4380 = vmatprep.subr.bf16.mxu0 %v3744
    %4381 = vmatpush1.bf16.msra.mxu0 %v3743
    %4382 = vmatprep.subr.bf16.mxu0 %v3748
    %4383 = vmatpush1.bf16.msra.mxu0 %v3747
    %4384 = vmatprep.subr.bf16.mxu0 %v3752
    %4385 = vmatpush1.bf16.msra.mxu0 %v3751
    %4386 = vmatprep.subr.bf16.mxu0 %v3756
    %4387 = vmatpush1.bf16.msra.mxu0 %v3755
    %4388 = vmatprep.mubr.bf16.mxu0 %v2578
    %4389 = vmatmul.mubr.bf16.gmra.mrb[0].mxu0 %v2577
    %v4390 = vpop.f32.mrb[0].mxu0
    %v4391 = vadd.f32 %v4348, %v4390
    %v4392 = vpop.f32.mrb[0].mxu0
    %v4393 = vadd.f32 %v4350, %v4392
    %v4394 = vpop.f32.mrb[0].mxu0
    %v4395 = vadd.f32 %v4352, %v4394
    %v4396 = vpop.f32.mrb[0].mxu0
    %v4397 = vadd.f32 %v4354, %v4396
    %4398 = vdwg.mxu0
    %4399 = vmatprep.subr.bf16.mxu0 %v3760
    %4400 = vmatpush1.bf16.msra.mxu0 %v3759
    %4401 = vmatprep.subr.bf16.mxu0 %v3764
    %4402 = vmatpush1.bf16.msra.mxu0 %v3763
    %4403 = vmatprep.subr.bf16.mxu0 %v3768
    %4404 = vmatpush1.bf16.msra.mxu0 %v3767
    %4405 = vmatprep.subr.bf16.mxu0 %v3772
    %4406 = vmatpush1.bf16.msra.mxu0 %v3771
    %4407 = vmatprep.subr.bf16.mxu0 %v3776
    %4408 = vmatpush1.bf16.msra.mxu0 %v3775
    %4409 = vmatprep.subr.bf16.mxu0 %v3780
    %4410 = vmatpush1.bf16.msra.mxu0 %v3779
    %4411 = vmatprep.subr.bf16.mxu0 %v3784
    %4412 = vmatpush1.bf16.msra.mxu0 %v3783
    %4413 = vmatprep.subr.bf16.mxu0 %v3788
    %4414 = vmatpush1.bf16.msra.mxu0 %v3787
    %4415 = vmatprep.subr.bf16.mxu0 %v3792
    %4416 = vmatpush1.bf16.msra.mxu0 %v3791
    %4417 = vmatprep.subr.bf16.mxu0 %v3796
    %4418 = vmatpush1.bf16.msra.mxu0 %v3795
    %4419 = vmatprep.subr.bf16.mxu0 %v3800
    %4420 = vmatpush1.bf16.msra.mxu0 %v3799
    %4421 = vmatprep.subr.bf16.mxu0 %v3804
    %4422 = vmatpush1.bf16.msra.mxu0 %v3803
    %4423 = vmatprep.subr.bf16.mxu0 %v3808
    %4424 = vmatpush1.bf16.msra.mxu0 %v3807
    %4425 = vmatprep.subr.bf16.mxu0 %v3812
    %4426 = vmatpush1.bf16.msra.mxu0 %v3811
    %4427 = vmatprep.subr.bf16.mxu0 %v3816
    %4428 = vmatpush1.bf16.msra.mxu0 %v3815
    %4429 = vmatprep.subr.bf16.mxu0 %v3820
    %4430 = vmatpush1.bf16.msra.mxu0 %v3819
    %4431 = vmatprep.mubr.bf16.mxu0 %v2580
    %4432 = vmatmul.mubr.bf16.gmra.mrb[0].mxu0 %v2579
    %v4433 = vpop.f32.mrb[0].mxu0
    %v4434 = vadd.f32 %v4391, %v4433
    %v4435 = vpop.f32.mrb[0].mxu0
    %v4436 = vadd.f32 %v4393, %v4435
    %v4437 = vpop.f32.mrb[0].mxu0
    %v4438 = vadd.f32 %v4395, %v4437
    %v4439 = vpop.f32.mrb[0].mxu0
    %v4440 = vadd.f32 %v4397, %v4439
    %4441 = vdwg.mxu0
    %4442 = vmatprep.subr.bf16.mxu0 %v3824
    %4443 = vmatpush1.bf16.msra.mxu0 %v3823
    %4444 = vmatprep.subr.bf16.mxu0 %v3828
    %4445 = vmatpush1.bf16.msra.mxu0 %v3827
    %4446 = vmatprep.subr.bf16.mxu0 %v3832
    %4447 = vmatpush1.bf16.msra.mxu0 %v3831
    %4448 = vmatprep.subr.bf16.mxu0 %v3836
    %4449 = vmatpush1.bf16.msra.mxu0 %v3835
    %4450 = vmatprep.subr.bf16.mxu0 %v3840
    %4451 = vmatpush1.bf16.msra.mxu0 %v3839
    %4452 = vmatprep.subr.bf16.mxu0 %v3844
    %4453 = vmatpush1.bf16.msra.mxu0 %v3843
    %4454 = vmatprep.subr.bf16.mxu0 %v3848
    %4455 = vmatpush1.bf16.msra.mxu0 %v3847
    %4456 = vmatprep.subr.bf16.mxu0 %v3852
    %4457 = vmatpush1.bf16.msra.mxu0 %v3851
    %4458 = vmatprep.subr.bf16.mxu0 %v3856
    %4459 = vmatpush1.bf16.msra.mxu0 %v3855
    %4460 = vmatprep.subr.bf16.mxu0 %v3860
    %4461 = vmatpush1.bf16.msra.mxu0 %v3859
    %4462 = vmatprep.subr.bf16.mxu0 %v3864
    %4463 = vmatpush1.bf16.msra.mxu0 %v3863
    %4464 = vmatprep.subr.bf16.mxu0 %v3868
    %4465 = vmatpush1.bf16.msra.mxu0 %v3867
    %4466 = vmatprep.subr.bf16.mxu0 %v3872
    %4467 = vmatpush1.bf16.msra.mxu0 %v3871
    %4468 = vmatprep.subr.bf16.mxu0 %v3876
    %4469 = vmatpush1.bf16.msra.mxu0 %v3875
    %4470 = vmatprep.subr.bf16.mxu0 %v3880
    %4471 = vmatpush1.bf16.msra.mxu0 %v3879
    %4472 = vmatprep.subr.bf16.mxu0 %v3884
    %4473 = vmatpush1.bf16.msra.mxu0 %v3883
    %4474 = vmatprep.mubr.bf16.mxu0 %v2582
    %4475 = vmatmul.mubr.bf16.gmra.mrb[0].mxu0 %v2581
    %v4476 = vpop.f32.mrb[0].mxu0
    %v4477 = vadd.f32 %v4434, %v4476
    %v4478 = vpop.f32.mrb[0].mxu0
    %v4479 = vadd.f32 %v4436, %v4478
    %v4480 = vpop.f32.mrb[0].mxu0
    %v4481 = vadd.f32 %v4438, %v4480
    %v4482 = vpop.f32.mrb[0].mxu0
    %v4483 = vadd.f32 %v4440, %v4482
    %4484 = vdwg.mxu0
    %v4485 = vmax.f32 %v4305, 0.0
    %v4486 = vmax.f32 %v4307, 0.0
    %v4487 = vmax.f32 %v4477, 0.0
    %v4488 = vmax.f32 %v4479, 0.0
    %v4489 = vmax.f32 %v4309, 0.0
    %v4490 = vmax.f32 %v4311, 0.0
    %v4491 = vmax.f32 %v4481, 0.0
    %v4492 = vmax.f32 %v4483, 0.0
    %v4493 = vpack.c.bf16 %v4489, %v4485
    %v4494 = vpack.c.bf16 %v4490, %v4486
    %v4495 = vpack.c.bf16 %v4491, %v4487
    %v4496 = vpack.c.bf16 %v4492, %v4488
    %v4497 = vld [vmem:[#allocation11] sm:$0xff]
    %v4498 = vld [vmem:[#allocation11 + $0x8] sm:$0xff]
    %v4499 = vld [vmem:[#allocation11 + $0x10] sm:$0xff]
    %v4500 = vld [vmem:[#allocation11 + $0x18] sm:$0xff]
    %v4501 = vld [vmem:[#allocation11 + $0x20] sm:$0xff]
    %v4502 = vld [vmem:[#allocation11 + $0x28] sm:$0xff]
    %v4503 = vld [vmem:[#allocation11 + $0x30] sm:$0xff]
    %v4504 = vld [vmem:[#allocation11 + $0x38] sm:$0xff]
    %v4505 = vld [vmem:[#allocation11 + $0x40] sm:$0xff]
    %v4506 = vld [vmem:[#allocation11 + $0x48] sm:$0xff]
    %v4507 = vld [vmem:[#allocation11 + $0x50] sm:$0xff]
    %v4508 = vld [vmem:[#allocation11 + $0x58] sm:$0xff]
    %v4509 = vld [vmem:[#allocation11 + $0x60] sm:$0xff]
    %v4510 = vld [vmem:[#allocation11 + $0x68] sm:$0xff]
    %v4511 = vld [vmem:[#allocation11 + $0x70] sm:$0xff]
    %v4512 = vld [vmem:[#allocation11 + $0x78] sm:$0xff]
    %v4513 = vld [vmem:[#allocation11 + $0x80] sm:$0xff]
    %v4514 = vld [vmem:[#allocation11 + $0x88] sm:$0xff]
    %v4515 = vld [vmem:[#allocation11 + $0x90] sm:$0xff]
    %v4516 = vld [vmem:[#allocation11 + $0x98] sm:$0xff]
    %v4517 = vld [vmem:[#allocation11 + $0xa0] sm:$0xff]
    %v4518 = vld [vmem:[#allocation11 + $0xa8] sm:$0xff]
    %v4519 = vld [vmem:[#allocation11 + $0xb0] sm:$0xff]
    %v4520 = vld [vmem:[#allocation11 + $0xb8] sm:$0xff]
    %v4521 = vld [vmem:[#allocation11 + $0xc0] sm:$0xff]
    %v4522 = vld [vmem:[#allocation11 + $0xc8] sm:$0xff]
    %v4523 = vld [vmem:[#allocation11 + $0xd0] sm:$0xff]
    %v4524 = vld [vmem:[#allocation11 + $0xd8] sm:$0xff]
    %v4525 = vld [vmem:[#allocation11 + $0xe0] sm:$0xff]
    %v4526 = vld [vmem:[#allocation11 + $0xe8] sm:$0xff]
    %v4527 = vld [vmem:[#allocation11 + $0xf0] sm:$0xff]
    %v4528 = vld [vmem:[#allocation11 + $0xf8] sm:$0xff]
    %v4529 = vld [vmem:[#allocation11 + $0x100] sm:$0xff]
    %v4530 = vld [vmem:[#allocation11 + $0x108] sm:$0xff]
    %v4531 = vld [vmem:[#allocation11 + $0x110] sm:$0xff]
    %v4532 = vld [vmem:[#allocation11 + $0x118] sm:$0xff]
    %v4533 = vld [vmem:[#allocation11 + $0x120] sm:$0xff]
    %v4534 = vld [vmem:[#allocation11 + $0x128] sm:$0xff]
    %v4535 = vld [vmem:[#allocation11 + $0x130] sm:$0xff]
    %v4536 = vld [vmem:[#allocation11 + $0x138] sm:$0xff]
    %v4537 = vld [vmem:[#allocation11 + $0x140] sm:$0xff]
    %v4538 = vld [vmem:[#allocation11 + $0x148] sm:$0xff]
    %v4539 = vld [vmem:[#allocation11 + $0x150] sm:$0xff]
    %v4540 = vld [vmem:[#allocation11 + $0x158] sm:$0xff]
    %v4541 = vld [vmem:[#allocation11 + $0x160] sm:$0xff]
    %v4542 = vld [vmem:[#allocation11 + $0x168] sm:$0xff]
    %v4543 = vld [vmem:[#allocation11 + $0x170] sm:$0xff]
    %v4544 = vld [vmem:[#allocation11 + $0x178] sm:$0xff]
    %v4545 = vld [vmem:[#allocation11 + $0x180] sm:$0xff]
    %v4546 = vld [vmem:[#allocation11 + $0x188] sm:$0xff]
    %v4547 = vld [vmem:[#allocation11 + $0x190] sm:$0xff]
    %v4548 = vld [vmem:[#allocation11 + $0x198] sm:$0xff]
    %v4549 = vld [vmem:[#allocation11 + $0x1a0] sm:$0xff]
    %v4550 = vld [vmem:[#allocation11 + $0x1a8] sm:$0xff]
    %v4551 = vld [vmem:[#allocation11 + $0x1b0] sm:$0xff]
    %v4552 = vld [vmem:[#allocation11 + $0x1b8] sm:$0xff]
    %v4553 = vld [vmem:[#allocation11 + $0x1c0] sm:$0xff]
    %v4554 = vld [vmem:[#allocation11 + $0x1c8] sm:$0xff]
    %v4555 = vld [vmem:[#allocation11 + $0x1d0] sm:$0xff]
    %v4556 = vld [vmem:[#allocation11 + $0x1d8] sm:$0xff]
    %v4557 = vld [vmem:[#allocation11 + $0x1e0] sm:$0xff]
    %v4558 = vld [vmem:[#allocation11 + $0x1e8] sm:$0xff]
    %v4559 = vld [vmem:[#allocation11 + $0x1f0] sm:$0xff]
    %v4560 = vld [vmem:[#allocation11 + $0x1f8] sm:$0xff]
    %v4561 = vld [vmem:[#allocation11 + $0x200] sm:$0xff]
    %v4562 = vld [vmem:[#allocation11 + $0x208] sm:$0xff]
    %v4563 = vld [vmem:[#allocation11 + $0x210] sm:$0xff]
    %v4564 = vld [vmem:[#allocation11 + $0x218] sm:$0xff]
    %v4565 = vld [vmem:[#allocation11 + $0x220] sm:$0xff]
    %v4566 = vld [vmem:[#allocation11 + $0x228] sm:$0xff]
    %v4567 = vld [vmem:[#allocation11 + $0x230] sm:$0xff]
    %v4568 = vld [vmem:[#allocation11 + $0x238] sm:$0xff]
    %v4569 = vld [vmem:[#allocation11 + $0x240] sm:$0xff]
    %v4570 = vld [vmem:[#allocation11 + $0x248] sm:$0xff]
    %v4571 = vld [vmem:[#allocation11 + $0x250] sm:$0xff]
    %v4572 = vld [vmem:[#allocation11 + $0x258] sm:$0xff]
    %v4573 = vld [vmem:[#allocation11 + $0x260] sm:$0xff]
    %v4574 = vld [vmem:[#allocation11 + $0x268] sm:$0xff]
    %v4575 = vld [vmem:[#allocation11 + $0x270] sm:$0xff]
    %v4576 = vld [vmem:[#allocation11 + $0x278] sm:$0xff]
    %v4577 = vld [vmem:[#allocation11 + $0x280] sm:$0xff]
    %v4578 = vld [vmem:[#allocation11 + $0x288] sm:$0xff]
    %v4579 = vld [vmem:[#allocation11 + $0x290] sm:$0xff]
    %v4580 = vld [vmem:[#allocation11 + $0x298] sm:$0xff]
    %v4581 = vld [vmem:[#allocation11 + $0x2a0] sm:$0xff]
    %v4582 = vld [vmem:[#allocation11 + $0x2a8] sm:$0xff]
    %v4583 = vld [vmem:[#allocation11 + $0x2b0] sm:$0xff]
    %v4584 = vld [vmem:[#allocation11 + $0x2b8] sm:$0xff]
    %v4585 = vld [vmem:[#allocation11 + $0x2c0] sm:$0xff]
    %v4586 = vld [vmem:[#allocation11 + $0x2c8] sm:$0xff]
    %v4587 = vld [vmem:[#allocation11 + $0x2d0] sm:$0xff]
    %v4588 = vld [vmem:[#allocation11 + $0x2d8] sm:$0xff]
    %v4589 = vld [vmem:[#allocation11 + $0x2e0] sm:$0xff]
    %v4590 = vld [vmem:[#allocation11 + $0x2e8] sm:$0xff]
    %v4591 = vld [vmem:[#allocation11 + $0x2f0] sm:$0xff]
    %v4592 = vld [vmem:[#allocation11 + $0x2f8] sm:$0xff]
    %v4593 = vld [vmem:[#allocation11 + $0x300] sm:$0xff]
    %v4594 = vld [vmem:[#allocation11 + $0x308] sm:$0xff]
    %v4595 = vld [vmem:[#allocation11 + $0x310] sm:$0xff]
    %v4596 = vld [vmem:[#allocation11 + $0x318] sm:$0xff]
    %v4597 = vld [vmem:[#allocation11 + $0x320] sm:$0xff]
    %v4598 = vld [vmem:[#allocation11 + $0x328] sm:$0xff]
    %v4599 = vld [vmem:[#allocation11 + $0x330] sm:$0xff]
    %v4600 = vld [vmem:[#allocation11 + $0x338] sm:$0xff]
    %v4601 = vld [vmem:[#allocation11 + $0x340] sm:$0xff]
    %v4602 = vld [vmem:[#allocation11 + $0x348] sm:$0xff]
    %v4603 = vld [vmem:[#allocation11 + $0x350] sm:$0xff]
    %v4604 = vld [vmem:[#allocation11 + $0x358] sm:$0xff]
    %v4605 = vld [vmem:[#allocation11 + $0x360] sm:$0xff]
    %v4606 = vld [vmem:[#allocation11 + $0x368] sm:$0xff]
    %v4607 = vld [vmem:[#allocation11 + $0x370] sm:$0xff]
    %v4608 = vld [vmem:[#allocation11 + $0x378] sm:$0xff]
    %v4609 = vld [vmem:[#allocation11 + $0x380] sm:$0xff]
    %v4610 = vld [vmem:[#allocation11 + $0x388] sm:$0xff]
    %v4611 = vld [vmem:[#allocation11 + $0x390] sm:$0xff]
    %v4612 = vld [vmem:[#allocation11 + $0x398] sm:$0xff]
    %v4613 = vld [vmem:[#allocation11 + $0x3a0] sm:$0xff]
    %v4614 = vld [vmem:[#allocation11 + $0x3a8] sm:$0xff]
    %v4615 = vld [vmem:[#allocation11 + $0x3b0] sm:$0xff]
    %v4616 = vld [vmem:[#allocation11 + $0x3b8] sm:$0xff]
    %v4617 = vld [vmem:[#allocation11 + $0x3c0] sm:$0xff]
    %v4618 = vld [vmem:[#allocation11 + $0x3c8] sm:$0xff]
    %v4619 = vld [vmem:[#allocation11 + $0x3d0] sm:$0xff]
    %v4620 = vld [vmem:[#allocation11 + $0x3d8] sm:$0xff]
    %v4621 = vld [vmem:[#allocation11 + $0x3e0] sm:$0xff]
    %v4622 = vld [vmem:[#allocation11 + $0x3e8] sm:$0xff]
    %v4623 = vld [vmem:[#allocation11 + $0x3f0] sm:$0xff]
    %v4624 = vld [vmem:[#allocation11 + $0x3f8] sm:$0xff]
    %v4625 = vld [vmem:[#allocation12] sm:$0xf]
    %v4627 = vlaneseq
    %v4628 = vshrl.u32 %v4627, 7
    %v4629 = vsub.s32 0, %v4628
    %v4630 = vrot.slane %v4625, %v4629
    %v4631 = vlaneseq
    %v4632 = vshrl.u32 %v4631, 7
    %v4633 = vsub.s32 1, %v4632
    %v4634 = vrot.slane %v4625, %v4633
    %v4635 = vlaneseq
    %v4636 = vshrl.u32 %v4635, 7
    %v4637 = vsub.s32 2, %v4636
    %v4638 = vrot.slane %v4625, %v4637
    %v4639 = vlaneseq
    %v4640 = vshrl.u32 %v4639, 7
    %v4641 = vsub.s32 3, %v4640
    %v4642 = vrot.slane %v4625, %v4641
    %v4775 = vunpack.c.l.b16 %v4497
    %v4776 = vunpack.c.h.b16 %v4497
    %v4777 = vunpack.c.l.b16 %v4498
    %v4778 = vunpack.c.h.b16 %v4498
    %v4779 = vunpack.c.l.b16 %v4499
    %v4780 = vunpack.c.h.b16 %v4499
    %v4781 = vunpack.c.l.b16 %v4500
    %v4782 = vunpack.c.h.b16 %v4500
    %v4783 = vunpack.c.l.b16 %v4501
    %v4784 = vunpack.c.h.b16 %v4501
    %v4785 = vunpack.c.l.b16 %v4502
    %v4786 = vunpack.c.h.b16 %v4502
    %v4787 = vunpack.c.l.b16 %v4503
    %v4788 = vunpack.c.h.b16 %v4503
    %v4789 = vunpack.c.l.b16 %v4504
    %v4790 = vunpack.c.h.b16 %v4504
    %v4791 = vunpack.c.l.b16 %v4505
    %v4792 = vunpack.c.h.b16 %v4505
    %v4793 = vunpack.c.l.b16 %v4506
    %v4794 = vunpack.c.h.b16 %v4506
    %v4795 = vunpack.c.l.b16 %v4507
    %v4796 = vunpack.c.h.b16 %v4507
    %v4797 = vunpack.c.l.b16 %v4508
    %v4798 = vunpack.c.h.b16 %v4508
    %v4799 = vunpack.c.l.b16 %v4509
    %v4800 = vunpack.c.h.b16 %v4509
    %v4801 = vunpack.c.l.b16 %v4510
    %v4802 = vunpack.c.h.b16 %v4510
    %v4803 = vunpack.c.l.b16 %v4511
    %v4804 = vunpack.c.h.b16 %v4511
    %v4805 = vunpack.c.l.b16 %v4512
    %v4806 = vunpack.c.h.b16 %v4512
    %v4807 = vunpack.c.l.b16 %v4513
    %v4808 = vunpack.c.h.b16 %v4513
    %v4809 = vunpack.c.l.b16 %v4514
    %v4810 = vunpack.c.h.b16 %v4514
    %v4811 = vunpack.c.l.b16 %v4515
    %v4812 = vunpack.c.h.b16 %v4515
    %v4813 = vunpack.c.l.b16 %v4516
    %v4814 = vunpack.c.h.b16 %v4516
    %v4815 = vunpack.c.l.b16 %v4517
    %v4816 = vunpack.c.h.b16 %v4517
    %v4817 = vunpack.c.l.b16 %v4518
    %v4818 = vunpack.c.h.b16 %v4518
    %v4819 = vunpack.c.l.b16 %v4519
    %v4820 = vunpack.c.h.b16 %v4519
    %v4821 = vunpack.c.l.b16 %v4520
    %v4822 = vunpack.c.h.b16 %v4520
    %v4823 = vunpack.c.l.b16 %v4521
    %v4824 = vunpack.c.h.b16 %v4521
    %v4825 = vunpack.c.l.b16 %v4522
    %v4826 = vunpack.c.h.b16 %v4522
    %v4827 = vunpack.c.l.b16 %v4523
    %v4828 = vunpack.c.h.b16 %v4523
    %v4829 = vunpack.c.l.b16 %v4524
    %v4830 = vunpack.c.h.b16 %v4524
    %v4831 = vunpack.c.l.b16 %v4525
    %v4832 = vunpack.c.h.b16 %v4525
    %v4833 = vunpack.c.l.b16 %v4526
    %v4834 = vunpack.c.h.b16 %v4526
    %v4835 = vunpack.c.l.b16 %v4527
    %v4836 = vunpack.c.h.b16 %v4527
    %v4837 = vunpack.c.l.b16 %v4528
    %v4838 = vunpack.c.h.b16 %v4528
    %v4839 = vunpack.c.l.b16 %v4529
    %v4840 = vunpack.c.h.b16 %v4529
    %v4841 = vunpack.c.l.b16 %v4530
    %v4842 = vunpack.c.h.b16 %v4530
    %v4843 = vunpack.c.l.b16 %v4531
    %v4844 = vunpack.c.h.b16 %v4531
    %v4845 = vunpack.c.l.b16 %v4532
    %v4846 = vunpack.c.h.b16 %v4532
    %v4847 = vunpack.c.l.b16 %v4533
    %v4848 = vunpack.c.h.b16 %v4533
    %v4849 = vunpack.c.l.b16 %v4534
    %v4850 = vunpack.c.h.b16 %v4534
    %v4851 = vunpack.c.l.b16 %v4535
    %v4852 = vunpack.c.h.b16 %v4535
    %v4853 = vunpack.c.l.b16 %v4536
    %v4854 = vunpack.c.h.b16 %v4536
    %v4855 = vunpack.c.l.b16 %v4537
    %v4856 = vunpack.c.h.b16 %v4537
    %v4857 = vunpack.c.l.b16 %v4538
    %v4858 = vunpack.c.h.b16 %v4538
    %v4859 = vunpack.c.l.b16 %v4539
    %v4860 = vunpack.c.h.b16 %v4539
    %v4861 = vunpack.c.l.b16 %v4540
    %v4862 = vunpack.c.h.b16 %v4540
    %v4863 = vunpack.c.l.b16 %v4541
    %v4864 = vunpack.c.h.b16 %v4541
    %v4865 = vunpack.c.l.b16 %v4542
    %v4866 = vunpack.c.h.b16 %v4542
    %v4867 = vunpack.c.l.b16 %v4543
    %v4868 = vunpack.c.h.b16 %v4543
    %v4869 = vunpack.c.l.b16 %v4544
    %v4870 = vunpack.c.h.b16 %v4544
    %v4871 = vunpack.c.l.b16 %v4545
    %v4872 = vunpack.c.h.b16 %v4545
    %v4873 = vunpack.c.l.b16 %v4546
    %v4874 = vunpack.c.h.b16 %v4546
    %v4875 = vunpack.c.l.b16 %v4547
    %v4876 = vunpack.c.h.b16 %v4547
    %v4877 = vunpack.c.l.b16 %v4548
    %v4878 = vunpack.c.h.b16 %v4548
    %v4879 = vunpack.c.l.b16 %v4549
    %v4880 = vunpack.c.h.b16 %v4549
    %v4881 = vunpack.c.l.b16 %v4550
    %v4882 = vunpack.c.h.b16 %v4550
    %v4883 = vunpack.c.l.b16 %v4551
    %v4884 = vunpack.c.h.b16 %v4551
    %v4885 = vunpack.c.l.b16 %v4552
    %v4886 = vunpack.c.h.b16 %v4552
    %v4887 = vunpack.c.l.b16 %v4553
    %v4888 = vunpack.c.h.b16 %v4553
    %v4889 = vunpack.c.l.b16 %v4554
    %v4890 = vunpack.c.h.b16 %v4554
    %v4891 = vunpack.c.l.b16 %v4555
    %v4892 = vunpack.c.h.b16 %v4555
    %v4893 = vunpack.c.l.b16 %v4556
    %v4894 = vunpack.c.h.b16 %v4556
    %v4895 = vunpack.c.l.b16 %v4557
    %v4896 = vunpack.c.h.b16 %v4557
    %v4897 = vunpack.c.l.b16 %v4558
    %v4898 = vunpack.c.h.b16 %v4558
    %v4899 = vunpack.c.l.b16 %v4559
    %v4900 = vunpack.c.h.b16 %v4559
    %v4901 = vunpack.c.l.b16 %v4560
    %v4902 = vunpack.c.h.b16 %v4560
    %v4903 = vunpack.c.l.b16 %v4561
    %v4904 = vunpack.c.h.b16 %v4561
    %v4905 = vunpack.c.l.b16 %v4562
    %v4906 = vunpack.c.h.b16 %v4562
    %v4907 = vunpack.c.l.b16 %v4563
    %v4908 = vunpack.c.h.b16 %v4563
    %v4909 = vunpack.c.l.b16 %v4564
    %v4910 = vunpack.c.h.b16 %v4564
    %v4911 = vunpack.c.l.b16 %v4565
    %v4912 = vunpack.c.h.b16 %v4565
    %v4913 = vunpack.c.l.b16 %v4566
    %v4914 = vunpack.c.h.b16 %v4566
    %v4915 = vunpack.c.l.b16 %v4567
    %v4916 = vunpack.c.h.b16 %v4567
    %v4917 = vunpack.c.l.b16 %v4568
    %v4918 = vunpack.c.h.b16 %v4568
    %v4919 = vunpack.c.l.b16 %v4569
    %v4920 = vunpack.c.h.b16 %v4569
    %v4921 = vunpack.c.l.b16 %v4570
    %v4922 = vunpack.c.h.b16 %v4570
    %v4923 = vunpack.c.l.b16 %v4571
    %v4924 = vunpack.c.h.b16 %v4571
    %v4925 = vunpack.c.l.b16 %v4572
    %v4926 = vunpack.c.h.b16 %v4572
    %v4927 = vunpack.c.l.b16 %v4573
    %v4928 = vunpack.c.h.b16 %v4573
    %v4929 = vunpack.c.l.b16 %v4574
    %v4930 = vunpack.c.h.b16 %v4574
    %v4931 = vunpack.c.l.b16 %v4575
    %v4932 = vunpack.c.h.b16 %v4575
    %v4933 = vunpack.c.l.b16 %v4576
    %v4934 = vunpack.c.h.b16 %v4576
    %v4935 = vunpack.c.l.b16 %v4577
    %v4936 = vunpack.c.h.b16 %v4577
    %v4937 = vunpack.c.l.b16 %v4578
    %v4938 = vunpack.c.h.b16 %v4578
    %v4939 = vunpack.c.l.b16 %v4579
    %v4940 = vunpack.c.h.b16 %v4579
    %v4941 = vunpack.c.l.b16 %v4580
    %v4942 = vunpack.c.h.b16 %v4580
    %v4943 = vunpack.c.l.b16 %v4581
    %v4944 = vunpack.c.h.b16 %v4581
    %v4945 = vunpack.c.l.b16 %v4582
    %v4946 = vunpack.c.h.b16 %v4582
    %v4947 = vunpack.c.l.b16 %v4583
    %v4948 = vunpack.c.h.b16 %v4583
    %v4949 = vunpack.c.l.b16 %v4584
    %v4950 = vunpack.c.h.b16 %v4584
    %v4951 = vunpack.c.l.b16 %v4585
    %v4952 = vunpack.c.h.b16 %v4585
    %v4953 = vunpack.c.l.b16 %v4586
    %v4954 = vunpack.c.h.b16 %v4586
    %v4955 = vunpack.c.l.b16 %v4587
    %v4956 = vunpack.c.h.b16 %v4587
    %v4957 = vunpack.c.l.b16 %v4588
    %v4958 = vunpack.c.h.b16 %v4588
    %v4959 = vunpack.c.l.b16 %v4589
    %v4960 = vunpack.c.h.b16 %v4589
    %v4961 = vunpack.c.l.b16 %v4590
    %v4962 = vunpack.c.h.b16 %v4590
    %v4963 = vunpack.c.l.b16 %v4591
    %v4964 = vunpack.c.h.b16 %v4591
    %v4965 = vunpack.c.l.b16 %v4592
    %v4966 = vunpack.c.h.b16 %v4592
    %v4967 = vunpack.c.l.b16 %v4593
    %v4968 = vunpack.c.h.b16 %v4593
    %v4969 = vunpack.c.l.b16 %v4594
    %v4970 = vunpack.c.h.b16 %v4594
    %v4971 = vunpack.c.l.b16 %v4595
    %v4972 = vunpack.c.h.b16 %v4595
    %v4973 = vunpack.c.l.b16 %v4596
    %v4974 = vunpack.c.h.b16 %v4596
    %v4975 = vunpack.c.l.b16 %v4597
    %v4976 = vunpack.c.h.b16 %v4597
    %v4977 = vunpack.c.l.b16 %v4598
    %v4978 = vunpack.c.h.b16 %v4598
    %v4979 = vunpack.c.l.b16 %v4599
    %v4980 = vunpack.c.h.b16 %v4599
    %v4981 = vunpack.c.l.b16 %v4600
    %v4982 = vunpack.c.h.b16 %v4600
    %v4983 = vunpack.c.l.b16 %v4601
    %v4984 = vunpack.c.h.b16 %v4601
    %v4985 = vunpack.c.l.b16 %v4602
    %v4986 = vunpack.c.h.b16 %v4602
    %v4987 = vunpack.c.l.b16 %v4603
    %v4988 = vunpack.c.h.b16 %v4603
    %v4989 = vunpack.c.l.b16 %v4604
    %v4990 = vunpack.c.h.b16 %v4604
    %v4991 = vunpack.c.l.b16 %v4605
    %v4992 = vunpack.c.h.b16 %v4605
    %v4993 = vunpack.c.l.b16 %v4606
    %v4994 = vunpack.c.h.b16 %v4606
    %v4995 = vunpack.c.l.b16 %v4607
    %v4996 = vunpack.c.h.b16 %v4607
    %v4997 = vunpack.c.l.b16 %v4608
    %v4998 = vunpack.c.h.b16 %v4608
    %v4999 = vunpack.c.l.b16 %v4609
    %v5000 = vunpack.c.h.b16 %v4609
    %v5001 = vunpack.c.l.b16 %v4610
    %v5002 = vunpack.c.h.b16 %v4610
    %v5003 = vunpack.c.l.b16 %v4611
    %v5004 = vunpack.c.h.b16 %v4611
    %v5005 = vunpack.c.l.b16 %v4612
    %v5006 = vunpack.c.h.b16 %v4612
    %v5007 = vunpack.c.l.b16 %v4613
    %v5008 = vunpack.c.h.b16 %v4613
    %v5009 = vunpack.c.l.b16 %v4614
    %v5010 = vunpack.c.h.b16 %v4614
    %v5011 = vunpack.c.l.b16 %v4615
    %v5012 = vunpack.c.h.b16 %v4615
    %v5013 = vunpack.c.l.b16 %v4616
    %v5014 = vunpack.c.h.b16 %v4616
    %v5015 = vunpack.c.l.b16 %v4617
    %v5016 = vunpack.c.h.b16 %v4617
    %v5017 = vunpack.c.l.b16 %v4618
    %v5018 = vunpack.c.h.b16 %v4618
    %v5019 = vunpack.c.l.b16 %v4619
    %v5020 = vunpack.c.h.b16 %v4619
    %v5021 = vunpack.c.l.b16 %v4620
    %v5022 = vunpack.c.h.b16 %v4620
    %v5023 = vunpack.c.l.b16 %v4621
    %v5024 = vunpack.c.h.b16 %v4621
    %v5025 = vunpack.c.l.b16 %v4622
    %v5026 = vunpack.c.h.b16 %v4622
    %v5027 = vunpack.c.l.b16 %v4623
    %v5028 = vunpack.c.h.b16 %v4623
    %v5029 = vunpack.c.l.b16 %v4624
    %v5030 = vunpack.c.h.b16 %v4624
    %v5031 = vpack.c.b16 %v4779, %v4775
    %v5032 = vpack.c.b16 %v4780, %v4776
    %v5033 = vpack.c.b16 %v4781, %v4777
    %v5034 = vpack.c.b16 %v4782, %v4778
    %v5035 = vpack.c.b16 %v4787, %v4783
    %v5036 = vpack.c.b16 %v4788, %v4784
    %v5037 = vpack.c.b16 %v4789, %v4785
    %v5038 = vpack.c.b16 %v4790, %v4786
    %v5039 = vpack.c.b16 %v4795, %v4791
    %v5040 = vpack.c.b16 %v4796, %v4792
    %v5041 = vpack.c.b16 %v4797, %v4793
    %v5042 = vpack.c.b16 %v4798, %v4794
    %v5043 = vpack.c.b16 %v4803, %v4799
    %v5044 = vpack.c.b16 %v4804, %v4800
    %v5045 = vpack.c.b16 %v4805, %v4801
    %v5046 = vpack.c.b16 %v4806, %v4802
    %v5047 = vpack.c.b16 %v4811, %v4807
    %v5048 = vpack.c.b16 %v4812, %v4808
    %v5049 = vpack.c.b16 %v4813, %v4809
    %v5050 = vpack.c.b16 %v4814, %v4810
    %v5051 = vpack.c.b16 %v4819, %v4815
    %v5052 = vpack.c.b16 %v4820, %v4816
    %v5053 = vpack.c.b16 %v4821, %v4817
    %v5054 = vpack.c.b16 %v4822, %v4818
    %v5055 = vpack.c.b16 %v4827, %v4823
    %v5056 = vpack.c.b16 %v4828, %v4824
    %v5057 = vpack.c.b16 %v4829, %v4825
    %v5058 = vpack.c.b16 %v4830, %v4826
    %v5059 = vpack.c.b16 %v4835, %v4831
    %v5060 = vpack.c.b16 %v4836, %v4832
    %v5061 = vpack.c.b16 %v4837, %v4833
    %v5062 = vpack.c.b16 %v4838, %v4834
    %v5063 = vpack.c.b16 %v4843, %v4839
    %v5064 = vpack.c.b16 %v4844, %v4840
    %v5065 = vpack.c.b16 %v4845, %v4841
    %v5066 = vpack.c.b16 %v4846, %v4842
    %v5067 = vpack.c.b16 %v4851, %v4847
    %v5068 = vpack.c.b16 %v4852, %v4848
    %v5069 = vpack.c.b16 %v4853, %v4849
    %v5070 = vpack.c.b16 %v4854, %v4850
    %v5071 = vpack.c.b16 %v4859, %v4855
    %v5072 = vpack.c.b16 %v4860, %v4856
    %v5073 = vpack.c.b16 %v4861, %v4857
    %v5074 = vpack.c.b16 %v4862, %v4858
    %v5075 = vpack.c.b16 %v4867, %v4863
    %v5076 = vpack.c.b16 %v4868, %v4864
    %v5077 = vpack.c.b16 %v4869, %v4865
    %v5078 = vpack.c.b16 %v4870, %v4866
    %v5079 = vpack.c.b16 %v4875, %v4871
    %v5080 = vpack.c.b16 %v4876, %v4872
    %v5081 = vpack.c.b16 %v4877, %v4873
    %v5082 = vpack.c.b16 %v4878, %v4874
    %v5083 = vpack.c.b16 %v4883, %v4879
    %v5084 = vpack.c.b16 %v4884, %v4880
    %v5085 = vpack.c.b16 %v4885, %v4881
    %v5086 = vpack.c.b16 %v4886, %v4882
    %v5087 = vpack.c.b16 %v4891, %v4887
    %v5088 = vpack.c.b16 %v4892, %v4888
    %v5089 = vpack.c.b16 %v4893, %v4889
    %v5090 = vpack.c.b16 %v4894, %v4890
    %v5091 = vpack.c.b16 %v4899, %v4895
    %v5092 = vpack.c.b16 %v4900, %v4896
    %v5093 = vpack.c.b16 %v4901, %v4897
    %v5094 = vpack.c.b16 %v4902, %v4898
    %v5095 = vpack.c.b16 %v4907, %v4903
    %v5096 = vpack.c.b16 %v4908, %v4904
    %v5097 = vpack.c.b16 %v4909, %v4905
    %v5098 = vpack.c.b16 %v4910, %v4906
    %v5099 = vpack.c.b16 %v4915, %v4911
    %v5100 = vpack.c.b16 %v4916, %v4912
    %v5101 = vpack.c.b16 %v4917, %v4913
    %v5102 = vpack.c.b16 %v4918, %v4914
    %v5103 = vpack.c.b16 %v4923, %v4919
    %v5104 = vpack.c.b16 %v4924, %v4920
    %v5105 = vpack.c.b16 %v4925, %v4921
    %v5106 = vpack.c.b16 %v4926, %v4922
    %v5107 = vpack.c.b16 %v4931, %v4927
    %v5108 = vpack.c.b16 %v4932, %v4928
    %v5109 = vpack.c.b16 %v4933, %v4929
    %v5110 = vpack.c.b16 %v4934, %v4930
    %v5111 = vpack.c.b16 %v4939, %v4935
    %v5112 = vpack.c.b16 %v4940, %v4936
    %v5113 = vpack.c.b16 %v4941, %v4937
    %v5114 = vpack.c.b16 %v4942, %v4938
    %v5115 = vpack.c.b16 %v4947, %v4943
    %v5116 = vpack.c.b16 %v4948, %v4944
    %v5117 = vpack.c.b16 %v4949, %v4945
    %v5118 = vpack.c.b16 %v4950, %v4946
    %v5119 = vpack.c.b16 %v4955, %v4951
    %v5120 = vpack.c.b16 %v4956, %v4952
    %v5121 = vpack.c.b16 %v4957, %v4953
    %v5122 = vpack.c.b16 %v4958, %v4954
    %v5123 = vpack.c.b16 %v4963, %v4959
    %v5124 = vpack.c.b16 %v4964, %v4960
    %v5125 = vpack.c.b16 %v4965, %v4961
    %v5126 = vpack.c.b16 %v4966, %v4962
    %v5127 = vpack.c.b16 %v4971, %v4967
    %v5128 = vpack.c.b16 %v4972, %v4968
    %v5129 = vpack.c.b16 %v4973, %v4969
    %v5130 = vpack.c.b16 %v4974, %v4970
    %v5131 = vpack.c.b16 %v4979, %v4975
    %v5132 = vpack.c.b16 %v4980, %v4976
    %v5133 = vpack.c.b16 %v4981, %v4977
    %v5134 = vpack.c.b16 %v4982, %v4978
    %v5135 = vpack.c.b16 %v4987, %v4983
    %v5136 = vpack.c.b16 %v4988, %v4984
    %v5137 = vpack.c.b16 %v4989, %v4985
    %v5138 = vpack.c.b16 %v4990, %v4986
    %v5139 = vpack.c.b16 %v4995, %v4991
    %v5140 = vpack.c.b16 %v4996, %v4992
    %v5141 = vpack.c.b16 %v4997, %v4993
    %v5142 = vpack.c.b16 %v4998, %v4994
    %v5143 = vpack.c.b16 %v5003, %v4999
    %v5144 = vpack.c.b16 %v5004, %v5000
    %v5145 = vpack.c.b16 %v5005, %v5001
    %v5146 = vpack.c.b16 %v5006, %v5002
    %v5147 = vpack.c.b16 %v5011, %v5007
    %v5148 = vpack.c.b16 %v5012, %v5008
    %v5149 = vpack.c.b16 %v5013, %v5009
    %v5150 = vpack.c.b16 %v5014, %v5010
    %v5151 = vpack.c.b16 %v5019, %v5015
    %v5152 = vpack.c.b16 %v5020, %v5016
    %v5153 = vpack.c.b16 %v5021, %v5017
    %v5154 = vpack.c.b16 %v5022, %v5018
    %v5155 = vpack.c.b16 %v5027, %v5023
    %v5156 = vpack.c.b16 %v5028, %v5024
    %v5157 = vpack.c.b16 %v5029, %v5025
    %v5158 = vpack.c.b16 %v5030, %v5026
    %5287 = vmatprep.subr.bf16.mxu0 %v5032
    %5288 = vmatpush1.bf16.msra.mxu0 %v5031
    %5289 = vmatprep.subr.bf16.mxu0 %v5036
    %5290 = vmatpush1.bf16.msra.mxu0 %v5035
    %5291 = vmatprep.subr.bf16.mxu0 %v5040
    %5292 = vmatpush1.bf16.msra.mxu0 %v5039
    %5293 = vmatprep.subr.bf16.mxu0 %v5044
    %5294 = vmatpush1.bf16.msra.mxu0 %v5043
    %5295 = vmatprep.subr.bf16.mxu0 %v5048
    %5296 = vmatpush1.bf16.msra.mxu0 %v5047
    %5297 = vmatprep.subr.bf16.mxu0 %v5052
    %5298 = vmatpush1.bf16.msra.mxu0 %v5051
    %5299 = vmatprep.subr.bf16.mxu0 %v5056
    %5300 = vmatpush1.bf16.msra.mxu0 %v5055
    %5301 = vmatprep.subr.bf16.mxu0 %v5060
    %5302 = vmatpush1.bf16.msra.mxu0 %v5059
    %5303 = vmatprep.subr.bf16.mxu0 %v5064
    %5304 = vmatpush1.bf16.msra.mxu0 %v5063
    %5305 = vmatprep.subr.bf16.mxu0 %v5068
    %5306 = vmatpush1.bf16.msra.mxu0 %v5067
    %5307 = vmatprep.subr.bf16.mxu0 %v5072
    %5308 = vmatpush1.bf16.msra.mxu0 %v5071
    %5309 = vmatprep.subr.bf16.mxu0 %v5076
    %5310 = vmatpush1.bf16.msra.mxu0 %v5075
    %5311 = vmatprep.subr.bf16.mxu0 %v5080
    %5312 = vmatpush1.bf16.msra.mxu0 %v5079
    %5313 = vmatprep.subr.bf16.mxu0 %v5084
    %5314 = vmatpush1.bf16.msra.mxu0 %v5083
    %5315 = vmatprep.subr.bf16.mxu0 %v5088
    %5316 = vmatpush1.bf16.msra.mxu0 %v5087
    %5317 = vmatprep.subr.bf16.mxu0 %v5092
    %5318 = vmatpush1.bf16.msra.mxu0 %v5091
    %5319 = vmatprep.mubr.bf16.mxu0 %v4494
    %5320 = vmatmul.mubr.bf16.gmra.mrb[0].mxu0 %v4493
    %v5321 = vpop.f32.mrb[0].mxu0
    %v5322 = vadd.f32 %v4630, %v5321
    %v5323 = vpop.f32.mrb[0].mxu0
    %v5324 = vadd.f32 %v4634, %v5323
    %v5325 = vpop.f32.mrb[0].mxu0
    %v5326 = vadd.f32 %v4630, %v5325
    %v5327 = vpop.f32.mrb[0].mxu0
    %v5328 = vadd.f32 %v4634, %v5327
    %5329 = vdwg.mxu0
    %5330 = vmatprep.subr.bf16.mxu0 %v5096
    %5331 = vmatpush1.bf16.msra.mxu0 %v5095
    %5332 = vmatprep.subr.bf16.mxu0 %v5100
    %5333 = vmatpush1.bf16.msra.mxu0 %v5099
    %5334 = vmatprep.subr.bf16.mxu0 %v5104
    %5335 = vmatpush1.bf16.msra.mxu0 %v5103
    %5336 = vmatprep.subr.bf16.mxu0 %v5108
    %5337 = vmatpush1.bf16.msra.mxu0 %v5107
    %5338 = vmatprep.subr.bf16.mxu0 %v5112
    %5339 = vmatpush1.bf16.msra.mxu0 %v5111
    %5340 = vmatprep.subr.bf16.mxu0 %v5116
    %5341 = vmatpush1.bf16.msra.mxu0 %v5115
    %5342 = vmatprep.subr.bf16.mxu0 %v5120
    %5343 = vmatpush1.bf16.msra.mxu0 %v5119
    %5344 = vmatprep.subr.bf16.mxu0 %v5124
    %5345 = vmatpush1.bf16.msra.mxu0 %v5123
    %5346 = vmatprep.subr.bf16.mxu0 %v5128
    %5347 = vmatpush1.bf16.msra.mxu0 %v5127
    %5348 = vmatprep.subr.bf16.mxu0 %v5132
    %5349 = vmatpush1.bf16.msra.mxu0 %v5131
    %5350 = vmatprep.subr.bf16.mxu0 %v5136
    %5351 = vmatpush1.bf16.msra.mxu0 %v5135
    %5352 = vmatprep.subr.bf16.mxu0 %v5140
    %5353 = vmatpush1.bf16.msra.mxu0 %v5139
    %5354 = vmatprep.subr.bf16.mxu0 %v5144
    %5355 = vmatpush1.bf16.msra.mxu0 %v5143
    %5356 = vmatprep.subr.bf16.mxu0 %v5148
    %5357 = vmatpush1.bf16.msra.mxu0 %v5147
    %5358 = vmatprep.subr.bf16.mxu0 %v5152
    %5359 = vmatpush1.bf16.msra.mxu0 %v5151
    %5360 = vmatprep.subr.bf16.mxu0 %v5156
    %5361 = vmatpush1.bf16.msra.mxu0 %v5155
    %5362 = vmatprep.mubr.bf16.mxu0 %v4496
    %5363 = vmatmul.mubr.bf16.gmra.mrb[0].mxu0 %v4495
    %v5364 = vpop.f32.mrb[0].mxu0
    %v5365 = vadd.f32 %v5322, %v5364
    %v5366 = vpop.f32.mrb[0].mxu0
    %v5367 = vadd.f32 %v5324, %v5366
    %v5368 = vpop.f32.mrb[0].mxu0
    %v5369 = vadd.f32 %v5326, %v5368
    %v5370 = vpop.f32.mrb[0].mxu0
    %v5371 = vadd.f32 %v5328, %v5370
    %5372 = vdwg.mxu0
    %5373 = vmatprep.subr.bf16.mxu0 %v5034
    %5374 = vmatpush1.bf16.msra.mxu0 %v5033
    %5375 = vmatprep.subr.bf16.mxu0 %v5038
    %5376 = vmatpush1.bf16.msra.mxu0 %v5037
    %5377 = vmatprep.subr.bf16.mxu0 %v5042
    %5378 = vmatpush1.bf16.msra.mxu0 %v5041
    %5379 = vmatprep.subr.bf16.mxu0 %v5046
    %5380 = vmatpush1.bf16.msra.mxu0 %v5045
    %5381 = vmatprep.subr.bf16.mxu0 %v5050
    %5382 = vmatpush1.bf16.msra.mxu0 %v5049
    %5383 = vmatprep.subr.bf16.mxu0 %v5054
    %5384 = vmatpush1.bf16.msra.mxu0 %v5053
    %5385 = vmatprep.subr.bf16.mxu0 %v5058
    %5386 = vmatpush1.bf16.msra.mxu0 %v5057
    %5387 = vmatprep.subr.bf16.mxu0 %v5062
    %5388 = vmatpush1.bf16.msra.mxu0 %v5061
    %5389 = vmatprep.subr.bf16.mxu0 %v5066
    %5390 = vmatpush1.bf16.msra.mxu0 %v5065
    %5391 = vmatprep.subr.bf16.mxu0 %v5070
    %5392 = vmatpush1.bf16.msra.mxu0 %v5069
    %5393 = vmatprep.subr.bf16.mxu0 %v5074
    %5394 = vmatpush1.bf16.msra.mxu0 %v5073
    %5395 = vmatprep.subr.bf16.mxu0 %v5078
    %5396 = vmatpush1.bf16.msra.mxu0 %v5077
    %5397 = vmatprep.subr.bf16.mxu0 %v5082
    %5398 = vmatpush1.bf16.msra.mxu0 %v5081
    %5399 = vmatprep.subr.bf16.mxu0 %v5086
    %5400 = vmatpush1.bf16.msra.mxu0 %v5085
    %5401 = vmatprep.subr.bf16.mxu0 %v5090
    %5402 = vmatpush1.bf16.msra.mxu0 %v5089
    %5403 = vmatprep.subr.bf16.mxu0 %v5094
    %5404 = vmatpush1.bf16.msra.mxu0 %v5093
    %5405 = vmatprep.mubr.bf16.mxu0 %v4494
    %5406 = vmatmul.mubr.bf16.gmra.mrb[0].mxu0 %v4493
    %v5407 = vpop.f32.mrb[0].mxu0
    %v5408 = vadd.f32 %v4638, %v5407
    %v5409 = vpop.f32.mrb[0].mxu0
    %v5410 = vadd.f32 %v4642, %v5409
    %v5411 = vpop.f32.mrb[0].mxu0
    %v5412 = vadd.f32 %v4638, %v5411
    %v5413 = vpop.f32.mrb[0].mxu0
    %v5414 = vadd.f32 %v4642, %v5413
    %5415 = vdwg.mxu0
    %5416 = vmatprep.subr.bf16.mxu0 %v5098
    %5417 = vmatpush1.bf16.msra.mxu0 %v5097
    %5418 = vmatprep.subr.bf16.mxu0 %v5102
    %5419 = vmatpush1.bf16.msra.mxu0 %v5101
    %5420 = vmatprep.subr.bf16.mxu0 %v5106
    %5421 = vmatpush1.bf16.msra.mxu0 %v5105
    %5422 = vmatprep.subr.bf16.mxu0 %v5110
    %5423 = vmatpush1.bf16.msra.mxu0 %v5109
    %5424 = vmatprep.subr.bf16.mxu0 %v5114
    %5425 = vmatpush1.bf16.msra.mxu0 %v5113
    %5426 = vmatprep.subr.bf16.mxu0 %v5118
    %5427 = vmatpush1.bf16.msra.mxu0 %v5117
    %5428 = vmatprep.subr.bf16.mxu0 %v5122
    %5429 = vmatpush1.bf16.msra.mxu0 %v5121
    %5430 = vmatprep.subr.bf16.mxu0 %v5126
    %5431 = vmatpush1.bf16.msra.mxu0 %v5125
    %5432 = vmatprep.subr.bf16.mxu0 %v5130
    %5433 = vmatpush1.bf16.msra.mxu0 %v5129
    %5434 = vmatprep.subr.bf16.mxu0 %v5134
    %5435 = vmatpush1.bf16.msra.mxu0 %v5133
    %5436 = vmatprep.subr.bf16.mxu0 %v5138
    %5437 = vmatpush1.bf16.msra.mxu0 %v5137
    %5438 = vmatprep.subr.bf16.mxu0 %v5142
    %5439 = vmatpush1.bf16.msra.mxu0 %v5141
    %5440 = vmatprep.subr.bf16.mxu0 %v5146
    %5441 = vmatpush1.bf16.msra.mxu0 %v5145
    %5442 = vmatprep.subr.bf16.mxu0 %v5150
    %5443 = vmatpush1.bf16.msra.mxu0 %v5149
    %5444 = vmatprep.subr.bf16.mxu0 %v5154
    %5445 = vmatpush1.bf16.msra.mxu0 %v5153
    %5446 = vmatprep.subr.bf16.mxu0 %v5158
    %5447 = vmatpush1.bf16.msra.mxu0 %v5157
    %5448 = vmatprep.mubr.bf16.mxu0 %v4496
    %5449 = vmatmul.mubr.bf16.gmra.mrb[0].mxu0 %v4495
    %v5450 = vpop.f32.mrb[0].mxu0
    %v5451 = vadd.f32 %v5408, %v5450
    %v5452 = vpop.f32.mrb[0].mxu0
    %v5453 = vadd.f32 %v5410, %v5452
    %v5454 = vpop.f32.mrb[0].mxu0
    %v5455 = vadd.f32 %v5412, %v5454
    %v5456 = vpop.f32.mrb[0].mxu0
    %v5457 = vadd.f32 %v5414, %v5456
    %5458 = vdwg.mxu0
    %v5459 = vmax.f32 %v5365, 0.0
    %v5460 = vmax.f32 %v5367, 0.0
    %v5461 = vmax.f32 %v5451, 0.0
    %v5462 = vmax.f32 %v5453, 0.0
    %v5463 = vmax.f32 %v5369, 0.0
    %v5464 = vmax.f32 %v5371, 0.0
    %v5465 = vmax.f32 %v5455, 0.0
    %v5466 = vmax.f32 %v5457, 0.0
    %v5467 = vmax.f32 %v5459, %v5460
    %v5468 = vmax.f32 %v5463, %v5464
    %v5469 = vmax.f32 %v5467, %v5461
    %v5470 = vmax.f32 %v5468, %v5465
    %v5471 = vmax.f32 %v5469, %v5462
    %v5472 = vmax.f32 %v5470, %v5466
    %v5473 = vld [vmem:[#allocation14] sm:$0xff]
    %v5474 = vadd.f32 %v5471, %v5473
    %v5475 = vadd.f32 %v5472, %v5473
    %v5476 = vpack.c.bf16 %v5475, %v5474
    %v5477 = vld [vmem:[#allocation15] sm:$0xf]
    %v5478 = vld [vmem:[#allocation15 + $0x4] sm:$0xf]
    %v5479 = vld [vmem:[#allocation15 + $0x8] sm:$0xf]
    %v5480 = vld [vmem:[#allocation15 + $0xc] sm:$0xf]
    %v5481 = vld [vmem:[#allocation15 + $0x10] sm:$0xf]
    %v5482 = vld [vmem:[#allocation15 + $0x14] sm:$0xf]
    %v5483 = vld [vmem:[#allocation15 + $0x18] sm:$0xf]
    %v5484 = vld [vmem:[#allocation15 + $0x1c] sm:$0xf]
    %v5485 = vld [vmem:[#allocation15 + $0x20] sm:$0xf]
    %v5486 = vld [vmem:[#allocation15 + $0x24] sm:$0xf]
    %v5487 = vld [vmem:[#allocation15 + $0x28] sm:$0xf]
    %v5488 = vld [vmem:[#allocation15 + $0x2c] sm:$0xf]
    %v5489 = vld [vmem:[#allocation15 + $0x30] sm:$0xf]
    %v5490 = vld [vmem:[#allocation15 + $0x34] sm:$0xf]
    %v5491 = vld [vmem:[#allocation15 + $0x38] sm:$0xf]
    %v5492 = vld [vmem:[#allocation15 + $0x3c] sm:$0xf]
    %v5493 = vld [vmem:[#allocation17] sm:$0x1]
    %v5495 = vlaneseq
    %v5496 = vshrl.u32 %v5495, 7
    %v5497 = vsub.s32 0, %v5496
    %v5498 = vrot.slane %v5493, %v5497
    %v5516 = vunpack.c.l.b16 %v5477
    %v5517 = vunpack.c.l.b16 %v5478
    %v5518 = vunpack.c.l.b16 %v5479
    %v5519 = vunpack.c.l.b16 %v5480
    %v5520 = vunpack.c.l.b16 %v5481
    %v5521 = vunpack.c.l.b16 %v5482
    %v5522 = vunpack.c.l.b16 %v5483
    %v5523 = vunpack.c.l.b16 %v5484
    %v5524 = vunpack.c.l.b16 %v5485
    %v5525 = vunpack.c.l.b16 %v5486
    %v5526 = vunpack.c.l.b16 %v5487
    %v5527 = vunpack.c.l.b16 %v5488
    %v5528 = vunpack.c.l.b16 %v5489
    %v5529 = vunpack.c.l.b16 %v5490
    %v5530 = vunpack.c.l.b16 %v5491
    %v5531 = vunpack.c.l.b16 %v5492
    %v5532 = vpack.c.b16 %v5517, %v5516
    %v5533 = vpack.c.b16 %v5519, %v5518
    %v5534 = vpack.c.b16 %v5521, %v5520
    %v5535 = vpack.c.b16 %v5523, %v5522
    %v5536 = vpack.c.b16 %v5525, %v5524
    %v5537 = vpack.c.b16 %v5527, %v5526
    %v5538 = vpack.c.b16 %v5529, %v5528
    %v5539 = vpack.c.b16 %v5531, %v5530
    %5548 = vmatprep.subr.bf16.mxu0 0
    %5549 = vmatpush1.bf16.msra.mxu0 %v5532
    %5550 = vmatprep.subr.bf16.mxu0 0
    %5551 = vmatpush1.bf16.msra.mxu0 %v5533
    %5552 = vmatprep.subr.bf16.mxu0 0
    %5553 = vmatpush1.bf16.msra.mxu0 %v5534
    %5554 = vmatprep.subr.bf16.mxu0 0
    %5555 = vmatpush1.bf16.msra.mxu0 %v5535
    %5556 = vmatprep.subr.bf16.mxu0 0
    %5557 = vmatpush1.bf16.msra.mxu0 %v5536
    %5558 = vmatprep.subr.bf16.mxu0 0
    %5559 = vmatpush1.bf16.msra.mxu0 %v5537
    %5560 = vmatprep.subr.bf16.mxu0 0
    %5561 = vmatpush1.bf16.msra.mxu0 %v5538
    %5562 = vmatprep.subr.bf16.mxu0 0
    %5563 = vmatpush1.bf16.msra.mxu0 %v5539
    %5564 = vmatprep.subr.bf16.mxu0 0
    %5565 = vmatpush1.bf16.msra.mxu0 0
    %5566 = vmatprep.subr.bf16.mxu0 0
    %5567 = vmatpush1.bf16.msra.mxu0 0
    %5568 = vmatprep.subr.bf16.mxu0 0
    %5569 = vmatpush1.bf16.msra.mxu0 0
    %5570 = vmatprep.subr.bf16.mxu0 0
    %5571 = vmatpush1.bf16.msra.mxu0 0
    %5572 = vmatprep.subr.bf16.mxu0 0
    %5573 = vmatpush1.bf16.msra.mxu0 0
    %5574 = vmatprep.subr.bf16.mxu0 0
    %5575 = vmatpush1.bf16.msra.mxu0 0
    %5576 = vmatprep.subr.bf16.mxu0 0
    %5577 = vmatpush1.bf16.msra.mxu0 0
    %5578 = vmatprep.subr.bf16.mxu0 0
    %5579 = vmatpush1.bf16.msra.mxu0 0
    %5580 = vmatprep.mubr.bf16.mxu0 0
    %5581 = vmatmul.mubr.bf16.gmra.mrb[0].mxu0 %v5476
    %v5582 = vpop.f32.mrb[0].mxu0
    %v5583 = vadd.f32 %v5498, %v5582
    %v5584 = vpop.f32.mrb[0].mxu0
    %v5585 = vpop.f32.mrb[0].mxu0
    %v5586 = vadd.f32 %v5498, %v5585
    %v5587 = vpop.f32.mrb[0].mxu0
    %5588 = vdwg.mxu0
    %v5589 = vmax.f32 %v5583, 0.0
    %v5590 = vmax.f32 %v5586, 0.0
    %v5591 = vpack.c.bf16 %v5590, %v5589
    %v5592 = vld [vmem:[#allocation18] sm:$0xf]
    %v5593 = vld [vmem:[#allocation18 + $0x4] sm:$0xf]
    %v5594 = vld [vmem:[#allocation18 + $0x8] sm:$0xf]
    %v5595 = vld [vmem:[#allocation18 + $0xc] sm:$0xf]
    %v5596 = vld [vmem:[#allocation18 + $0x10] sm:$0xf]
    %v5597 = vld [vmem:[#allocation18 + $0x14] sm:$0xf]
    %v5598 = vld [vmem:[#allocation18 + $0x18] sm:$0xf]
    %v5599 = vld [vmem:[#allocation18 + $0x1c] sm:$0xf]
    %v5600 = vld [vmem:[#allocation18 + $0x20] sm:$0xf]
    %v5601 = vld [vmem:[#allocation18 + $0x24] sm:$0xf]
    %v5602 = vld [vmem:[#allocation18 + $0x28] sm:$0xf]
    %v5603 = vld [vmem:[#allocation18 + $0x2c] sm:$0xf]
    %v5604 = vld [vmem:[#allocation18 + $0x30] sm:$0xf]
    %v5605 = vld [vmem:[#allocation18 + $0x34] sm:$0xf]
    %v5606 = vld [vmem:[#allocation18 + $0x38] sm:$0xf]
    %v5607 = vld [vmem:[#allocation18 + $0x3c] sm:$0xf]
    %v5608 = vld [vmem:[#allocation20] sm:$0x1]
    %v5610 = vlaneseq
    %v5611 = vshrl.u32 %v5610, 7
    %v5612 = vsub.s32 0, %v5611
    %v5613 = vrot.slane %v5608, %v5612
    %v5631 = vunpack.c.l.b16 %v5592
    %v5632 = vunpack.c.l.b16 %v5593
    %v5633 = vunpack.c.l.b16 %v5594
    %v5634 = vunpack.c.l.b16 %v5595
    %v5635 = vunpack.c.l.b16 %v5596
    %v5636 = vunpack.c.l.b16 %v5597
    %v5637 = vunpack.c.l.b16 %v5598
    %v5638 = vunpack.c.l.b16 %v5599
    %v5639 = vunpack.c.l.b16 %v5600
    %v5640 = vunpack.c.l.b16 %v5601
    %v5641 = vunpack.c.l.b16 %v5602
    %v5642 = vunpack.c.l.b16 %v5603
    %v5643 = vunpack.c.l.b16 %v5604
    %v5644 = vunpack.c.l.b16 %v5605
    %v5645 = vunpack.c.l.b16 %v5606
    %v5646 = vunpack.c.l.b16 %v5607
    %v5647 = vpack.c.b16 %v5632, %v5631
    %v5648 = vpack.c.b16 %v5634, %v5633
    %v5649 = vpack.c.b16 %v5636, %v5635
    %v5650 = vpack.c.b16 %v5638, %v5637
    %v5651 = vpack.c.b16 %v5640, %v5639
    %v5652 = vpack.c.b16 %v5642, %v5641
    %v5653 = vpack.c.b16 %v5644, %v5643
    %v5654 = vpack.c.b16 %v5646, %v5645
    %5663 = vmatprep.subr.bf16.mxu0 0
    %5664 = vmatpush1.bf16.msra.mxu0 %v5647
    %5665 = vmatprep.subr.bf16.mxu0 0
    %5666 = vmatpush1.bf16.msra.mxu0 %v5648
    %5667 = vmatprep.subr.bf16.mxu0 0
    %5668 = vmatpush1.bf16.msra.mxu0 %v5649
    %5669 = vmatprep.subr.bf16.mxu0 0
    %5670 = vmatpush1.bf16.msra.mxu0 %v5650
    %5671 = vmatprep.subr.bf16.mxu0 0
    %5672 = vmatpush1.bf16.msra.mxu0 %v5651
    %5673 = vmatprep.subr.bf16.mxu0 0
    %5674 = vmatpush1.bf16.msra.mxu0 %v5652
    %5675 = vmatprep.subr.bf16.mxu0 0
    %5676 = vmatpush1.bf16.msra.mxu0 %v5653
    %5677 = vmatprep.subr.bf16.mxu0 0
    %5678 = vmatpush1.bf16.msra.mxu0 %v5654
    %5679 = vmatprep.subr.bf16.mxu0 0
    %5680 = vmatpush1.bf16.msra.mxu0 0
    %5681 = vmatprep.subr.bf16.mxu0 0
    %5682 = vmatpush1.bf16.msra.mxu0 0
    %5683 = vmatprep.subr.bf16.mxu0 0
    %5684 = vmatpush1.bf16.msra.mxu0 0
    %5685 = vmatprep.subr.bf16.mxu0 0
    %5686 = vmatpush1.bf16.msra.mxu0 0
    %5687 = vmatprep.subr.bf16.mxu0 0
    %5688 = vmatpush1.bf16.msra.mxu0 0
    %5689 = vmatprep.subr.bf16.mxu0 0
    %5690 = vmatpush1.bf16.msra.mxu0 0
    %5691 = vmatprep.subr.bf16.mxu0 0
    %5692 = vmatpush1.bf16.msra.mxu0 0
    %5693 = vmatprep.subr.bf16.mxu0 0
    %5694 = vmatpush1.bf16.msra.mxu0 0
    %5695 = vmatprep.mubr.bf16.mxu0 0
    %5696 = vmatmul.mubr.bf16.gmra.mrb[0].mxu0 %v5591
    %v5697 = vpop.f32.mrb[0].mxu0
    %v5698 = vadd.f32 %v5613, %v5697
    %v5699 = vpop.f32.mrb[0].mxu0
    %v5700 = vpop.f32.mrb[0].mxu0
    %v5701 = vadd.f32 %v5613, %v5700
    %v5702 = vpop.f32.mrb[0].mxu0
    %5703 = vdwg.mxu0
    %v5704 = vtanh.pop %v5698
    %v5705 = vtanh.pop %v5701
    %v5706 = vld [vmem:[#allocation21] sm:$0x1]
    %v5708 = vlaneseq
    %v5709 = vshrl.u32 %v5708, 7
    %v5710 = vsub.s32 0, %v5709
    %v5711 = vrot.slane %v5706, %v5710
    %v5713 = vmul.f32 %v5704, %v5711
    %v5714 = vmul.f32 %v5705, %v5711
    %5715 = vadd.xlane.f32.xlu0 %v5713
    %v5716 = vpop.xlane.xlu0 %5715
    %5717 = vadd.xlane.f32.xlu0 %v5714
    %v5718 = vpop.xlane.xlu0 %5717
    %v5719 = vld [vmem:[#allocation2] sm:$0x1]
    %v5721 = vlaneseq
    %v5722 = vshrl.u32 %v5721, 7
    %v5723 = vsub.s32 0, %v5722
    %v5724 = vrot.slane %v5719, %v5723
    %5725 = vset.pattern.permute.xlu0 0
    %5726 = vperm.xlu0 %5725, %v5724
    %v5727 = vpop.permute.xlu0 %5726
    %v5729 = vadd.f32 %v5716, %v5727
    %v5730 = vadd.f32 %v5718, %v5727
    %v5731 = vlaneseq
    %v5732 = vand.u32 %v5731, 127
    %v5733 = vld [vmem:[%s8] sm:$0x3]
    %5734 = vset.pattern.permute.xlu0 0
    %5735 = vperm.xlu0 %5734, %v5733
    %v5736 = vpop.permute.xlu0 %5735
    %vm5737 = vcmp.lt.s32.totalorder %v5732, %v5736
    %v5740 = vlaneseq
    %v5741 = vshrl.u32 %v5740, 7
    %v5742 = vsub.s32 %v5732, %v5741
    %v5743 = vrot.slane %v5729, %v5742
    %v5744 = vlaneseq
    %v5745 = vshrl.u32 %v5744, 7
    %v5746 = vsub.s32 %v5732, %v5745
    %v5747 = vrot.slane %v5730, %v5746
    %vm5748 = vcmask 1041409
    %v5749 = vsel %vm5748, %v5747, %v5743
    %v5751 = vsel %vm5737, %v5749, -1e+30
    %vm5752 = vcmask 58368
    %v5753 = vsel %vm5752, %v5751, -inf
    %5754 = vmax.xlane.f32.xlu0 %v5753
    %v5755 = vpop.xlane.xlu0 %5754
    %v5756 = vsub.f32 %v5751, %v5755
    %v5757 = vmul.f32 %v5756, 1.442695
    %v5758 = vpow.pop %v5757
    %v5759 = vsel %vm5737, %v5758, 0.0
    %v5760 = vsel %vm5752, %v5759, 0.0
    %5761 = vadd.xlane.f32.xlu0 %v5760
    %v5762 = vpop.xlane.xlu0 %5761
    %v5763 = vmax.f32 %v5762, 1e-30
    %v5764 = vrcp.pop %v5763
    %v5765 = vmul.f32 %v5759, %v5764
    %v5766 = vlaneseq
    %v5767 = vshrl.u32 %v5766, 7
    %v5768 = vsub.s32 0, %v5767
    %v5769 = vrot.slane %v5765, %v5768
    %5771 = vbcast.lane.b32.xlu0 %v5769, 256
    %v5772 = vpop.permute.xlu0 %5771
    %v5773 = vlaneseq
    %v5774 = vshrl.u32 %v5773, 7
    %v5775 = vsub.s32 1, %v5774
    %v5776 = vrot.slane %v5765, %v5775
    %5778 = vbcast.lane.b32.xlu0 %v5776, 256
    %v5779 = vpop.permute.xlu0 %5778
    %v5780 = vmul.f32 %v5772, %v5471
    %v5781 = vmul.f32 %v5779, %v5472
    %v5782 = vrot.slane %v5780, 4
    %v5783 = vadd.f32 %v5780, %v5782
    %v5784 = vrot.slane %v5783, 2
    %v5785 = vadd.f32 %v5783, %v5784
    %v5786 = vrot.slane %v5785, 1
    %v5787 = vadd.f32 %v5785, %v5786
    %v5788 = vrot.slane %v5781, 4
    %v5789 = vadd.f32 %v5781, %v5788
    %v5790 = vrot.slane %v5789, 2
    %v5791 = vadd.f32 %v5789, %v5790
    %v5792 = vrot.slane %v5791, 1
    %v5793 = vadd.f32 %v5791, %v5792
    %v5794 = vpack.c.bf16 %v5787, %v5787
    %v5795 = vpack.c.bf16 %v5793, %v5793
    %v5796 = vld [vmem:[#allocation23] sm:$0xf]
    %v5797 = vld [vmem:[#allocation23 + $0x4] sm:$0xf]
    %v5798 = vld [vmem:[#allocation23 + $0x8] sm:$0xf]
    %v5799 = vld [vmem:[#allocation23 + $0xc] sm:$0xf]
    %v5800 = vld [vmem:[#allocation23 + $0x10] sm:$0xf]
    %v5801 = vld [vmem:[#allocation23 + $0x14] sm:$0xf]
    %v5802 = vld [vmem:[#allocation23 + $0x18] sm:$0xf]
    %v5803 = vld [vmem:[#allocation23 + $0x1c] sm:$0xf]
    %v5804 = vld [vmem:[#allocation23 + $0x20] sm:$0xf]
    %v5805 = vld [vmem:[#allocation23 + $0x24] sm:$0xf]
    %v5806 = vld [vmem:[#allocation23 + $0x28] sm:$0xf]
    %v5807 = vld [vmem:[#allocation23 + $0x2c] sm:$0xf]
    %v5808 = vld [vmem:[#allocation23 + $0x30] sm:$0xf]
    %v5809 = vld [vmem:[#allocation23 + $0x34] sm:$0xf]
    %v5810 = vld [vmem:[#allocation23 + $0x38] sm:$0xf]
    %v5811 = vld [vmem:[#allocation23 + $0x3c] sm:$0xf]
    %v5812 = vld [vmem:[#allocation24] sm:$0x1]
    %v5814 = vlaneseq
    %v5815 = vshrl.u32 %v5814, 7
    %v5816 = vsub.s32 0, %v5815
    %v5817 = vrot.slane %v5812, %v5816
    %v5821 = vunpack.c.l.b16 %v5794
    %v5822 = vunpack.c.l.b16 %v5795
    %v5823 = vsel %vm5748, %v5822, %v5821
    %v5824 = vpack.c.b16 %v5823, %v5823
    %v5842 = vunpack.c.l.b16 %v5796
    %v5843 = vunpack.c.l.b16 %v5797
    %v5844 = vunpack.c.l.b16 %v5798
    %v5845 = vunpack.c.l.b16 %v5799
    %v5846 = vunpack.c.l.b16 %v5800
    %v5847 = vunpack.c.l.b16 %v5801
    %v5848 = vunpack.c.l.b16 %v5802
    %v5849 = vunpack.c.l.b16 %v5803
    %v5850 = vunpack.c.l.b16 %v5804
    %v5851 = vunpack.c.l.b16 %v5805
    %v5852 = vunpack.c.l.b16 %v5806
    %v5853 = vunpack.c.l.b16 %v5807
    %v5854 = vunpack.c.l.b16 %v5808
    %v5855 = vunpack.c.l.b16 %v5809
    %v5856 = vunpack.c.l.b16 %v5810
    %v5857 = vunpack.c.l.b16 %v5811
    %v5858 = vpack.c.b16 %v5843, %v5842
    %v5859 = vpack.c.b16 %v5845, %v5844
    %v5860 = vpack.c.b16 %v5847, %v5846
    %v5861 = vpack.c.b16 %v5849, %v5848
    %v5862 = vpack.c.b16 %v5851, %v5850
    %v5863 = vpack.c.b16 %v5853, %v5852
    %v5864 = vpack.c.b16 %v5855, %v5854
    %v5865 = vpack.c.b16 %v5857, %v5856
    %5874 = vmatprep.subr.bf16.mxu0 0
    %5875 = vmatpush1.bf16.msra.mxu0 %v5858
    %5876 = vmatprep.subr.bf16.mxu0 0
    %5877 = vmatpush1.bf16.msra.mxu0 %v5859
    %5878 = vmatprep.subr.bf16.mxu0 0
    %5879 = vmatpush1.bf16.msra.mxu0 %v5860
    %5880 = vmatprep.subr.bf16.mxu0 0
    %5881 = vmatpush1.bf16.msra.mxu0 %v5861
    %5882 = vmatprep.subr.bf16.mxu0 0
    %5883 = vmatpush1.bf16.msra.mxu0 %v5862
    %5884 = vmatprep.subr.bf16.mxu0 0
    %5885 = vmatpush1.bf16.msra.mxu0 %v5863
    %5886 = vmatprep.subr.bf16.mxu0 0
    %5887 = vmatpush1.bf16.msra.mxu0 %v5864
    %5888 = vmatprep.subr.bf16.mxu0 0
    %5889 = vmatpush1.bf16.msra.mxu0 %v5865
    %5890 = vmatprep.subr.bf16.mxu0 0
    %5891 = vmatpush1.bf16.msra.mxu0 0
    %5892 = vmatprep.subr.bf16.mxu0 0
    %5893 = vmatpush1.bf16.msra.mxu0 0
    %5894 = vmatprep.subr.bf16.mxu0 0
    %5895 = vmatpush1.bf16.msra.mxu0 0
    %5896 = vmatprep.subr.bf16.mxu0 0
    %5897 = vmatpush1.bf16.msra.mxu0 0
    %5898 = vmatprep.subr.bf16.mxu0 0
    %5899 = vmatpush1.bf16.msra.mxu0 0
    %5900 = vmatprep.subr.bf16.mxu0 0
    %5901 = vmatpush1.bf16.msra.mxu0 0
    %5902 = vmatprep.subr.bf16.mxu0 0
    %5903 = vmatpush1.bf16.msra.mxu0 0
    %5904 = vmatprep.subr.bf16.mxu0 0
    %5905 = vmatpush1.bf16.msra.mxu0 0
    %5906 = vmatprep.mubr.bf16.mxu0 0
    %5907 = vmatmul.mubr.bf16.gmra.mrb[0].mxu0 %v5824
    %v5908 = vpop.f32.mrb[0].mxu0
    %v5909 = vadd.f32 %v5817, %v5908
    %v5910 = vpop.f32.mrb[0].mxu0
    %v5911 = vpop.f32.mrb[0].mxu0
    %v5912 = vpop.f32.mrb[0].mxu0
    %5913 = vdwg.mxu0
    %v5914 = vmax.f32 %v5909, 0.0
    %v5915 = vpack.c.bf16 %v5914, %v5914
    %v5916 = vld [vmem:[%s17] sm:$0xf]
    %v5917 = vld [vmem:[%s17 + $0x4] sm:$0xf]
    %v5918 = vld [vmem:[%s17 + $0x8] sm:$0xf]
    %v5919 = vld [vmem:[%s17 + $0xc] sm:$0xf]
    %v5920 = vld [vmem:[%s17 + $0x10] sm:$0xf]
    %v5921 = vld [vmem:[%s17 + $0x14] sm:$0xf]
    %v5922 = vld [vmem:[%s17 + $0x18] sm:$0xf]
    %v5923 = vld [vmem:[%s17 + $0x1c] sm:$0xf]
    %v5924 = vld [vmem:[%s17 + $0x20] sm:$0xf]
    %v5925 = vld [vmem:[%s17 + $0x24] sm:$0xf]
    %v5926 = vld [vmem:[%s17 + $0x28] sm:$0xf]
    %v5927 = vld [vmem:[%s17 + $0x2c] sm:$0xf]
    %v5928 = vld [vmem:[%s17 + $0x30] sm:$0xf]
    %v5929 = vld [vmem:[%s17 + $0x34] sm:$0xf]
    %v5930 = vld [vmem:[%s17 + $0x38] sm:$0xf]
    %v5931 = vld [vmem:[%s17 + $0x3c] sm:$0xf]
    %v5932 = vld [vmem:[#allocation26] sm:$0x1]
    %v5934 = vlaneseq
    %v5935 = vshrl.u32 %v5934, 7
    %v5936 = vsub.s32 0, %v5935
    %v5937 = vrot.slane %v5932, %v5936
    %v5955 = vunpack.c.l.b16 %v5916
    %v5956 = vunpack.c.l.b16 %v5917
    %v5957 = vunpack.c.l.b16 %v5918
    %v5958 = vunpack.c.l.b16 %v5919
    %v5959 = vunpack.c.l.b16 %v5920
    %v5960 = vunpack.c.l.b16 %v5921
    %v5961 = vunpack.c.l.b16 %v5922
    %v5962 = vunpack.c.l.b16 %v5923
    %v5963 = vunpack.c.l.b16 %v5924
    %v5964 = vunpack.c.l.b16 %v5925
    %v5965 = vunpack.c.l.b16 %v5926
    %v5966 = vunpack.c.l.b16 %v5927
    %v5967 = vunpack.c.l.b16 %v5928
    %v5968 = vunpack.c.l.b16 %v5929
    %v5969 = vunpack.c.l.b16 %v5930
    %v5970 = vunpack.c.l.b16 %v5931
    %v5971 = vpack.c.b16 %v5956, %v5955
    %v5972 = vpack.c.b16 %v5958, %v5957
    %v5973 = vpack.c.b16 %v5960, %v5959
    %v5974 = vpack.c.b16 %v5962, %v5961
    %v5975 = vpack.c.b16 %v5964, %v5963
    %v5976 = vpack.c.b16 %v5966, %v5965
    %v5977 = vpack.c.b16 %v5968, %v5967
    %v5978 = vpack.c.b16 %v5970, %v5969
    %5987 = vmatprep.subr.bf16.mxu0 0
    %5988 = vmatpush1.bf16.msra.mxu0 %v5971
    %5989 = vmatprep.subr.bf16.mxu0 0
    %5990 = vmatpush1.bf16.msra.mxu0 %v5972
    %5991 = vmatprep.subr.bf16.mxu0 0
    %5992 = vmatpush1.bf16.msra.mxu0 %v5973
    %5993 = vmatprep.subr.bf16.mxu0 0
    %5994 = vmatpush1.bf16.msra.mxu0 %v5974
    %5995 = vmatprep.subr.bf16.mxu0 0
    %5996 = vmatpush1.bf16.msra.mxu0 %v5975
    %5997 = vmatprep.subr.bf16.mxu0 0
    %5998 = vmatpush1.bf16.msra.mxu0 %v5976
    %5999 = vmatprep.subr.bf16.mxu0 0
    %6000 = vmatpush1.bf16.msra.mxu0 %v5977
    %6001 = vmatprep.subr.bf16.mxu0 0
    %6002 = vmatpush1.bf16.msra.mxu0 %v5978
    %6003 = vmatprep.subr.bf16.mxu0 0
    %6004 = vmatpush1.bf16.msra.mxu0 0
    %6005 = vmatprep.subr.bf16.mxu0 0
    %6006 = vmatpush1.bf16.msra.mxu0 0
    %6007 = vmatprep.subr.bf16.mxu0 0
    %6008 = vmatpush1.bf16.msra.mxu0 0
    %6009 = vmatprep.subr.bf16.mxu0 0
    %6010 = vmatpush1.bf16.msra.mxu0 0
    %6011 = vmatprep.subr.bf16.mxu0 0
    %6012 = vmatpush1.bf16.msra.mxu0 0
    %6013 = vmatprep.subr.bf16.mxu0 0
    %6014 = vmatpush1.bf16.msra.mxu0 0
    %6015 = vmatprep.subr.bf16.mxu0 0
    %6016 = vmatpush1.bf16.msra.mxu0 0
    %6017 = vmatprep.subr.bf16.mxu0 0
    %6018 = vmatpush1.bf16.msra.mxu0 0
    %6019 = vmatprep.mubr.bf16.mxu0 0
    %6020 = vmatmul.mubr.bf16.gmra.mrb[0].mxu0 %v5915
    %v6021 = vpop.f32.mrb[0].mxu0
    %v6022 = vadd.f32 %v5937, %v6021
    %v6023 = vpop.f32.mrb[0].mxu0
    %v6024 = vpop.f32.mrb[0].mxu0
    %v6025 = vpop.f32.mrb[0].mxu0
    %6026 = vdwg.mxu0
    %v6027 = vxor.u32 %v6022, 2147483648
    %v6028 = vmul.f32 %v6027, 1.442695
    %v6029 = vpow.pop %v6028
    %v6030 = vadd.f32 %v6029, 1.0
    %v6031 = vrcp.pop %v6030
    %v6032 = vmul.f32 1.0, %v6031
    %vm6033 = vcmask 9216
    %6034 = vst.msk [vmem:[#allocation27] sm:$0x3] %vm6033, %v6032
    %6035 = vst.msk [vmem:[#allocation28] sm:$0x3] %vm5752, %v5765
    // Predicated region
    $region138: #{music_highlighter_forward.1} parent=1 // pred_check
      _
    $region139: #{music_highlighter_forward.1} parent=1 // pred_check_branch
      %6037 = sbr.rel (0) target = $region141
    $region140: #{music_highlighter_forward.1} parent=1 // pred_region
      %s6039 = ssub.s32 32, 32
      %6040 = vsyncadd [#allocation5], %s6039
      %s6042 = sshll.u32 [#allocation27], 4
      %s6043 = int_to_ptr.vmem [resolvable:$true] %s6042
      %6045 = dma.vmem_to_hbm [thread:$0]  %s6043, 32, %s19, [#allocation5]
    $region141: #{music_highlighter_forward.1} parent=1 // pred_fallthru
      _
    // Predicated region
    $region142: #{music_highlighter_forward.1} parent=1 // pred_check
      _
    $region143: #{music_highlighter_forward.1} parent=1 // pred_check_branch
      %6047 = sbr.rel (0) target = $region145
    $region144: #{music_highlighter_forward.1} parent=1 // pred_region
      %s6049 = ssub.s32 32, 32
      %6050 = vsyncadd [#allocation29], %s6049
      %s6052 = sshll.u32 [#allocation28], 4
      %s6053 = int_to_ptr.vmem [resolvable:$true] %s6052
      %6055 = dma.vmem_to_hbm [thread:$0]  %s6053, 32, %s20, [#allocation29]
    $region145: #{music_highlighter_forward.1} parent=1 // pred_fallthru
      _
    // Predicated region
    $region146: #{music_highlighter_forward.1} parent=1 // pred_check
      _
    $region147: #{music_highlighter_forward.1} parent=1 // pred_check_branch
      %6057 = sbr.rel (0) target = $region149
    $region148: #{music_highlighter_forward.1} parent=1 // pred_region
      %6058 = dma.done [#allocation5], 32
    $region149: #{music_highlighter_forward.1} parent=1 // pred_fallthru
      _
    // Predicated region
    $region150: #{music_highlighter_forward.1} parent=1 // pred_check
      _
    $region151: #{music_highlighter_forward.1} parent=1 // pred_check_branch
      %6060 = sbr.rel (0) target = $region153
    $region152: #{music_highlighter_forward.1} parent=1 // pred_region
      %6061 = dma.done [#allocation29], 32
    $region153: #{music_highlighter_forward.1} parent=1 // pred_fallthru
      _
    %6062 = vsyncpa [#allocation4], 1
    %6063 = vsyncpa [#allocation7], 1
    %6064 = vsyncpa [#allocation10], 1
    %6065 = vsyncpa [#allocation13], 1
    %6066 = vsyncpa [#allocation16], 1
    %6067 = vsyncpa [#allocation19], 1
    %6068 = vsyncpa [#allocation22], 1
    %6069 = vsyncpa [#allocation25], 1
    %6070 = vsyncpa [#allocation5], 1
    %6071 = vsyncpa [#allocation29], 1

</llo_original>
